<compile_context>
chip_gen: v5e
topology: v5e:2x2
jax: 0.10.0
libtpu: 0.0.40
codegen_flags: <defaults>
</compile_context>

<pallas_src>
import functools

import jax
import jax.numpy as jnp
from jax import lax
from jax.experimental import pallas as pl
from jax.experimental.pallas import tpu as pltpu

STATE_SIZE = 128
TIME_WINDOW = 10
NUM_ACTIONS = 5
OUT_PAD = 128          # fc_out padded to a full lane width
LN_EPS = 1e-5

# (beta, threshold) for the four Leaky neurons, reset_mechanism = 'zero'
LIF_PARAMS = ((0.95, 0.80), (0.92, 0.85), (0.90, 0.90), (0.85, 0.95))

# ----------------------------------------------------------------------------
# Packing layout for all small parameters (LayerNorm gamma/beta and biases).
# Each entry starts at a 128-lane-aligned offset inside one [1, total] buffer.
# ----------------------------------------------------------------------------
_SMALL_SPEC = (
    ("ln_in_g", 128), ("ln_in_b", 128),
    ("b_vis", 512), ("ln_v_g", 512), ("ln_v_b", 512),
    ("b_attn", 512),
    ("b_r1", 256), ("ln1_g", 256), ("ln1_b", 256),
    ("b_r2", 128), ("ln2_g", 128), ("ln2_b", 128),
    ("b_r3", 64), ("ln3_g", 64), ("ln3_b", 64),
    ("b_s0", 64), ("b_s1", 64), ("b_s2", 32), ("b_s3", 32),
    ("b_out", OUT_PAD),
)


def _pad128(n):
    return -(-n // 128) * 128


_SMALL_OFFSETS = {}
_off = 0
for _name, _n in _SMALL_SPEC:
    _SMALL_OFFSETS[_name] = (_off, _n)
    _off += _pad128(_n)
_SMALL_TOTAL = _off  # = 4480, multiple of 128


def _ceil_to(n, m):
    return -(-n // m) * m


def _cdiv(a, b):
    return -(-a // b)


# ----------------------------------------------------------------------------
# Shared math helpers (used by both the kernel and the pure-JAX reference)
# ----------------------------------------------------------------------------
def _layernorm(x, g, b):
    # Independent sum / sum-of-squares reductions -> the two XLU reduces
    # pipeline instead of serializing.  var clamped at 0 for FP safety
    # (also keeps all-zero padded rows finite: var=0 + eps).
    mean = jnp.mean(x, axis=-1, keepdims=True)
    mean_sq = jnp.mean(x * x, axis=-1, keepdims=True)
    var = jnp.maximum(mean_sq - mean * mean, 0.0)
    return (x - mean) * lax.rsqrt(var + LN_EPS) * g + b


def _leaky_relu(x):
    # slope 0.1 < 1  =>  leaky_relu(x) == max(x, 0.1 * x)
    return jnp.maximum(x, 0.1 * x)


def _lif_step(inp, mem, beta, threshold):
    # snntorch.Leaky with reset_mechanism='zero':
    #   reset   = Heaviside(mem_old - threshold)
    #   mem_new = (beta * mem_old + input) * (1 - reset)
    #   spk     = Heaviside(mem_new - threshold)
    # equivalently:
    mem_new = jnp.where(mem > threshold, 0.0, beta * mem + inp)
    spk = (mem_new > threshold).astype(jnp.float32)
    return spk, mem_new


def _mm(x, w):
    # Cast activations to the (possibly bf16) weight dtype so the MXU runs at
    # its native rate; accumulate in f32.
    return jnp.dot(x.astype(w.dtype), w, preferred_element_type=jnp.float32)


# ----------------------------------------------------------------------------
# Kernel
# ----------------------------------------------------------------------------
def _make_kernel(tb, sub, halves):
    """Builds the kernel for a given batch-tile size.

    tb     : batch rows per grid step (multiple of 8)
    sub    : spiking sub-chunk rows (8 or 16, divides tb)
    halves : static ((row0, rows), ...) split of the tile for trunk ILP
    """
    n_chunks = tb // sub

    def kernel(x_ref, small_ref,
               w_vis, w_attn, w_r1, w_r2, w_r3,
               w_s0, w_s1, w_s2, w_s3, w_out,
               out_ref, x0_ref):
        def sp(name):
            off, n = _SMALL_OFFSETS[name]
            return small_ref[:, off:off + n]

        # ---- trunk, run per independent batch half-tile (gives the VLIW
        #      scheduler ILP: one half's matmuls overlap the other's LN) -----
        def trunk(xh):
            h = _layernorm(xh, sp("ln_in_g"), sp("ln_in_b"))
            v = _leaky_relu(_mm(h, w_vis[...]) + sp("b_vis"))
            v = _layernorm(v, sp("ln_v_g"), sp("ln_v_b"))
            # seq_len==1 attention: softmax over one key == 1, so
            # attn_out = out_proj(v_proj(x)); the two projections are fused
            # offline into one 512x512 weight (mathematically exact).
            attn = _mm(v, w_attn[...]) + sp("b_attn")
            r1 = _layernorm(_leaky_relu(_mm(attn, w_r1[...]) + sp("b_r1")),
                            sp("ln1_g"), sp("ln1_b")) + attn[:, :256]
            r2 = _layernorm(_leaky_relu(_mm(r1, w_r2[...]) + sp("b_r2")),
                            sp("ln2_g"), sp("ln2_b")) + r1[:, :128]
            r3 = _layernorm(_leaky_relu(_mm(r2, w_r3[...]) + sp("b_r3")),
                            sp("ln3_g"), sp("ln3_b")) + r2[:, :64]
            # fc_snn0(res3) is loop-invariant -> computed once here.
            return _mm(r3, w_s0[...]) + sp("b_s0")

        for (row0, rows) in halves:
            x0_ref[pl.ds(row0, rows), :] = trunk(
                x_ref[pl.ds(row0, rows), :].astype(jnp.float32))

        # ---- spiking section: small batch sub-chunks, 10 timesteps fully
        #      unrolled per chunk so the whole LIF chain stays in vregs ------
        b_s1v, b_s2v, b_s3v = sp("b_s1"), sp("b_s2"), sp("b_s3")
        b_outv = sp("b_out")

        def spiking_chunk(row0):
            x0c = x0_ref[pl.ds(row0, sub), :]
            m0 = jnp.zeros((sub, 64), jnp.float32)
            m1 = jnp.zeros((sub, 64), jnp.float32)
            m2 = jnp.zeros((sub, 32), jnp.float32)
            m3 = jnp.zeros((sub, 32), jnp.float32)
            acc = jnp.zeros((sub, OUT_PAD), jnp.float32)
            for _ in range(TIME_WINDOW):
                # weight reads kept inline (cheap VMEM->vreg reloads) so the
                # tiny weight tiles don't pin vregs across the unrolled chain.
                s0, m0 = _lif_step(x0c, m0, *LIF_PARAMS[0])
                s1, m1 = _lif_step(
                    jnp.dot(s0, w_s1[...],
                            preferred_element_type=jnp.float32) + b_s1v,
                    m1, *LIF_PARAMS[1])
                s2, m2 = _lif_step(
                    jnp.dot(s1, w_s2[...],
                            preferred_element_type=jnp.float32) + b_s2v,
                    m2, *LIF_PARAMS[2])
                s3, m3 = _lif_step(
                    jnp.dot(s2, w_s3[...],
                            preferred_element_type=jnp.float32) + b_s3v,
                    m3, *LIF_PARAMS[3])
                acc = acc + jax.nn.sigmoid(
                    jnp.dot(s3, w_out[...],
                            preferred_element_type=jnp.float32) + b_outv)
            out_ref[pl.ds(row0, sub), :] = acc * (1.0 / TIME_WINDOW)

        if n_chunks == 1:
            spiking_chunk(0)
        else:
            @pl.loop(0, n_chunks)
            def _(c):
                spiking_chunk(pl.multiple_of(c * sub, sub))

    return kernel


# ----------------------------------------------------------------------------
# Parameter construction / host-side preparation
# ----------------------------------------------------------------------------
def make_params(key):
    """Deterministic synthetic parameters (shapes match the PyTorch module)."""
    keys = iter(jax.random.split(key, 64))

    def linear(in_f, out_f):
        w = jax.random.normal(next(keys), (in_f, out_f), jnp.float32) / jnp.sqrt(in_f)
        b = jax.random.normal(next(keys), (1, out_f), jnp.float32) * 0.01
        return w, b

    def ln(dim):
        return jnp.ones((1, dim), jnp.float32), jnp.zeros((1, dim), jnp.float32)

    p = []
    p += ln(STATE_SIZE)                       # input_norm
    p += linear(STATE_SIZE, 512)              # visual Linear
    p += ln(512)                              # visual LayerNorm
    p += linear(512, 512)                     # attention v_proj (slice of in_proj)
    p += linear(512, 512)                     # attention out_proj
    p += linear(512, 256); p += ln(256)       # res_block1
    p += linear(256, 128); p += ln(128)       # res_block2
    p += linear(128, 64);  p += ln(64)        # res_block3
    p += linear(64, 64)                       # fc_snn0
    p += linear(64, 64)                       # fc_snn1
    p += linear(64, 32)                       # fc_snn2
    p += linear(32, 32)                       # fc_snn3
    p += linear(32, NUM_ACTIONS)              # fc_out
    return tuple(p)


def prepare_params(params):
    """One-time host-side prep: fuse attention (f32, then cast), pack small
    params, cast big weights to bf16, pad fc_out to 128 output lanes."""
    (ln_in_g, ln_in_b,
     w_vis, b_vis, ln_v_g, ln_v_b,
     w_v, b_v, w_o, b_o,
     w_r1, b_r1, ln1_g, ln1_b,
     w_r2, b_r2, ln2_g, ln2_b,
     w_r3, b_r3, ln3_g, ln3_b,
     w_s0, b_s0, w_s1, b_s1, w_s2, b_s2, w_s3, b_s3,
     w_out, b_out) = params

    # seq_len==1 attention: out_proj(v_proj(x)) == x @ (Wv @ Wo) + (bv @ Wo + bo)
    w_attn = jnp.dot(w_v, w_o)
    b_attn = jnp.dot(b_v, w_o) + b_o

    # Pad fc_out to 128 output lanes (zero cols / bias) -> lane-dense accumulator.
    w_out_p = jnp.zeros((w_out.shape[0], OUT_PAD), jnp.float32)
    w_out_p = w_out_p.at[:, :NUM_ACTIONS].set(w_out)
    b_out_p = jnp.zeros((1, OUT_PAD), jnp.float32)
    b_out_p = b_out_p.at[:, :NUM_ACTIONS].set(b_out)

    small_vals = {
        "ln_in_g": ln_in_g, "ln_in_b": ln_in_b,
        "b_vis": b_vis, "ln_v_g": ln_v_g, "ln_v_b": ln_v_b,
        "b_attn": b_attn,
        "b_r1": b_r1, "ln1_g": ln1_g, "ln1_b": ln1_b,
        "b_r2": b_r2, "ln2_g": ln2_g, "ln2_b": ln2_b,
        "b_r3": b_r3, "ln3_g": ln3_g, "ln3_b": ln3_b,
        "b_s0": b_s0, "b_s1": b_s1, "b_s2": b_s2, "b_s3": b_s3,
        "b_out": b_out_p,
    }
    small = jnp.zeros((1, _SMALL_TOTAL), jnp.float32)
    for name, n in _SMALL_SPEC:
        off, _ = _SMALL_OFFSETS[name]
        small = small.at[:, off:off + n].set(
            small_vals[name].reshape(1, n).astype(jnp.float32))

    weights = (
        w_vis.astype(jnp.bfloat16),   # 128x512
        w_attn.astype(jnp.bfloat16),  # 512x512 (fused v_proj @ out_proj)
        w_r1.astype(jnp.bfloat16),    # 512x256
        w_r2.astype(jnp.bfloat16),    # 256x128
        w_r3.astype(jnp.float32),     # 128x64
        w_s0.astype(jnp.float32),     # 64x64
        w_s1.astype(jnp.float32),     # 64x64
        w_s2.astype(jnp.float32),     # 64x32
        w_s3.astype(jnp.float32),     # 32x32
        w_out_p,                      # 32x128 (padded)
    )
    return (small,) + weights


# ----------------------------------------------------------------------------
# Wrapper
# ----------------------------------------------------------------------------
@functools.partial(jax.jit, static_argnames=("block_batch",))
def enhanced_snn(x, prepared, *, block_batch=512):
    if x.ndim == 1:
        x = x[None, :]
    assert x.shape[1] == STATE_SIZE, f"expected state size {STATE_SIZE}"

    small, weights = prepared[0], prepared[1:]
    B = x.shape[0]

    # Batch tiling: pad to full sublanes, split evenly into n_tiles so padding
    # waste is bounded (< 8 rows per tile), and guarantee >= 2 grid steps when
    # there is enough work so v7x's second TensorCore is used.
    Bp = _ceil_to(max(B, 8), 8)
    n_tiles = _cdiv(Bp, min(block_batch, Bp))
    if Bp >= 16:
        n_tiles = max(n_tiles, 2)
    TB = _ceil_to(_cdiv(Bp, n_tiles), 8)
    Bp = n_tiles * TB
    if Bp != B:
        x = jnp.pad(x, ((0, Bp - B), (0, 0)))

    # Spiking sub-chunk size (8-16 rows keeps the whole LIF chain in vregs).
    sub = 16 if TB % 16 == 0 else 8
    # Trunk half-tiles (both multiples of 8 rows) for scheduler ILP.
    if TB >= 16:
        h0 = _ceil_to(TB // 2, 8)
        halves = ((0, h0), (h0, TB - h0))
    else:
        halves = ((0, TB),)

    kernel = _make_kernel(TB, sub, halves)

    def const_spec(arr):
        # Full-array block, same block every grid step -> stays VMEM-resident
        # (no re-DMA across grid steps).
        return pl.BlockSpec(arr.shape, lambda i: (0, 0))

    in_specs = (
        [pl.BlockSpec((TB, STATE_SIZE), lambda i: (i, 0)), const_spec(small)]
        + [const_spec(w) for w in weights]
    )

    out = pl.pallas_call(
        kernel,
        out_shape=jax.ShapeDtypeStruct((Bp, OUT_PAD), jnp.float32),
        grid_spec=pltpu.PrefetchScalarGridSpec(
            num_scalar_prefetch=0,
            grid=(n_tiles,),
            in_specs=in_specs,
            out_specs=pl.BlockSpec((TB, OUT_PAD), lambda i: (i, 0)),
            scratch_shapes=[pltpu.VMEM((TB, 64), jnp.float32)],  # fc_snn0 out
        ),
        compiler_params=pltpu.CompilerParams(
            dimension_semantics=("parallel",),
            vmem_limit_bytes=32 << 20,   # safe on v7x (64 MiB physical)
        ),
    )(x, small, *weights)

    return out[:B, :NUM_ACTIONS]


# ----------------------------------------------------------------------------
# Pure-JAX reference (same prepared params / same math) for validation
# ----------------------------------------------------------------------------
def reference_forward(x, prepared):
    small, weights = prepared[0], prepared[1:]
    (w_vis, w_attn, w_r1, w_r2, w_r3,
     w_s0, w_s1, w_s2, w_s3, w_out) = weights

    def sp(name):
        off, n = _SMALL_OFFSETS[name]
        return small[:, off:off + n]

    h = _layernorm(x.astype(jnp.float32), sp("ln_in_g"), sp("ln_in_b"))
    v = _layernorm(_leaky_relu(_mm(h, w_vis) + sp("b_vis")),
                   sp("ln_v_g"), sp("ln_v_b"))
    attn = _mm(v, w_attn) + sp("b_attn")
    r1 = _layernorm(_leaky_relu(_mm(attn, w_r1) + sp("b_r1")),
                    sp("ln1_g"), sp("ln1_b")) + attn[:, :256]
    r2 = _layernorm(_leaky_relu(_mm(r1, w_r2) + sp("b_r2")),
                    sp("ln2_g"), sp("ln2_b")) + r1[:, :128]
    r3 = _layernorm(_leaky_relu(_mm(r2, w_r3) + sp("b_r3")),
                    sp("ln3_g"), sp("ln3_b")) + r2[:, :64]
    x0 = _mm(r3, w_s0) + sp("b_s0")

    B = x.shape[0]
    m0 = jnp.zeros((B, 64), jnp.float32)
    m1 = jnp.zeros((B, 64), jnp.float32)
    m2 = jnp.zeros((B, 32), jnp.float32)
    m3 = jnp.zeros((B, 32), jnp.float32)
    acc = jnp.zeros((B, OUT_PAD), jnp.float32)
    for _ in range(TIME_WINDOW):
        s0, m0 = _lif_step(x0, m0, *LIF_PARAMS[0])
        s1, m1 = _lif_step(_mm(s0, w_s1) + sp("b_s1"), m1, *LIF_PARAMS[1])
        s2, m2 = _lif_step(_mm(s1, w_s2) + sp("b_s2"), m2, *LIF_PARAMS[2])
        s3, m3 = _lif_step(_mm(s2, w_s3) + sp("b_s3"), m3, *LIF_PARAMS[3])
        acc = acc + jax.nn.sigmoid(_mm(s3, w_out) + sp("b_out"))
    return (acc * (1.0 / TIME_WINDOW))[:, :NUM_ACTIONS]


if __name__ == "__main__":
    key = jax.random.PRNGKey(0)
    k_x, k_p = jax.random.split(key)
    batch = 2
    x = jax.random.normal(k_x, (batch, STATE_SIZE), jnp.float32)
    params = make_params(k_p)
    prepared = prepare_params(params)

    out = enhanced_snn(x, prepared)
    out = jax.block_until_ready(out)

    assert out.shape == (batch, NUM_ACTIONS), out.shape
    assert bool(jnp.all(jnp.isfinite(out)))
    # outputs are averages of sigmoids -> must lie in [0, 1]
    assert bool(jnp.all(out >= 0.0)) and bool(jnp.all(out <= 1.0))

    # validate against a pure-JAX reference using the same prepared params
    ref = jax.block_until_ready(reference_forward(x, prepared))
    assert bool(jnp.max(jnp.abs(out - ref)) < 1e-2), float(jnp.max(jnp.abs(out - ref)))

    print("KERNEL_OK")
</pallas_src>

<mosaic_0001>
module attributes {stable_mosaic.version = 11 : i64} {
  func.func @kernel(%arg0: i32, %arg1: memref<8x128xf32, #tpu.memory_space<vmem>>, %arg2: memref<1x4480xf32, #tpu.memory_space<vmem>>, %arg3: memref<128x512xbf16, #tpu.memory_space<vmem>>, %arg4: memref<512x512xbf16, #tpu.memory_space<vmem>>, %arg5: memref<512x256xbf16, #tpu.memory_space<vmem>>, %arg6: memref<256x128xbf16, #tpu.memory_space<vmem>>, %arg7: memref<128x64xf32, #tpu.memory_space<vmem>>, %arg8: memref<64x64xf32, #tpu.memory_space<vmem>>, %arg9: memref<64x64xf32, #tpu.memory_space<vmem>>, %arg10: memref<64x32xf32, #tpu.memory_space<vmem>>, %arg11: memref<32x32xf32, #tpu.memory_space<vmem>>, %arg12: memref<32x128xf32, #tpu.memory_space<vmem>>, %arg13: memref<8x128xf32, #tpu.memory_space<vmem>>, %arg14: memref<8x64xf32, #tpu.memory_space<vmem>>) attributes {dimension_semantics = [#tpu.dimension_semantics<parallel>], iteration_bounds = array<i64: 1>, scalar_prefetch = 0 : i64, scratch_operands = 1 : i64, tpu.core_type = #tpu.core_type<tc>, window_params = [{transform_indices = @transform_0, window_bounds = array<i64: 8, 128>}, {pipeline_mode = #tpu.pipeline_mode<synchronous>, transform_indices = @transform_1, window_bounds = array<i64: 1, 4480>}, {pipeline_mode = #tpu.pipeline_mode<synchronous>, transform_indices = @transform_2, window_bounds = array<i64: 128, 512>}, {pipeline_mode = #tpu.pipeline_mode<synchronous>, transform_indices = @transform_3, window_bounds = array<i64: 512, 512>}, {pipeline_mode = #tpu.pipeline_mode<synchronous>, transform_indices = @transform_4, window_bounds = array<i64: 512, 256>}, {pipeline_mode = #tpu.pipeline_mode<synchronous>, transform_indices = @transform_5, window_bounds = array<i64: 256, 128>}, {pipeline_mode = #tpu.pipeline_mode<synchronous>, transform_indices = @transform_6, window_bounds = array<i64: 128, 64>}, {pipeline_mode = #tpu.pipeline_mode<synchronous>, transform_indices = @transform_7, window_bounds = array<i64: 64, 64>}, {pipeline_mode = #tpu.pipeline_mode<synchronous>, transform_indices = @transform_8, window_bounds = array<i64: 64, 64>}, {pipeline_mode = #tpu.pipeline_mode<synchronous>, transform_indices = @transform_9, window_bounds = array<i64: 64, 32>}, {pipeline_mode = #tpu.pipeline_mode<synchronous>, transform_indices = @transform_10, window_bounds = array<i64: 32, 32>}, {pipeline_mode = #tpu.pipeline_mode<synchronous>, transform_indices = @transform_11, window_bounds = array<i64: 32, 128>}, {transform_indices = @transform_12, window_bounds = array<i64: 8, 128>}]} {
    %c0 = arith.constant 0 : index
    %c0_0 = arith.constant 0 : index
    %0 = vector.load %arg1[%c0, %c0_0] : memref<8x128xf32, #tpu.memory_space<vmem>>, vector<8x128xf32>
    %c0_1 = arith.constant 0 : index
    %c0_2 = arith.constant 0 : index
    %1 = vector.load %arg2[%c0_1, %c0_2] : memref<1x4480xf32, #tpu.memory_space<vmem>>, vector<1x128xf32>
    %c0_3 = arith.constant 0 : index
    %c128 = arith.constant 128 : index
    %2 = vector.load %arg2[%c0_3, %c128] : memref<1x4480xf32, #tpu.memory_space<vmem>>, vector<1x128xf32>
    %cst = arith.constant dense<0.000000e+00> : vector<8xf32>
    %3 = vector.multi_reduction <add>, %0, %cst [1] : vector<8x128xf32> to vector<8xf32>
    %4 = vector.shape_cast %3 : vector<8xf32> to vector<8x1xf32>
    %cst_4 = arith.constant 1.280000e+02 : f32
    %5 = vector.broadcast %cst_4 : f32 to vector<8x1xf32>
    %6 = arith.divf %4, %5 : vector<8x1xf32>
    %7 = arith.mulf %0, %0 : vector<8x128xf32>
    %cst_5 = arith.constant dense<0.000000e+00> : vector<8xf32>
    %8 = vector.multi_reduction <add>, %7, %cst_5 [1] : vector<8x128xf32> to vector<8xf32>
    %9 = vector.shape_cast %8 : vector<8xf32> to vector<8x1xf32>
    %cst_6 = arith.constant 1.280000e+02 : f32
    %10 = vector.broadcast %cst_6 : f32 to vector<8x1xf32>
    %11 = arith.divf %9, %10 : vector<8x1xf32>
    %12 = arith.mulf %6, %6 : vector<8x1xf32>
    %13 = arith.subf %11, %12 : vector<8x1xf32>
    %cst_7 = arith.constant 0.000000e+00 : f32
    %14 = vector.broadcast %cst_7 : f32 to vector<8x1xf32>
    %15 = arith.maximumf %13, %14 : vector<8x1xf32>
    %16 = vector.broadcast %6 : vector<8x1xf32> to vector<8x128xf32>
    %17 = arith.subf %0, %16 : vector<8x128xf32>
    %cst_8 = arith.constant 9.99999974E-6 : f32
    %18 = vector.broadcast %cst_8 : f32 to vector<8x1xf32>
    %19 = arith.addf %15, %18 : vector<8x1xf32>
    %20 = math.rsqrt %19 : vector<8x1xf32>
    %21 = vector.broadcast %20 : vector<8x1xf32> to vector<8x128xf32>
    %22 = arith.mulf %17, %21 : vector<8x128xf32>
    %23 = vector.broadcast %1 : vector<1x128xf32> to vector<8x128xf32>
    %24 = arith.mulf %22, %23 : vector<8x128xf32>
    %25 = vector.broadcast %2 : vector<1x128xf32> to vector<8x128xf32>
    %26 = arith.addf %24, %25 : vector<8x128xf32>
    %c0_9 = arith.constant 0 : index
    %c0_10 = arith.constant 0 : index
    %27 = vector.load %arg3[%c0_9, %c0_10] : memref<128x512xbf16, #tpu.memory_space<vmem>>, vector<128x512xbf16>
    %28 = arith.truncf %26 : vector<8x128xf32> to vector<8x128xbf16>
    %cst_11 = arith.constant dense<0.000000e+00> : vector<8x512xf32>
    %29 = tpu.matmul %28, %27, %cst_11 {dimension_numbers = #tpu.dot_dimension_numbers<[1], [0], [0], [1], [0, 0, 1, 1], [], []>} : vector<8x128xbf16>, vector<128x512xbf16>, vector<8x512xf32> -> vector<8x512xf32>
    %c0_12 = arith.constant 0 : index
    %c256 = arith.constant 256 : index
    %30 = vector.load %arg2[%c0_12, %c256] : memref<1x4480xf32, #tpu.memory_space<vmem>>, vector<1x512xf32>
    %31 = vector.broadcast %30 : vector<1x512xf32> to vector<8x512xf32>
    %32 = arith.addf %29, %31 : vector<8x512xf32>
    %cst_13 = arith.constant 1.000000e-01 : f32
    %33 = vector.broadcast %cst_13 : f32 to vector<8x512xf32>
    %34 = arith.mulf %33, %32 : vector<8x512xf32>
    %35 = arith.maximumf %32, %34 : vector<8x512xf32>
    %c0_14 = arith.constant 0 : index
    %c768 = arith.constant 768 : index
    %36 = vector.load %arg2[%c0_14, %c768] : memref<1x4480xf32, #tpu.memory_space<vmem>>, vector<1x512xf32>
    %c0_15 = arith.constant 0 : index
    %c1280 = arith.constant 1280 : index
    %37 = vector.load %arg2[%c0_15, %c1280] : memref<1x4480xf32, #tpu.memory_space<vmem>>, vector<1x512xf32>
    %cst_16 = arith.constant dense<0.000000e+00> : vector<8xf32>
    %38 = vector.multi_reduction <add>, %35, %cst_16 [1] : vector<8x512xf32> to vector<8xf32>
    %39 = vector.shape_cast %38 : vector<8xf32> to vector<8x1xf32>
    %cst_17 = arith.constant 5.120000e+02 : f32
    %40 = vector.broadcast %cst_17 : f32 to vector<8x1xf32>
    %41 = arith.divf %39, %40 : vector<8x1xf32>
    %42 = arith.mulf %35, %35 : vector<8x512xf32>
    %cst_18 = arith.constant dense<0.000000e+00> : vector<8xf32>
    %43 = vector.multi_reduction <add>, %42, %cst_18 [1] : vector<8x512xf32> to vector<8xf32>
    %44 = vector.shape_cast %43 : vector<8xf32> to vector<8x1xf32>
    %cst_19 = arith.constant 5.120000e+02 : f32
    %45 = vector.broadcast %cst_19 : f32 to vector<8x1xf32>
    %46 = arith.divf %44, %45 : vector<8x1xf32>
    %47 = arith.mulf %41, %41 : vector<8x1xf32>
    %48 = arith.subf %46, %47 : vector<8x1xf32>
    %cst_20 = arith.constant 0.000000e+00 : f32
    %49 = vector.broadcast %cst_20 : f32 to vector<8x1xf32>
    %50 = arith.maximumf %48, %49 : vector<8x1xf32>
    %51 = vector.broadcast %41 : vector<8x1xf32> to vector<8x512xf32>
    %52 = arith.subf %35, %51 : vector<8x512xf32>
    %cst_21 = arith.constant 9.99999974E-6 : f32
    %53 = vector.broadcast %cst_21 : f32 to vector<8x1xf32>
    %54 = arith.addf %50, %53 : vector<8x1xf32>
    %55 = math.rsqrt %54 : vector<8x1xf32>
    %56 = vector.broadcast %55 : vector<8x1xf32> to vector<8x512xf32>
    %57 = arith.mulf %52, %56 : vector<8x512xf32>
    %58 = vector.broadcast %36 : vector<1x512xf32> to vector<8x512xf32>
    %59 = arith.mulf %57, %58 : vector<8x512xf32>
    %60 = vector.broadcast %37 : vector<1x512xf32> to vector<8x512xf32>
    %61 = arith.addf %59, %60 : vector<8x512xf32>
    %c0_22 = arith.constant 0 : index
    %c0_23 = arith.constant 0 : index
    %62 = vector.load %arg4[%c0_22, %c0_23] : memref<512x512xbf16, #tpu.memory_space<vmem>>, vector<512x512xbf16>
    %63 = arith.truncf %61 : vector<8x512xf32> to vector<8x512xbf16>
    %cst_24 = arith.constant dense<0.000000e+00> : vector<8x512xf32>
    %64 = tpu.matmul %63, %62, %cst_24 {dimension_numbers = #tpu.dot_dimension_numbers<[1], [0], [0], [1], [0, 0, 1, 1], [], []>} : vector<8x512xbf16>, vector<512x512xbf16>, vector<8x512xf32> -> vector<8x512xf32>
    %c0_25 = arith.constant 0 : index
    %c1792 = arith.constant 1792 : index
    %65 = vector.load %arg2[%c0_25, %c1792] : memref<1x4480xf32, #tpu.memory_space<vmem>>, vector<1x512xf32>
    %66 = vector.broadcast %65 : vector<1x512xf32> to vector<8x512xf32>
    %67 = arith.addf %64, %66 : vector<8x512xf32>
    %c0_26 = arith.constant 0 : index
    %c0_27 = arith.constant 0 : index
    %68 = vector.load %arg5[%c0_26, %c0_27] : memref<512x256xbf16, #tpu.memory_space<vmem>>, vector<512x256xbf16>
    %69 = arith.truncf %67 : vector<8x512xf32> to vector<8x512xbf16>
    %cst_28 = arith.constant dense<0.000000e+00> : vector<8x256xf32>
    %70 = tpu.matmul %69, %68, %cst_28 {dimension_numbers = #tpu.dot_dimension_numbers<[1], [0], [0], [1], [0, 0, 1, 1], [], []>} : vector<8x512xbf16>, vector<512x256xbf16>, vector<8x256xf32> -> vector<8x256xf32>
    %c0_29 = arith.constant 0 : index
    %c2304 = arith.constant 2304 : index
    %71 = vector.load %arg2[%c0_29, %c2304] : memref<1x4480xf32, #tpu.memory_space<vmem>>, vector<1x256xf32>
    %72 = vector.broadcast %71 : vector<1x256xf32> to vector<8x256xf32>
    %73 = arith.addf %70, %72 : vector<8x256xf32>
    %cst_30 = arith.constant 1.000000e-01 : f32
    %74 = vector.broadcast %cst_30 : f32 to vector<8x256xf32>
    %75 = arith.mulf %74, %73 : vector<8x256xf32>
    %76 = arith.maximumf %73, %75 : vector<8x256xf32>
    %c0_31 = arith.constant 0 : index
    %c2560 = arith.constant 2560 : index
    %77 = vector.load %arg2[%c0_31, %c2560] : memref<1x4480xf32, #tpu.memory_space<vmem>>, vector<1x256xf32>
    %c0_32 = arith.constant 0 : index
    %c2816 = arith.constant 2816 : index
    %78 = vector.load %arg2[%c0_32, %c2816] : memref<1x4480xf32, #tpu.memory_space<vmem>>, vector<1x256xf32>
    %cst_33 = arith.constant dense<0.000000e+00> : vector<8xf32>
    %79 = vector.multi_reduction <add>, %76, %cst_33 [1] : vector<8x256xf32> to vector<8xf32>
    %80 = vector.shape_cast %79 : vector<8xf32> to vector<8x1xf32>
    %cst_34 = arith.constant 2.560000e+02 : f32
    %81 = vector.broadcast %cst_34 : f32 to vector<8x1xf32>
    %82 = arith.divf %80, %81 : vector<8x1xf32>
    %83 = arith.mulf %76, %76 : vector<8x256xf32>
    %cst_35 = arith.constant dense<0.000000e+00> : vector<8xf32>
    %84 = vector.multi_reduction <add>, %83, %cst_35 [1] : vector<8x256xf32> to vector<8xf32>
    %85 = vector.shape_cast %84 : vector<8xf32> to vector<8x1xf32>
    %cst_36 = arith.constant 2.560000e+02 : f32
    %86 = vector.broadcast %cst_36 : f32 to vector<8x1xf32>
    %87 = arith.divf %85, %86 : vector<8x1xf32>
    %88 = arith.mulf %82, %82 : vector<8x1xf32>
    %89 = arith.subf %87, %88 : vector<8x1xf32>
    %cst_37 = arith.constant 0.000000e+00 : f32
    %90 = vector.broadcast %cst_37 : f32 to vector<8x1xf32>
    %91 = arith.maximumf %89, %90 : vector<8x1xf32>
    %92 = vector.broadcast %82 : vector<8x1xf32> to vector<8x256xf32>
    %93 = arith.subf %76, %92 : vector<8x256xf32>
    %cst_38 = arith.constant 9.99999974E-6 : f32
    %94 = vector.broadcast %cst_38 : f32 to vector<8x1xf32>
    %95 = arith.addf %91, %94 : vector<8x1xf32>
    %96 = math.rsqrt %95 : vector<8x1xf32>
    %97 = vector.broadcast %96 : vector<8x1xf32> to vector<8x256xf32>
    %98 = arith.mulf %93, %97 : vector<8x256xf32>
    %99 = vector.broadcast %77 : vector<1x256xf32> to vector<8x256xf32>
    %100 = arith.mulf %98, %99 : vector<8x256xf32>
    %101 = vector.broadcast %78 : vector<1x256xf32> to vector<8x256xf32>
    %102 = arith.addf %100, %101 : vector<8x256xf32>
    %103 = vector.extract_strided_slice %67 {offsets = [0, 0], sizes = [8, 256], strides = [1, 1]} : vector<8x512xf32> to vector<8x256xf32>
    %104 = arith.addf %102, %103 : vector<8x256xf32>
    %c0_39 = arith.constant 0 : index
    %c0_40 = arith.constant 0 : index
    %105 = vector.load %arg6[%c0_39, %c0_40] : memref<256x128xbf16, #tpu.memory_space<vmem>>, vector<256x128xbf16>
    %106 = arith.truncf %104 : vector<8x256xf32> to vector<8x256xbf16>
    %cst_41 = arith.constant dense<0.000000e+00> : vector<8x128xf32>
    %107 = tpu.matmul %106, %105, %cst_41 {dimension_numbers = #tpu.dot_dimension_numbers<[1], [0], [0], [1], [0, 0, 1, 1], [], []>} : vector<8x256xbf16>, vector<256x128xbf16>, vector<8x128xf32> -> vector<8x128xf32>
    %c0_42 = arith.constant 0 : index
    %c3072 = arith.constant 3072 : index
    %108 = vector.load %arg2[%c0_42, %c3072] : memref<1x4480xf32, #tpu.memory_space<vmem>>, vector<1x128xf32>
    %109 = vector.broadcast %108 : vector<1x128xf32> to vector<8x128xf32>
    %110 = arith.addf %107, %109 : vector<8x128xf32>
    %cst_43 = arith.constant 1.000000e-01 : f32
    %111 = vector.broadcast %cst_43 : f32 to vector<8x128xf32>
    %112 = arith.mulf %111, %110 : vector<8x128xf32>
    %113 = arith.maximumf %110, %112 : vector<8x128xf32>
    %c0_44 = arith.constant 0 : index
    %c3200 = arith.constant 3200 : index
    %114 = vector.load %arg2[%c0_44, %c3200] : memref<1x4480xf32, #tpu.memory_space<vmem>>, vector<1x128xf32>
    %c0_45 = arith.constant 0 : index
    %c3328 = arith.constant 3328 : index
    %115 = vector.load %arg2[%c0_45, %c3328] : memref<1x4480xf32, #tpu.memory_space<vmem>>, vector<1x128xf32>
    %cst_46 = arith.constant dense<0.000000e+00> : vector<8xf32>
    %116 = vector.multi_reduction <add>, %113, %cst_46 [1] : vector<8x128xf32> to vector<8xf32>
    %117 = vector.shape_cast %116 : vector<8xf32> to vector<8x1xf32>
    %cst_47 = arith.constant 1.280000e+02 : f32
    %118 = vector.broadcast %cst_47 : f32 to vector<8x1xf32>
    %119 = arith.divf %117, %118 : vector<8x1xf32>
    %120 = arith.mulf %113, %113 : vector<8x128xf32>
    %cst_48 = arith.constant dense<0.000000e+00> : vector<8xf32>
    %121 = vector.multi_reduction <add>, %120, %cst_48 [1] : vector<8x128xf32> to vector<8xf32>
    %122 = vector.shape_cast %121 : vector<8xf32> to vector<8x1xf32>
    %cst_49 = arith.constant 1.280000e+02 : f32
    %123 = vector.broadcast %cst_49 : f32 to vector<8x1xf32>
    %124 = arith.divf %122, %123 : vector<8x1xf32>
    %125 = arith.mulf %119, %119 : vector<8x1xf32>
    %126 = arith.subf %124, %125 : vector<8x1xf32>
    %cst_50 = arith.constant 0.000000e+00 : f32
    %127 = vector.broadcast %cst_50 : f32 to vector<8x1xf32>
    %128 = arith.maximumf %126, %127 : vector<8x1xf32>
    %129 = vector.broadcast %119 : vector<8x1xf32> to vector<8x128xf32>
    %130 = arith.subf %113, %129 : vector<8x128xf32>
    %cst_51 = arith.constant 9.99999974E-6 : f32
    %131 = vector.broadcast %cst_51 : f32 to vector<8x1xf32>
    %132 = arith.addf %128, %131 : vector<8x1xf32>
    %133 = math.rsqrt %132 : vector<8x1xf32>
    %134 = vector.broadcast %133 : vector<8x1xf32> to vector<8x128xf32>
    %135 = arith.mulf %130, %134 : vector<8x128xf32>
    %136 = vector.broadcast %114 : vector<1x128xf32> to vector<8x128xf32>
    %137 = arith.mulf %135, %136 : vector<8x128xf32>
    %138 = vector.broadcast %115 : vector<1x128xf32> to vector<8x128xf32>
    %139 = arith.addf %137, %138 : vector<8x128xf32>
    %140 = vector.extract_strided_slice %104 {offsets = [0, 0], sizes = [8, 128], strides = [1, 1]} : vector<8x256xf32> to vector<8x128xf32>
    %141 = arith.addf %139, %140 : vector<8x128xf32>
    %c0_52 = arith.constant 0 : index
    %c0_53 = arith.constant 0 : index
    %142 = vector.load %arg7[%c0_52, %c0_53] : memref<128x64xf32, #tpu.memory_space<vmem>>, vector<128x64xf32>
    %cst_54 = arith.constant dense<0.000000e+00> : vector<8x64xf32>
    %143 = tpu.matmul %141, %142, %cst_54 {dimension_numbers = #tpu.dot_dimension_numbers<[1], [0], [0], [1], [0, 0, 1, 1], [], []>} : vector<8x128xf32>, vector<128x64xf32>, vector<8x64xf32> -> vector<8x64xf32>
    %c0_55 = arith.constant 0 : index
    %c3456 = arith.constant 3456 : index
    %144 = vector.load %arg2[%c0_55, %c3456] : memref<1x4480xf32, #tpu.memory_space<vmem>>, vector<1x64xf32>
    %145 = vector.broadcast %144 : vector<1x64xf32> to vector<8x64xf32>
    %146 = arith.addf %143, %145 : vector<8x64xf32>
    %cst_56 = arith.constant 1.000000e-01 : f32
    %147 = vector.broadcast %cst_56 : f32 to vector<8x64xf32>
    %148 = arith.mulf %147, %146 : vector<8x64xf32>
    %149 = arith.maximumf %146, %148 : vector<8x64xf32>
    %c0_57 = arith.constant 0 : index
    %c3584 = arith.constant 3584 : index
    %150 = vector.load %arg2[%c0_57, %c3584] : memref<1x4480xf32, #tpu.memory_space<vmem>>, vector<1x64xf32>
    %c0_58 = arith.constant 0 : index
    %c3712 = arith.constant 3712 : index
    %151 = vector.load %arg2[%c0_58, %c3712] : memref<1x4480xf32, #tpu.memory_space<vmem>>, vector<1x64xf32>
    %cst_59 = arith.constant dense<0.000000e+00> : vector<8xf32>
    %152 = vector.multi_reduction <add>, %149, %cst_59 [1] : vector<8x64xf32> to vector<8xf32>
    %153 = vector.shape_cast %152 : vector<8xf32> to vector<8x1xf32>
    %cst_60 = arith.constant 6.400000e+01 : f32
    %154 = vector.broadcast %cst_60 : f32 to vector<8x1xf32>
    %155 = arith.divf %153, %154 : vector<8x1xf32>
    %156 = arith.mulf %149, %149 : vector<8x64xf32>
    %cst_61 = arith.constant dense<0.000000e+00> : vector<8xf32>
    %157 = vector.multi_reduction <add>, %156, %cst_61 [1] : vector<8x64xf32> to vector<8xf32>
    %158 = vector.shape_cast %157 : vector<8xf32> to vector<8x1xf32>
    %cst_62 = arith.constant 6.400000e+01 : f32
    %159 = vector.broadcast %cst_62 : f32 to vector<8x1xf32>
    %160 = arith.divf %158, %159 : vector<8x1xf32>
    %161 = arith.mulf %155, %155 : vector<8x1xf32>
    %162 = arith.subf %160, %161 : vector<8x1xf32>
    %cst_63 = arith.constant 0.000000e+00 : f32
    %163 = vector.broadcast %cst_63 : f32 to vector<8x1xf32>
    %164 = arith.maximumf %162, %163 : vector<8x1xf32>
    %165 = vector.broadcast %155 : vector<8x1xf32> to vector<8x64xf32>
    %166 = arith.subf %149, %165 : vector<8x64xf32>
    %cst_64 = arith.constant 9.99999974E-6 : f32
    %167 = vector.broadcast %cst_64 : f32 to vector<8x1xf32>
    %168 = arith.addf %164, %167 : vector<8x1xf32>
    %169 = math.rsqrt %168 : vector<8x1xf32>
    %170 = vector.broadcast %169 : vector<8x1xf32> to vector<8x64xf32>
    %171 = arith.mulf %166, %170 : vector<8x64xf32>
    %172 = vector.broadcast %150 : vector<1x64xf32> to vector<8x64xf32>
    %173 = arith.mulf %171, %172 : vector<8x64xf32>
    %174 = vector.broadcast %151 : vector<1x64xf32> to vector<8x64xf32>
    %175 = arith.addf %173, %174 : vector<8x64xf32>
    %176 = vector.extract_strided_slice %141 {offsets = [0, 0], sizes = [8, 64], strides = [1, 1]} : vector<8x128xf32> to vector<8x64xf32>
    %177 = arith.addf %175, %176 : vector<8x64xf32>
    %c0_65 = arith.constant 0 : index
    %c0_66 = arith.constant 0 : index
    %178 = vector.load %arg8[%c0_65, %c0_66] : memref<64x64xf32, #tpu.memory_space<vmem>>, vector<64x64xf32>
    %cst_67 = arith.constant dense<0.000000e+00> : vector<8x64xf32>
    %179 = tpu.matmul %177, %178, %cst_67 {dimension_numbers = #tpu.dot_dimension_numbers<[1], [0], [0], [1], [0, 0, 1, 1], [], []>} : vector<8x64xf32>, vector<64x64xf32>, vector<8x64xf32> -> vector<8x64xf32>
    %c0_68 = arith.constant 0 : index
    %c3840 = arith.constant 3840 : index
    %180 = vector.load %arg2[%c0_68, %c3840] : memref<1x4480xf32, #tpu.memory_space<vmem>>, vector<1x64xf32>
    %181 = vector.broadcast %180 : vector<1x64xf32> to vector<8x64xf32>
    %182 = arith.addf %179, %181 : vector<8x64xf32>
    %c0_69 = arith.constant 0 : index
    %c0_70 = arith.constant 0 : index
    %183 = vector.load %arg14[%c0_69, %c0_70] : memref<8x64xf32, #tpu.memory_space<vmem>>, vector<8x64xf32>
    tpu.vector_store %arg14[%c0_69, %c0_70], %182 {strides = array<i32>} : memref<8x64xf32, #tpu.memory_space<vmem>>, vector<8x64xf32>,
    %c0_71 = arith.constant 0 : index
    %c3968 = arith.constant 3968 : index
    %184 = vector.load %arg2[%c0_71, %c3968] : memref<1x4480xf32, #tpu.memory_space<vmem>>, vector<1x64xf32>
    %c0_72 = arith.constant 0 : index
    %c4096 = arith.constant 4096 : index
    %185 = vector.load %arg2[%c0_72, %c4096] : memref<1x4480xf32, #tpu.memory_space<vmem>>, vector<1x32xf32>
    %c0_73 = arith.constant 0 : index
    %c4224 = arith.constant 4224 : index
    %186 = vector.load %arg2[%c0_73, %c4224] : memref<1x4480xf32, #tpu.memory_space<vmem>>, vector<1x32xf32>
    %c0_74 = arith.constant 0 : index
    %c4352 = arith.constant 4352 : index
    %187 = vector.load %arg2[%c0_74, %c4352] : memref<1x4480xf32, #tpu.memory_space<vmem>>, vector<1x128xf32>
    %c0_75 = arith.constant 0 : index
    %c0_76 = arith.constant 0 : index
    %188 = vector.load %arg14[%c0_75, %c0_76] : memref<8x64xf32, #tpu.memory_space<vmem>>, vector<8x64xf32>
    %cst_77 = arith.constant 0.000000e+00 : f32
    %189 = vector.broadcast %cst_77 : f32 to vector<8x64xf32>
    %cst_78 = arith.constant 0.000000e+00 : f32
    %190 = vector.broadcast %cst_78 : f32 to vector<8x64xf32>
    %cst_79 = arith.constant 0.000000e+00 : f32
    %191 = vector.broadcast %cst_79 : f32 to vector<8x32xf32>
    %cst_80 = arith.constant 0.000000e+00 : f32
    %192 = vector.broadcast %cst_80 : f32 to vector<8x32xf32>
    %cst_81 = arith.constant 0.000000e+00 : f32
    %193 = vector.broadcast %cst_81 : f32 to vector<8x128xf32>
    %cst_82 = arith.constant 8.000000e-01 : f32
    %194 = vector.broadcast %cst_82 : f32 to vector<8x64xf32>
    %195 = arith.cmpf ogt, %189, %194 : vector<8x64xf32>
    %cst_83 = arith.constant 0.949999988 : f32
    %196 = vector.broadcast %cst_83 : f32 to vector<8x64xf32>
    %197 = arith.mulf %196, %189 : vector<8x64xf32>
    %198 = arith.addf %197, %188 : vector<8x64xf32>
    %cst_84 = arith.constant 0.000000e+00 : f32
    %199 = vector.broadcast %cst_84 : f32 to vector<8x64xf32>
    %200 = arith.select %195, %199, %198 : vector<8x64xi1>, vector<8x64xf32>
    %cst_85 = arith.constant 8.000000e-01 : f32
    %201 = vector.broadcast %cst_85 : f32 to vector<8x64xf32>
    %202 = arith.cmpf ogt, %200, %201 : vector<8x64xf32>
    %203 = arith.extui %202 : vector<8x64xi1> to vector<8x64xi32>
    %204 = arith.sitofp %203 : vector<8x64xi32> to vector<8x64xf32>
    %c0_86 = arith.constant 0 : index
    %c0_87 = arith.constant 0 : index
    %205 = vector.load %arg9[%c0_86, %c0_87] : memref<64x64xf32, #tpu.memory_space<vmem>>, vector<64x64xf32>
    %cst_88 = arith.constant dense<0.000000e+00> : vector<8x64xf32>
    %206 = tpu.matmul %204, %205, %cst_88 {dimension_numbers = #tpu.dot_dimension_numbers<[1], [0], [0], [1], [0, 0, 1, 1], [], []>} : vector<8x64xf32>, vector<64x64xf32>, vector<8x64xf32> -> vector<8x64xf32>
    %207 = vector.broadcast %184 : vector<1x64xf32> to vector<8x64xf32>
    %208 = arith.addf %206, %207 : vector<8x64xf32>
    %cst_89 = arith.constant 8.500000e-01 : f32
    %209 = vector.broadcast %cst_89 : f32 to vector<8x64xf32>
    %210 = arith.cmpf ogt, %190, %209 : vector<8x64xf32>
    %cst_90 = arith.constant 9.200000e-01 : f32
    %211 = vector.broadcast %cst_90 : f32 to vector<8x64xf32>
    %212 = arith.mulf %211, %190 : vector<8x64xf32>
    %213 = arith.addf %212, %208 : vector<8x64xf32>
    %cst_91 = arith.constant 0.000000e+00 : f32
    %214 = vector.broadcast %cst_91 : f32 to vector<8x64xf32>
    %215 = arith.select %210, %214, %213 : vector<8x64xi1>, vector<8x64xf32>
    %cst_92 = arith.constant 8.500000e-01 : f32
    %216 = vector.broadcast %cst_92 : f32 to vector<8x64xf32>
    %217 = arith.cmpf ogt, %215, %216 : vector<8x64xf32>
    %218 = arith.extui %217 : vector<8x64xi1> to vector<8x64xi32>
    %219 = arith.sitofp %218 : vector<8x64xi32> to vector<8x64xf32>
    %c0_93 = arith.constant 0 : index
    %c0_94 = arith.constant 0 : index
    %220 = vector.load %arg10[%c0_93, %c0_94] : memref<64x32xf32, #tpu.memory_space<vmem>>, vector<64x32xf32>
    %cst_95 = arith.constant dense<0.000000e+00> : vector<8x32xf32>
    %221 = tpu.matmul %219, %220, %cst_95 {dimension_numbers = #tpu.dot_dimension_numbers<[1], [0], [0], [1], [0, 0, 1, 1], [], []>} : vector<8x64xf32>, vector<64x32xf32>, vector<8x32xf32> -> vector<8x32xf32>
    %222 = vector.broadcast %185 : vector<1x32xf32> to vector<8x32xf32>
    %223 = arith.addf %221, %222 : vector<8x32xf32>
    %cst_96 = arith.constant 0.899999976 : f32
    %224 = vector.broadcast %cst_96 : f32 to vector<8x32xf32>
    %225 = arith.cmpf ogt, %191, %224 : vector<8x32xf32>
    %cst_97 = arith.constant 0.899999976 : f32
    %226 = vector.broadcast %cst_97 : f32 to vector<8x32xf32>
    %227 = arith.mulf %226, %191 : vector<8x32xf32>
    %228 = arith.addf %227, %223 : vector<8x32xf32>
    %cst_98 = arith.constant 0.000000e+00 : f32
    %229 = vector.broadcast %cst_98 : f32 to vector<8x32xf32>
    %230 = arith.select %225, %229, %228 : vector<8x32xi1>, vector<8x32xf32>
    %cst_99 = arith.constant 0.899999976 : f32
    %231 = vector.broadcast %cst_99 : f32 to vector<8x32xf32>
    %232 = arith.cmpf ogt, %230, %231 : vector<8x32xf32>
    %233 = arith.extui %232 : vector<8x32xi1> to vector<8x32xi32>
    %234 = arith.sitofp %233 : vector<8x32xi32> to vector<8x32xf32>
    %c0_100 = arith.constant 0 : index
    %c0_101 = arith.constant 0 : index
    %235 = vector.load %arg11[%c0_100, %c0_101] : memref<32x32xf32, #tpu.memory_space<vmem>>, vector<32x32xf32>
    %cst_102 = arith.constant dense<0.000000e+00> : vector<8x32xf32>
    %236 = tpu.matmul %234, %235, %cst_102 {dimension_numbers = #tpu.dot_dimension_numbers<[1], [0], [0], [1], [0, 0, 1, 1], [], []>} : vector<8x32xf32>, vector<32x32xf32>, vector<8x32xf32> -> vector<8x32xf32>
    %237 = vector.broadcast %186 : vector<1x32xf32> to vector<8x32xf32>
    %238 = arith.addf %236, %237 : vector<8x32xf32>
    %cst_103 = arith.constant 0.949999988 : f32
    %239 = vector.broadcast %cst_103 : f32 to vector<8x32xf32>
    %240 = arith.cmpf ogt, %192, %239 : vector<8x32xf32>
    %cst_104 = arith.constant 8.500000e-01 : f32
    %241 = vector.broadcast %cst_104 : f32 to vector<8x32xf32>
    %242 = arith.mulf %241, %192 : vector<8x32xf32>
    %243 = arith.addf %242, %238 : vector<8x32xf32>
    %cst_105 = arith.constant 0.000000e+00 : f32
    %244 = vector.broadcast %cst_105 : f32 to vector<8x32xf32>
    %245 = arith.select %240, %244, %243 : vector<8x32xi1>, vector<8x32xf32>
    %cst_106 = arith.constant 0.949999988 : f32
    %246 = vector.broadcast %cst_106 : f32 to vector<8x32xf32>
    %247 = arith.cmpf ogt, %245, %246 : vector<8x32xf32>
    %248 = arith.extui %247 : vector<8x32xi1> to vector<8x32xi32>
    %249 = arith.sitofp %248 : vector<8x32xi32> to vector<8x32xf32>
    %c0_107 = arith.constant 0 : index
    %c0_108 = arith.constant 0 : index
    %250 = vector.load %arg12[%c0_107, %c0_108] : memref<32x128xf32, #tpu.memory_space<vmem>>, vector<32x128xf32>
    %cst_109 = arith.constant dense<0.000000e+00> : vector<8x128xf32>
    %251 = tpu.matmul %249, %250, %cst_109 {dimension_numbers = #tpu.dot_dimension_numbers<[1], [0], [0], [1], [0, 0, 1, 1], [], []>} : vector<8x32xf32>, vector<32x128xf32>, vector<8x128xf32> -> vector<8x128xf32>
    %252 = vector.broadcast %187 : vector<1x128xf32> to vector<8x128xf32>
    %253 = arith.addf %251, %252 : vector<8x128xf32>
    %254 = arith.negf %253 : vector<8x128xf32>
    %255 = math.exp %254 : vector<8x128xf32>
    %cst_110 = arith.constant 1.000000e+00 : f32
    %256 = vector.broadcast %cst_110 : f32 to vector<8x128xf32>
    %257 = arith.addf %256, %255 : vector<8x128xf32>
    %258 = arith.divf %256, %257 : vector<8x128xf32>
    %259 = arith.addf %193, %258 : vector<8x128xf32>
    %cst_111 = arith.constant 8.000000e-01 : f32
    %260 = vector.broadcast %cst_111 : f32 to vector<8x64xf32>
    %261 = arith.cmpf ogt, %200, %260 : vector<8x64xf32>
    %cst_112 = arith.constant 0.949999988 : f32
    %262 = vector.broadcast %cst_112 : f32 to vector<8x64xf32>
    %263 = arith.mulf %262, %200 : vector<8x64xf32>
    %264 = arith.addf %263, %188 : vector<8x64xf32>
    %cst_113 = arith.constant 0.000000e+00 : f32
    %265 = vector.broadcast %cst_113 : f32 to vector<8x64xf32>
    %266 = arith.select %261, %265, %264 : vector<8x64xi1>, vector<8x64xf32>
    %cst_114 = arith.constant 8.000000e-01 : f32
    %267 = vector.broadcast %cst_114 : f32 to vector<8x64xf32>
    %268 = arith.cmpf ogt, %266, %267 : vector<8x64xf32>
    %269 = arith.extui %268 : vector<8x64xi1> to vector<8x64xi32>
    %270 = arith.sitofp %269 : vector<8x64xi32> to vector<8x64xf32>
    %c0_115 = arith.constant 0 : index
    %c0_116 = arith.constant 0 : index
    %271 = vector.load %arg9[%c0_115, %c0_116] : memref<64x64xf32, #tpu.memory_space<vmem>>, vector<64x64xf32>
    %cst_117 = arith.constant dense<0.000000e+00> : vector<8x64xf32>
    %272 = tpu.matmul %270, %271, %cst_117 {dimension_numbers = #tpu.dot_dimension_numbers<[1], [0], [0], [1], [0, 0, 1, 1], [], []>} : vector<8x64xf32>, vector<64x64xf32>, vector<8x64xf32> -> vector<8x64xf32>
    %273 = vector.broadcast %184 : vector<1x64xf32> to vector<8x64xf32>
    %274 = arith.addf %272, %273 : vector<8x64xf32>
    %cst_118 = arith.constant 8.500000e-01 : f32
    %275 = vector.broadcast %cst_118 : f32 to vector<8x64xf32>
    %276 = arith.cmpf ogt, %215, %275 : vector<8x64xf32>
    %cst_119 = arith.constant 9.200000e-01 : f32
    %277 = vector.broadcast %cst_119 : f32 to vector<8x64xf32>
    %278 = arith.mulf %277, %215 : vector<8x64xf32>
    %279 = arith.addf %278, %274 : vector<8x64xf32>
    %cst_120 = arith.constant 0.000000e+00 : f32
    %280 = vector.broadcast %cst_120 : f32 to vector<8x64xf32>
    %281 = arith.select %276, %280, %279 : vector<8x64xi1>, vector<8x64xf32>
    %cst_121 = arith.constant 8.500000e-01 : f32
    %282 = vector.broadcast %cst_121 : f32 to vector<8x64xf32>
    %283 = arith.cmpf ogt, %281, %282 : vector<8x64xf32>
    %284 = arith.extui %283 : vector<8x64xi1> to vector<8x64xi32>
    %285 = arith.sitofp %284 : vector<8x64xi32> to vector<8x64xf32>
    %c0_122 = arith.constant 0 : index
    %c0_123 = arith.constant 0 : index
    %286 = vector.load %arg10[%c0_122, %c0_123] : memref<64x32xf32, #tpu.memory_space<vmem>>, vector<64x32xf32>
    %cst_124 = arith.constant dense<0.000000e+00> : vector<8x32xf32>
    %287 = tpu.matmul %285, %286, %cst_124 {dimension_numbers = #tpu.dot_dimension_numbers<[1], [0], [0], [1], [0, 0, 1, 1], [], []>} : vector<8x64xf32>, vector<64x32xf32>, vector<8x32xf32> -> vector<8x32xf32>
    %288 = vector.broadcast %185 : vector<1x32xf32> to vector<8x32xf32>
    %289 = arith.addf %287, %288 : vector<8x32xf32>
    %cst_125 = arith.constant 0.899999976 : f32
    %290 = vector.broadcast %cst_125 : f32 to vector<8x32xf32>
    %291 = arith.cmpf ogt, %230, %290 : vector<8x32xf32>
    %cst_126 = arith.constant 0.899999976 : f32
    %292 = vector.broadcast %cst_126 : f32 to vector<8x32xf32>
    %293 = arith.mulf %292, %230 : vector<8x32xf32>
    %294 = arith.addf %293, %289 : vector<8x32xf32>
    %cst_127 = arith.constant 0.000000e+00 : f32
    %295 = vector.broadcast %cst_127 : f32 to vector<8x32xf32>
    %296 = arith.select %291, %295, %294 : vector<8x32xi1>, vector<8x32xf32>
    %cst_128 = arith.constant 0.899999976 : f32
    %297 = vector.broadcast %cst_128 : f32 to vector<8x32xf32>
    %298 = arith.cmpf ogt, %296, %297 : vector<8x32xf32>
    %299 = arith.extui %298 : vector<8x32xi1> to vector<8x32xi32>
    %300 = arith.sitofp %299 : vector<8x32xi32> to vector<8x32xf32>
    %c0_129 = arith.constant 0 : index
    %c0_130 = arith.constant 0 : index
    %301 = vector.load %arg11[%c0_129, %c0_130] : memref<32x32xf32, #tpu.memory_space<vmem>>, vector<32x32xf32>
    %cst_131 = arith.constant dense<0.000000e+00> : vector<8x32xf32>
    %302 = tpu.matmul %300, %301, %cst_131 {dimension_numbers = #tpu.dot_dimension_numbers<[1], [0], [0], [1], [0, 0, 1, 1], [], []>} : vector<8x32xf32>, vector<32x32xf32>, vector<8x32xf32> -> vector<8x32xf32>
    %303 = vector.broadcast %186 : vector<1x32xf32> to vector<8x32xf32>
    %304 = arith.addf %302, %303 : vector<8x32xf32>
    %cst_132 = arith.constant 0.949999988 : f32
    %305 = vector.broadcast %cst_132 : f32 to vector<8x32xf32>
    %306 = arith.cmpf ogt, %245, %305 : vector<8x32xf32>
    %cst_133 = arith.constant 8.500000e-01 : f32
    %307 = vector.broadcast %cst_133 : f32 to vector<8x32xf32>
    %308 = arith.mulf %307, %245 : vector<8x32xf32>
    %309 = arith.addf %308, %304 : vector<8x32xf32>
    %cst_134 = arith.constant 0.000000e+00 : f32
    %310 = vector.broadcast %cst_134 : f32 to vector<8x32xf32>
    %311 = arith.select %306, %310, %309 : vector<8x32xi1>, vector<8x32xf32>
    %cst_135 = arith.constant 0.949999988 : f32
    %312 = vector.broadcast %cst_135 : f32 to vector<8x32xf32>
    %313 = arith.cmpf ogt, %311, %312 : vector<8x32xf32>
    %314 = arith.extui %313 : vector<8x32xi1> to vector<8x32xi32>
    %315 = arith.sitofp %314 : vector<8x32xi32> to vector<8x32xf32>
    %c0_136 = arith.constant 0 : index
    %c0_137 = arith.constant 0 : index
    %316 = vector.load %arg12[%c0_136, %c0_137] : memref<32x128xf32, #tpu.memory_space<vmem>>, vector<32x128xf32>
    %cst_138 = arith.constant dense<0.000000e+00> : vector<8x128xf32>
    %317 = tpu.matmul %315, %316, %cst_138 {dimension_numbers = #tpu.dot_dimension_numbers<[1], [0], [0], [1], [0, 0, 1, 1], [], []>} : vector<8x32xf32>, vector<32x128xf32>, vector<8x128xf32> -> vector<8x128xf32>
    %318 = vector.broadcast %187 : vector<1x128xf32> to vector<8x128xf32>
    %319 = arith.addf %317, %318 : vector<8x128xf32>
    %320 = arith.negf %319 : vector<8x128xf32>
    %321 = math.exp %320 : vector<8x128xf32>
    %cst_139 = arith.constant 1.000000e+00 : f32
    %322 = vector.broadcast %cst_139 : f32 to vector<8x128xf32>
    %323 = arith.addf %322, %321 : vector<8x128xf32>
    %324 = arith.divf %322, %323 : vector<8x128xf32>
    %325 = arith.addf %259, %324 : vector<8x128xf32>
    %cst_140 = arith.constant 8.000000e-01 : f32
    %326 = vector.broadcast %cst_140 : f32 to vector<8x64xf32>
    %327 = arith.cmpf ogt, %266, %326 : vector<8x64xf32>
    %cst_141 = arith.constant 0.949999988 : f32
    %328 = vector.broadcast %cst_141 : f32 to vector<8x64xf32>
    %329 = arith.mulf %328, %266 : vector<8x64xf32>
    %330 = arith.addf %329, %188 : vector<8x64xf32>
    %cst_142 = arith.constant 0.000000e+00 : f32
    %331 = vector.broadcast %cst_142 : f32 to vector<8x64xf32>
    %332 = arith.select %327, %331, %330 : vector<8x64xi1>, vector<8x64xf32>
    %cst_143 = arith.constant 8.000000e-01 : f32
    %333 = vector.broadcast %cst_143 : f32 to vector<8x64xf32>
    %334 = arith.cmpf ogt, %332, %333 : vector<8x64xf32>
    %335 = arith.extui %334 : vector<8x64xi1> to vector<8x64xi32>
    %336 = arith.sitofp %335 : vector<8x64xi32> to vector<8x64xf32>
    %c0_144 = arith.constant 0 : index
    %c0_145 = arith.constant 0 : index
    %337 = vector.load %arg9[%c0_144, %c0_145] : memref<64x64xf32, #tpu.memory_space<vmem>>, vector<64x64xf32>
    %cst_146 = arith.constant dense<0.000000e+00> : vector<8x64xf32>
    %338 = tpu.matmul %336, %337, %cst_146 {dimension_numbers = #tpu.dot_dimension_numbers<[1], [0], [0], [1], [0, 0, 1, 1], [], []>} : vector<8x64xf32>, vector<64x64xf32>, vector<8x64xf32> -> vector<8x64xf32>
    %339 = vector.broadcast %184 : vector<1x64xf32> to vector<8x64xf32>
    %340 = arith.addf %338, %339 : vector<8x64xf32>
    %cst_147 = arith.constant 8.500000e-01 : f32
    %341 = vector.broadcast %cst_147 : f32 to vector<8x64xf32>
    %342 = arith.cmpf ogt, %281, %341 : vector<8x64xf32>
    %cst_148 = arith.constant 9.200000e-01 : f32
    %343 = vector.broadcast %cst_148 : f32 to vector<8x64xf32>
    %344 = arith.mulf %343, %281 : vector<8x64xf32>
    %345 = arith.addf %344, %340 : vector<8x64xf32>
    %cst_149 = arith.constant 0.000000e+00 : f32
    %346 = vector.broadcast %cst_149 : f32 to vector<8x64xf32>
    %347 = arith.select %342, %346, %345 : vector<8x64xi1>, vector<8x64xf32>
    %cst_150 = arith.constant 8.500000e-01 : f32
    %348 = vector.broadcast %cst_150 : f32 to vector<8x64xf32>
    %349 = arith.cmpf ogt, %347, %348 : vector<8x64xf32>
    %350 = arith.extui %349 : vector<8x64xi1> to vector<8x64xi32>
    %351 = arith.sitofp %350 : vector<8x64xi32> to vector<8x64xf32>
    %c0_151 = arith.constant 0 : index
    %c0_152 = arith.constant 0 : index
    %352 = vector.load %arg10[%c0_151, %c0_152] : memref<64x32xf32, #tpu.memory_space<vmem>>, vector<64x32xf32>
    %cst_153 = arith.constant dense<0.000000e+00> : vector<8x32xf32>
    %353 = tpu.matmul %351, %352, %cst_153 {dimension_numbers = #tpu.dot_dimension_numbers<[1], [0], [0], [1], [0, 0, 1, 1], [], []>} : vector<8x64xf32>, vector<64x32xf32>, vector<8x32xf32> -> vector<8x32xf32>
    %354 = vector.broadcast %185 : vector<1x32xf32> to vector<8x32xf32>
    %355 = arith.addf %353, %354 : vector<8x32xf32>
    %cst_154 = arith.constant 0.899999976 : f32
    %356 = vector.broadcast %cst_154 : f32 to vector<8x32xf32>
    %357 = arith.cmpf ogt, %296, %356 : vector<8x32xf32>
    %cst_155 = arith.constant 0.899999976 : f32
    %358 = vector.broadcast %cst_155 : f32 to vector<8x32xf32>
    %359 = arith.mulf %358, %296 : vector<8x32xf32>
    %360 = arith.addf %359, %355 : vector<8x32xf32>
    %cst_156 = arith.constant 0.000000e+00 : f32
    %361 = vector.broadcast %cst_156 : f32 to vector<8x32xf32>
    %362 = arith.select %357, %361, %360 : vector<8x32xi1>, vector<8x32xf32>
    %cst_157 = arith.constant 0.899999976 : f32
    %363 = vector.broadcast %cst_157 : f32 to vector<8x32xf32>
    %364 = arith.cmpf ogt, %362, %363 : vector<8x32xf32>
    %365 = arith.extui %364 : vector<8x32xi1> to vector<8x32xi32>
    %366 = arith.sitofp %365 : vector<8x32xi32> to vector<8x32xf32>
    %c0_158 = arith.constant 0 : index
    %c0_159 = arith.constant 0 : index
    %367 = vector.load %arg11[%c0_158, %c0_159] : memref<32x32xf32, #tpu.memory_space<vmem>>, vector<32x32xf32>
    %cst_160 = arith.constant dense<0.000000e+00> : vector<8x32xf32>
    %368 = tpu.matmul %366, %367, %cst_160 {dimension_numbers = #tpu.dot_dimension_numbers<[1], [0], [0], [1], [0, 0, 1, 1], [], []>} : vector<8x32xf32>, vector<32x32xf32>, vector<8x32xf32> -> vector<8x32xf32>
    %369 = vector.broadcast %186 : vector<1x32xf32> to vector<8x32xf32>
    %370 = arith.addf %368, %369 : vector<8x32xf32>
    %cst_161 = arith.constant 0.949999988 : f32
    %371 = vector.broadcast %cst_161 : f32 to vector<8x32xf32>
    %372 = arith.cmpf ogt, %311, %371 : vector<8x32xf32>
    %cst_162 = arith.constant 8.500000e-01 : f32
    %373 = vector.broadcast %cst_162 : f32 to vector<8x32xf32>
    %374 = arith.mulf %373, %311 : vector<8x32xf32>
    %375 = arith.addf %374, %370 : vector<8x32xf32>
    %cst_163 = arith.constant 0.000000e+00 : f32
    %376 = vector.broadcast %cst_163 : f32 to vector<8x32xf32>
    %377 = arith.select %372, %376, %375 : vector<8x32xi1>, vector<8x32xf32>
    %cst_164 = arith.constant 0.949999988 : f32
    %378 = vector.broadcast %cst_164 : f32 to vector<8x32xf32>
    %379 = arith.cmpf ogt, %377, %378 : vector<8x32xf32>
    %380 = arith.extui %379 : vector<8x32xi1> to vector<8x32xi32>
    %381 = arith.sitofp %380 : vector<8x32xi32> to vector<8x32xf32>
    %c0_165 = arith.constant 0 : index
    %c0_166 = arith.constant 0 : index
    %382 = vector.load %arg12[%c0_165, %c0_166] : memref<32x128xf32, #tpu.memory_space<vmem>>, vector<32x128xf32>
    %cst_167 = arith.constant dense<0.000000e+00> : vector<8x128xf32>
    %383 = tpu.matmul %381, %382, %cst_167 {dimension_numbers = #tpu.dot_dimension_numbers<[1], [0], [0], [1], [0, 0, 1, 1], [], []>} : vector<8x32xf32>, vector<32x128xf32>, vector<8x128xf32> -> vector<8x128xf32>
    %384 = vector.broadcast %187 : vector<1x128xf32> to vector<8x128xf32>
    %385 = arith.addf %383, %384 : vector<8x128xf32>
    %386 = arith.negf %385 : vector<8x128xf32>
    %387 = math.exp %386 : vector<8x128xf32>
    %cst_168 = arith.constant 1.000000e+00 : f32
    %388 = vector.broadcast %cst_168 : f32 to vector<8x128xf32>
    %389 = arith.addf %388, %387 : vector<8x128xf32>
    %390 = arith.divf %388, %389 : vector<8x128xf32>
    %391 = arith.addf %325, %390 : vector<8x128xf32>
    %cst_169 = arith.constant 8.000000e-01 : f32
    %392 = vector.broadcast %cst_169 : f32 to vector<8x64xf32>
    %393 = arith.cmpf ogt, %332, %392 : vector<8x64xf32>
    %cst_170 = arith.constant 0.949999988 : f32
    %394 = vector.broadcast %cst_170 : f32 to vector<8x64xf32>
    %395 = arith.mulf %394, %332 : vector<8x64xf32>
    %396 = arith.addf %395, %188 : vector<8x64xf32>
    %cst_171 = arith.constant 0.000000e+00 : f32
    %397 = vector.broadcast %cst_171 : f32 to vector<8x64xf32>
    %398 = arith.select %393, %397, %396 : vector<8x64xi1>, vector<8x64xf32>
    %cst_172 = arith.constant 8.000000e-01 : f32
    %399 = vector.broadcast %cst_172 : f32 to vector<8x64xf32>
    %400 = arith.cmpf ogt, %398, %399 : vector<8x64xf32>
    %401 = arith.extui %400 : vector<8x64xi1> to vector<8x64xi32>
    %402 = arith.sitofp %401 : vector<8x64xi32> to vector<8x64xf32>
    %c0_173 = arith.constant 0 : index
    %c0_174 = arith.constant 0 : index
    %403 = vector.load %arg9[%c0_173, %c0_174] : memref<64x64xf32, #tpu.memory_space<vmem>>, vector<64x64xf32>
    %cst_175 = arith.constant dense<0.000000e+00> : vector<8x64xf32>
    %404 = tpu.matmul %402, %403, %cst_175 {dimension_numbers = #tpu.dot_dimension_numbers<[1], [0], [0], [1], [0, 0, 1, 1], [], []>} : vector<8x64xf32>, vector<64x64xf32>, vector<8x64xf32> -> vector<8x64xf32>
    %405 = vector.broadcast %184 : vector<1x64xf32> to vector<8x64xf32>
    %406 = arith.addf %404, %405 : vector<8x64xf32>
    %cst_176 = arith.constant 8.500000e-01 : f32
    %407 = vector.broadcast %cst_176 : f32 to vector<8x64xf32>
    %408 = arith.cmpf ogt, %347, %407 : vector<8x64xf32>
    %cst_177 = arith.constant 9.200000e-01 : f32
    %409 = vector.broadcast %cst_177 : f32 to vector<8x64xf32>
    %410 = arith.mulf %409, %347 : vector<8x64xf32>
    %411 = arith.addf %410, %406 : vector<8x64xf32>
    %cst_178 = arith.constant 0.000000e+00 : f32
    %412 = vector.broadcast %cst_178 : f32 to vector<8x64xf32>
    %413 = arith.select %408, %412, %411 : vector<8x64xi1>, vector<8x64xf32>
    %cst_179 = arith.constant 8.500000e-01 : f32
    %414 = vector.broadcast %cst_179 : f32 to vector<8x64xf32>
    %415 = arith.cmpf ogt, %413, %414 : vector<8x64xf32>
    %416 = arith.extui %415 : vector<8x64xi1> to vector<8x64xi32>
    %417 = arith.sitofp %416 : vector<8x64xi32> to vector<8x64xf32>
    %c0_180 = arith.constant 0 : index
    %c0_181 = arith.constant 0 : index
    %418 = vector.load %arg10[%c0_180, %c0_181] : memref<64x32xf32, #tpu.memory_space<vmem>>, vector<64x32xf32>
    %cst_182 = arith.constant dense<0.000000e+00> : vector<8x32xf32>
    %419 = tpu.matmul %417, %418, %cst_182 {dimension_numbers = #tpu.dot_dimension_numbers<[1], [0], [0], [1], [0, 0, 1, 1], [], []>} : vector<8x64xf32>, vector<64x32xf32>, vector<8x32xf32> -> vector<8x32xf32>
    %420 = vector.broadcast %185 : vector<1x32xf32> to vector<8x32xf32>
    %421 = arith.addf %419, %420 : vector<8x32xf32>
    %cst_183 = arith.constant 0.899999976 : f32
    %422 = vector.broadcast %cst_183 : f32 to vector<8x32xf32>
    %423 = arith.cmpf ogt, %362, %422 : vector<8x32xf32>
    %cst_184 = arith.constant 0.899999976 : f32
    %424 = vector.broadcast %cst_184 : f32 to vector<8x32xf32>
    %425 = arith.mulf %424, %362 : vector<8x32xf32>
    %426 = arith.addf %425, %421 : vector<8x32xf32>
    %cst_185 = arith.constant 0.000000e+00 : f32
    %427 = vector.broadcast %cst_185 : f32 to vector<8x32xf32>
    %428 = arith.select %423, %427, %426 : vector<8x32xi1>, vector<8x32xf32>
    %cst_186 = arith.constant 0.899999976 : f32
    %429 = vector.broadcast %cst_186 : f32 to vector<8x32xf32>
    %430 = arith.cmpf ogt, %428, %429 : vector<8x32xf32>
    %431 = arith.extui %430 : vector<8x32xi1> to vector<8x32xi32>
    %432 = arith.sitofp %431 : vector<8x32xi32> to vector<8x32xf32>
    %c0_187 = arith.constant 0 : index
    %c0_188 = arith.constant 0 : index
    %433 = vector.load %arg11[%c0_187, %c0_188] : memref<32x32xf32, #tpu.memory_space<vmem>>, vector<32x32xf32>
    %cst_189 = arith.constant dense<0.000000e+00> : vector<8x32xf32>
    %434 = tpu.matmul %432, %433, %cst_189 {dimension_numbers = #tpu.dot_dimension_numbers<[1], [0], [0], [1], [0, 0, 1, 1], [], []>} : vector<8x32xf32>, vector<32x32xf32>, vector<8x32xf32> -> vector<8x32xf32>
    %435 = vector.broadcast %186 : vector<1x32xf32> to vector<8x32xf32>
    %436 = arith.addf %434, %435 : vector<8x32xf32>
    %cst_190 = arith.constant 0.949999988 : f32
    %437 = vector.broadcast %cst_190 : f32 to vector<8x32xf32>
    %438 = arith.cmpf ogt, %377, %437 : vector<8x32xf32>
    %cst_191 = arith.constant 8.500000e-01 : f32
    %439 = vector.broadcast %cst_191 : f32 to vector<8x32xf32>
    %440 = arith.mulf %439, %377 : vector<8x32xf32>
    %441 = arith.addf %440, %436 : vector<8x32xf32>
    %cst_192 = arith.constant 0.000000e+00 : f32
    %442 = vector.broadcast %cst_192 : f32 to vector<8x32xf32>
    %443 = arith.select %438, %442, %441 : vector<8x32xi1>, vector<8x32xf32>
    %cst_193 = arith.constant 0.949999988 : f32
    %444 = vector.broadcast %cst_193 : f32 to vector<8x32xf32>
    %445 = arith.cmpf ogt, %443, %444 : vector<8x32xf32>
    %446 = arith.extui %445 : vector<8x32xi1> to vector<8x32xi32>
    %447 = arith.sitofp %446 : vector<8x32xi32> to vector<8x32xf32>
    %c0_194 = arith.constant 0 : index
    %c0_195 = arith.constant 0 : index
    %448 = vector.load %arg12[%c0_194, %c0_195] : memref<32x128xf32, #tpu.memory_space<vmem>>, vector<32x128xf32>
    %cst_196 = arith.constant dense<0.000000e+00> : vector<8x128xf32>
    %449 = tpu.matmul %447, %448, %cst_196 {dimension_numbers = #tpu.dot_dimension_numbers<[1], [0], [0], [1], [0, 0, 1, 1], [], []>} : vector<8x32xf32>, vector<32x128xf32>, vector<8x128xf32> -> vector<8x128xf32>
    %450 = vector.broadcast %187 : vector<1x128xf32> to vector<8x128xf32>
    %451 = arith.addf %449, %450 : vector<8x128xf32>
    %452 = arith.negf %451 : vector<8x128xf32>
    %453 = math.exp %452 : vector<8x128xf32>
    %cst_197 = arith.constant 1.000000e+00 : f32
    %454 = vector.broadcast %cst_197 : f32 to vector<8x128xf32>
    %455 = arith.addf %454, %453 : vector<8x128xf32>
    %456 = arith.divf %454, %455 : vector<8x128xf32>
    %457 = arith.addf %391, %456 : vector<8x128xf32>
    %cst_198 = arith.constant 8.000000e-01 : f32
    %458 = vector.broadcast %cst_198 : f32 to vector<8x64xf32>
    %459 = arith.cmpf ogt, %398, %458 : vector<8x64xf32>
    %cst_199 = arith.constant 0.949999988 : f32
    %460 = vector.broadcast %cst_199 : f32 to vector<8x64xf32>
    %461 = arith.mulf %460, %398 : vector<8x64xf32>
    %462 = arith.addf %461, %188 : vector<8x64xf32>
    %cst_200 = arith.constant 0.000000e+00 : f32
    %463 = vector.broadcast %cst_200 : f32 to vector<8x64xf32>
    %464 = arith.select %459, %463, %462 : vector<8x64xi1>, vector<8x64xf32>
    %cst_201 = arith.constant 8.000000e-01 : f32
    %465 = vector.broadcast %cst_201 : f32 to vector<8x64xf32>
    %466 = arith.cmpf ogt, %464, %465 : vector<8x64xf32>
    %467 = arith.extui %466 : vector<8x64xi1> to vector<8x64xi32>
    %468 = arith.sitofp %467 : vector<8x64xi32> to vector<8x64xf32>
    %c0_202 = arith.constant 0 : index
    %c0_203 = arith.constant 0 : index
    %469 = vector.load %arg9[%c0_202, %c0_203] : memref<64x64xf32, #tpu.memory_space<vmem>>, vector<64x64xf32>
    %cst_204 = arith.constant dense<0.000000e+00> : vector<8x64xf32>
    %470 = tpu.matmul %468, %469, %cst_204 {dimension_numbers = #tpu.dot_dimension_numbers<[1], [0], [0], [1], [0, 0, 1, 1], [], []>} : vector<8x64xf32>, vector<64x64xf32>, vector<8x64xf32> -> vector<8x64xf32>
    %471 = vector.broadcast %184 : vector<1x64xf32> to vector<8x64xf32>
    %472 = arith.addf %470, %471 : vector<8x64xf32>
    %cst_205 = arith.constant 8.500000e-01 : f32
    %473 = vector.broadcast %cst_205 : f32 to vector<8x64xf32>
    %474 = arith.cmpf ogt, %413, %473 : vector<8x64xf32>
    %cst_206 = arith.constant 9.200000e-01 : f32
    %475 = vector.broadcast %cst_206 : f32 to vector<8x64xf32>
    %476 = arith.mulf %475, %413 : vector<8x64xf32>
    %477 = arith.addf %476, %472 : vector<8x64xf32>
    %cst_207 = arith.constant 0.000000e+00 : f32
    %478 = vector.broadcast %cst_207 : f32 to vector<8x64xf32>
    %479 = arith.select %474, %478, %477 : vector<8x64xi1>, vector<8x64xf32>
    %cst_208 = arith.constant 8.500000e-01 : f32
    %480 = vector.broadcast %cst_208 : f32 to vector<8x64xf32>
    %481 = arith.cmpf ogt, %479, %480 : vector<8x64xf32>
    %482 = arith.extui %481 : vector<8x64xi1> to vector<8x64xi32>
    %483 = arith.sitofp %482 : vector<8x64xi32> to vector<8x64xf32>
    %c0_209 = arith.constant 0 : index
    %c0_210 = arith.constant 0 : index
    %484 = vector.load %arg10[%c0_209, %c0_210] : memref<64x32xf32, #tpu.memory_space<vmem>>, vector<64x32xf32>
    %cst_211 = arith.constant dense<0.000000e+00> : vector<8x32xf32>
    %485 = tpu.matmul %483, %484, %cst_211 {dimension_numbers = #tpu.dot_dimension_numbers<[1], [0], [0], [1], [0, 0, 1, 1], [], []>} : vector<8x64xf32>, vector<64x32xf32>, vector<8x32xf32> -> vector<8x32xf32>
    %486 = vector.broadcast %185 : vector<1x32xf32> to vector<8x32xf32>
    %487 = arith.addf %485, %486 : vector<8x32xf32>
    %cst_212 = arith.constant 0.899999976 : f32
    %488 = vector.broadcast %cst_212 : f32 to vector<8x32xf32>
    %489 = arith.cmpf ogt, %428, %488 : vector<8x32xf32>
    %cst_213 = arith.constant 0.899999976 : f32
    %490 = vector.broadcast %cst_213 : f32 to vector<8x32xf32>
    %491 = arith.mulf %490, %428 : vector<8x32xf32>
    %492 = arith.addf %491, %487 : vector<8x32xf32>
    %cst_214 = arith.constant 0.000000e+00 : f32
    %493 = vector.broadcast %cst_214 : f32 to vector<8x32xf32>
    %494 = arith.select %489, %493, %492 : vector<8x32xi1>, vector<8x32xf32>
    %cst_215 = arith.constant 0.899999976 : f32
    %495 = vector.broadcast %cst_215 : f32 to vector<8x32xf32>
    %496 = arith.cmpf ogt, %494, %495 : vector<8x32xf32>
    %497 = arith.extui %496 : vector<8x32xi1> to vector<8x32xi32>
    %498 = arith.sitofp %497 : vector<8x32xi32> to vector<8x32xf32>
    %c0_216 = arith.constant 0 : index
    %c0_217 = arith.constant 0 : index
    %499 = vector.load %arg11[%c0_216, %c0_217] : memref<32x32xf32, #tpu.memory_space<vmem>>, vector<32x32xf32>
    %cst_218 = arith.constant dense<0.000000e+00> : vector<8x32xf32>
    %500 = tpu.matmul %498, %499, %cst_218 {dimension_numbers = #tpu.dot_dimension_numbers<[1], [0], [0], [1], [0, 0, 1, 1], [], []>} : vector<8x32xf32>, vector<32x32xf32>, vector<8x32xf32> -> vector<8x32xf32>
    %501 = vector.broadcast %186 : vector<1x32xf32> to vector<8x32xf32>
    %502 = arith.addf %500, %501 : vector<8x32xf32>
    %cst_219 = arith.constant 0.949999988 : f32
    %503 = vector.broadcast %cst_219 : f32 to vector<8x32xf32>
    %504 = arith.cmpf ogt, %443, %503 : vector<8x32xf32>
    %cst_220 = arith.constant 8.500000e-01 : f32
    %505 = vector.broadcast %cst_220 : f32 to vector<8x32xf32>
    %506 = arith.mulf %505, %443 : vector<8x32xf32>
    %507 = arith.addf %506, %502 : vector<8x32xf32>
    %cst_221 = arith.constant 0.000000e+00 : f32
    %508 = vector.broadcast %cst_221 : f32 to vector<8x32xf32>
    %509 = arith.select %504, %508, %507 : vector<8x32xi1>, vector<8x32xf32>
    %cst_222 = arith.constant 0.949999988 : f32
    %510 = vector.broadcast %cst_222 : f32 to vector<8x32xf32>
    %511 = arith.cmpf ogt, %509, %510 : vector<8x32xf32>
    %512 = arith.extui %511 : vector<8x32xi1> to vector<8x32xi32>
    %513 = arith.sitofp %512 : vector<8x32xi32> to vector<8x32xf32>
    %c0_223 = arith.constant 0 : index
    %c0_224 = arith.constant 0 : index
    %514 = vector.load %arg12[%c0_223, %c0_224] : memref<32x128xf32, #tpu.memory_space<vmem>>, vector<32x128xf32>
    %cst_225 = arith.constant dense<0.000000e+00> : vector<8x128xf32>
    %515 = tpu.matmul %513, %514, %cst_225 {dimension_numbers = #tpu.dot_dimension_numbers<[1], [0], [0], [1], [0, 0, 1, 1], [], []>} : vector<8x32xf32>, vector<32x128xf32>, vector<8x128xf32> -> vector<8x128xf32>
    %516 = vector.broadcast %187 : vector<1x128xf32> to vector<8x128xf32>
    %517 = arith.addf %515, %516 : vector<8x128xf32>
    %518 = arith.negf %517 : vector<8x128xf32>
    %519 = math.exp %518 : vector<8x128xf32>
    %cst_226 = arith.constant 1.000000e+00 : f32
    %520 = vector.broadcast %cst_226 : f32 to vector<8x128xf32>
    %521 = arith.addf %520, %519 : vector<8x128xf32>
    %522 = arith.divf %520, %521 : vector<8x128xf32>
    %523 = arith.addf %457, %522 : vector<8x128xf32>
    %cst_227 = arith.constant 8.000000e-01 : f32
    %524 = vector.broadcast %cst_227 : f32 to vector<8x64xf32>
    %525 = arith.cmpf ogt, %464, %524 : vector<8x64xf32>
    %cst_228 = arith.constant 0.949999988 : f32
    %526 = vector.broadcast %cst_228 : f32 to vector<8x64xf32>
    %527 = arith.mulf %526, %464 : vector<8x64xf32>
    %528 = arith.addf %527, %188 : vector<8x64xf32>
    %cst_229 = arith.constant 0.000000e+00 : f32
    %529 = vector.broadcast %cst_229 : f32 to vector<8x64xf32>
    %530 = arith.select %525, %529, %528 : vector<8x64xi1>, vector<8x64xf32>
    %cst_230 = arith.constant 8.000000e-01 : f32
    %531 = vector.broadcast %cst_230 : f32 to vector<8x64xf32>
    %532 = arith.cmpf ogt, %530, %531 : vector<8x64xf32>
    %533 = arith.extui %532 : vector<8x64xi1> to vector<8x64xi32>
    %534 = arith.sitofp %533 : vector<8x64xi32> to vector<8x64xf32>
    %c0_231 = arith.constant 0 : index
    %c0_232 = arith.constant 0 : index
    %535 = vector.load %arg9[%c0_231, %c0_232] : memref<64x64xf32, #tpu.memory_space<vmem>>, vector<64x64xf32>
    %cst_233 = arith.constant dense<0.000000e+00> : vector<8x64xf32>
    %536 = tpu.matmul %534, %535, %cst_233 {dimension_numbers = #tpu.dot_dimension_numbers<[1], [0], [0], [1], [0, 0, 1, 1], [], []>} : vector<8x64xf32>, vector<64x64xf32>, vector<8x64xf32> -> vector<8x64xf32>
    %537 = vector.broadcast %184 : vector<1x64xf32> to vector<8x64xf32>
    %538 = arith.addf %536, %537 : vector<8x64xf32>
    %cst_234 = arith.constant 8.500000e-01 : f32
    %539 = vector.broadcast %cst_234 : f32 to vector<8x64xf32>
    %540 = arith.cmpf ogt, %479, %539 : vector<8x64xf32>
    %cst_235 = arith.constant 9.200000e-01 : f32
    %541 = vector.broadcast %cst_235 : f32 to vector<8x64xf32>
    %542 = arith.mulf %541, %479 : vector<8x64xf32>
    %543 = arith.addf %542, %538 : vector<8x64xf32>
    %cst_236 = arith.constant 0.000000e+00 : f32
    %544 = vector.broadcast %cst_236 : f32 to vector<8x64xf32>
    %545 = arith.select %540, %544, %543 : vector<8x64xi1>, vector<8x64xf32>
    %cst_237 = arith.constant 8.500000e-01 : f32
    %546 = vector.broadcast %cst_237 : f32 to vector<8x64xf32>
    %547 = arith.cmpf ogt, %545, %546 : vector<8x64xf32>
    %548 = arith.extui %547 : vector<8x64xi1> to vector<8x64xi32>
    %549 = arith.sitofp %548 : vector<8x64xi32> to vector<8x64xf32>
    %c0_238 = arith.constant 0 : index
    %c0_239 = arith.constant 0 : index
    %550 = vector.load %arg10[%c0_238, %c0_239] : memref<64x32xf32, #tpu.memory_space<vmem>>, vector<64x32xf32>
    %cst_240 = arith.constant dense<0.000000e+00> : vector<8x32xf32>
    %551 = tpu.matmul %549, %550, %cst_240 {dimension_numbers = #tpu.dot_dimension_numbers<[1], [0], [0], [1], [0, 0, 1, 1], [], []>} : vector<8x64xf32>, vector<64x32xf32>, vector<8x32xf32> -> vector<8x32xf32>
    %552 = vector.broadcast %185 : vector<1x32xf32> to vector<8x32xf32>
    %553 = arith.addf %551, %552 : vector<8x32xf32>
    %cst_241 = arith.constant 0.899999976 : f32
    %554 = vector.broadcast %cst_241 : f32 to vector<8x32xf32>
    %555 = arith.cmpf ogt, %494, %554 : vector<8x32xf32>
    %cst_242 = arith.constant 0.899999976 : f32
    %556 = vector.broadcast %cst_242 : f32 to vector<8x32xf32>
    %557 = arith.mulf %556, %494 : vector<8x32xf32>
    %558 = arith.addf %557, %553 : vector<8x32xf32>
    %cst_243 = arith.constant 0.000000e+00 : f32
    %559 = vector.broadcast %cst_243 : f32 to vector<8x32xf32>
    %560 = arith.select %555, %559, %558 : vector<8x32xi1>, vector<8x32xf32>
    %cst_244 = arith.constant 0.899999976 : f32
    %561 = vector.broadcast %cst_244 : f32 to vector<8x32xf32>
    %562 = arith.cmpf ogt, %560, %561 : vector<8x32xf32>
    %563 = arith.extui %562 : vector<8x32xi1> to vector<8x32xi32>
    %564 = arith.sitofp %563 : vector<8x32xi32> to vector<8x32xf32>
    %c0_245 = arith.constant 0 : index
    %c0_246 = arith.constant 0 : index
    %565 = vector.load %arg11[%c0_245, %c0_246] : memref<32x32xf32, #tpu.memory_space<vmem>>, vector<32x32xf32>
    %cst_247 = arith.constant dense<0.000000e+00> : vector<8x32xf32>
    %566 = tpu.matmul %564, %565, %cst_247 {dimension_numbers = #tpu.dot_dimension_numbers<[1], [0], [0], [1], [0, 0, 1, 1], [], []>} : vector<8x32xf32>, vector<32x32xf32>, vector<8x32xf32> -> vector<8x32xf32>
    %567 = vector.broadcast %186 : vector<1x32xf32> to vector<8x32xf32>
    %568 = arith.addf %566, %567 : vector<8x32xf32>
    %cst_248 = arith.constant 0.949999988 : f32
    %569 = vector.broadcast %cst_248 : f32 to vector<8x32xf32>
    %570 = arith.cmpf ogt, %509, %569 : vector<8x32xf32>
    %cst_249 = arith.constant 8.500000e-01 : f32
    %571 = vector.broadcast %cst_249 : f32 to vector<8x32xf32>
    %572 = arith.mulf %571, %509 : vector<8x32xf32>
    %573 = arith.addf %572, %568 : vector<8x32xf32>
    %cst_250 = arith.constant 0.000000e+00 : f32
    %574 = vector.broadcast %cst_250 : f32 to vector<8x32xf32>
    %575 = arith.select %570, %574, %573 : vector<8x32xi1>, vector<8x32xf32>
    %cst_251 = arith.constant 0.949999988 : f32
    %576 = vector.broadcast %cst_251 : f32 to vector<8x32xf32>
    %577 = arith.cmpf ogt, %575, %576 : vector<8x32xf32>
    %578 = arith.extui %577 : vector<8x32xi1> to vector<8x32xi32>
    %579 = arith.sitofp %578 : vector<8x32xi32> to vector<8x32xf32>
    %c0_252 = arith.constant 0 : index
    %c0_253 = arith.constant 0 : index
    %580 = vector.load %arg12[%c0_252, %c0_253] : memref<32x128xf32, #tpu.memory_space<vmem>>, vector<32x128xf32>
    %cst_254 = arith.constant dense<0.000000e+00> : vector<8x128xf32>
    %581 = tpu.matmul %579, %580, %cst_254 {dimension_numbers = #tpu.dot_dimension_numbers<[1], [0], [0], [1], [0, 0, 1, 1], [], []>} : vector<8x32xf32>, vector<32x128xf32>, vector<8x128xf32> -> vector<8x128xf32>
    %582 = vector.broadcast %187 : vector<1x128xf32> to vector<8x128xf32>
    %583 = arith.addf %581, %582 : vector<8x128xf32>
    %584 = arith.negf %583 : vector<8x128xf32>
    %585 = math.exp %584 : vector<8x128xf32>
    %cst_255 = arith.constant 1.000000e+00 : f32
    %586 = vector.broadcast %cst_255 : f32 to vector<8x128xf32>
    %587 = arith.addf %586, %585 : vector<8x128xf32>
    %588 = arith.divf %586, %587 : vector<8x128xf32>
    %589 = arith.addf %523, %588 : vector<8x128xf32>
    %cst_256 = arith.constant 8.000000e-01 : f32
    %590 = vector.broadcast %cst_256 : f32 to vector<8x64xf32>
    %591 = arith.cmpf ogt, %530, %590 : vector<8x64xf32>
    %cst_257 = arith.constant 0.949999988 : f32
    %592 = vector.broadcast %cst_257 : f32 to vector<8x64xf32>
    %593 = arith.mulf %592, %530 : vector<8x64xf32>
    %594 = arith.addf %593, %188 : vector<8x64xf32>
    %cst_258 = arith.constant 0.000000e+00 : f32
    %595 = vector.broadcast %cst_258 : f32 to vector<8x64xf32>
    %596 = arith.select %591, %595, %594 : vector<8x64xi1>, vector<8x64xf32>
    %cst_259 = arith.constant 8.000000e-01 : f32
    %597 = vector.broadcast %cst_259 : f32 to vector<8x64xf32>
    %598 = arith.cmpf ogt, %596, %597 : vector<8x64xf32>
    %599 = arith.extui %598 : vector<8x64xi1> to vector<8x64xi32>
    %600 = arith.sitofp %599 : vector<8x64xi32> to vector<8x64xf32>
    %c0_260 = arith.constant 0 : index
    %c0_261 = arith.constant 0 : index
    %601 = vector.load %arg9[%c0_260, %c0_261] : memref<64x64xf32, #tpu.memory_space<vmem>>, vector<64x64xf32>
    %cst_262 = arith.constant dense<0.000000e+00> : vector<8x64xf32>
    %602 = tpu.matmul %600, %601, %cst_262 {dimension_numbers = #tpu.dot_dimension_numbers<[1], [0], [0], [1], [0, 0, 1, 1], [], []>} : vector<8x64xf32>, vector<64x64xf32>, vector<8x64xf32> -> vector<8x64xf32>
    %603 = vector.broadcast %184 : vector<1x64xf32> to vector<8x64xf32>
    %604 = arith.addf %602, %603 : vector<8x64xf32>
    %cst_263 = arith.constant 8.500000e-01 : f32
    %605 = vector.broadcast %cst_263 : f32 to vector<8x64xf32>
    %606 = arith.cmpf ogt, %545, %605 : vector<8x64xf32>
    %cst_264 = arith.constant 9.200000e-01 : f32
    %607 = vector.broadcast %cst_264 : f32 to vector<8x64xf32>
    %608 = arith.mulf %607, %545 : vector<8x64xf32>
    %609 = arith.addf %608, %604 : vector<8x64xf32>
    %cst_265 = arith.constant 0.000000e+00 : f32
    %610 = vector.broadcast %cst_265 : f32 to vector<8x64xf32>
    %611 = arith.select %606, %610, %609 : vector<8x64xi1>, vector<8x64xf32>
    %cst_266 = arith.constant 8.500000e-01 : f32
    %612 = vector.broadcast %cst_266 : f32 to vector<8x64xf32>
    %613 = arith.cmpf ogt, %611, %612 : vector<8x64xf32>
    %614 = arith.extui %613 : vector<8x64xi1> to vector<8x64xi32>
    %615 = arith.sitofp %614 : vector<8x64xi32> to vector<8x64xf32>
    %c0_267 = arith.constant 0 : index
    %c0_268 = arith.constant 0 : index
    %616 = vector.load %arg10[%c0_267, %c0_268] : memref<64x32xf32, #tpu.memory_space<vmem>>, vector<64x32xf32>
    %cst_269 = arith.constant dense<0.000000e+00> : vector<8x32xf32>
    %617 = tpu.matmul %615, %616, %cst_269 {dimension_numbers = #tpu.dot_dimension_numbers<[1], [0], [0], [1], [0, 0, 1, 1], [], []>} : vector<8x64xf32>, vector<64x32xf32>, vector<8x32xf32> -> vector<8x32xf32>
    %618 = vector.broadcast %185 : vector<1x32xf32> to vector<8x32xf32>
    %619 = arith.addf %617, %618 : vector<8x32xf32>
    %cst_270 = arith.constant 0.899999976 : f32
    %620 = vector.broadcast %cst_270 : f32 to vector<8x32xf32>
    %621 = arith.cmpf ogt, %560, %620 : vector<8x32xf32>
    %cst_271 = arith.constant 0.899999976 : f32
    %622 = vector.broadcast %cst_271 : f32 to vector<8x32xf32>
    %623 = arith.mulf %622, %560 : vector<8x32xf32>
    %624 = arith.addf %623, %619 : vector<8x32xf32>
    %cst_272 = arith.constant 0.000000e+00 : f32
    %625 = vector.broadcast %cst_272 : f32 to vector<8x32xf32>
    %626 = arith.select %621, %625, %624 : vector<8x32xi1>, vector<8x32xf32>
    %cst_273 = arith.constant 0.899999976 : f32
    %627 = vector.broadcast %cst_273 : f32 to vector<8x32xf32>
    %628 = arith.cmpf ogt, %626, %627 : vector<8x32xf32>
    %629 = arith.extui %628 : vector<8x32xi1> to vector<8x32xi32>
    %630 = arith.sitofp %629 : vector<8x32xi32> to vector<8x32xf32>
    %c0_274 = arith.constant 0 : index
    %c0_275 = arith.constant 0 : index
    %631 = vector.load %arg11[%c0_274, %c0_275] : memref<32x32xf32, #tpu.memory_space<vmem>>, vector<32x32xf32>
    %cst_276 = arith.constant dense<0.000000e+00> : vector<8x32xf32>
    %632 = tpu.matmul %630, %631, %cst_276 {dimension_numbers = #tpu.dot_dimension_numbers<[1], [0], [0], [1], [0, 0, 1, 1], [], []>} : vector<8x32xf32>, vector<32x32xf32>, vector<8x32xf32> -> vector<8x32xf32>
    %633 = vector.broadcast %186 : vector<1x32xf32> to vector<8x32xf32>
    %634 = arith.addf %632, %633 : vector<8x32xf32>
    %cst_277 = arith.constant 0.949999988 : f32
    %635 = vector.broadcast %cst_277 : f32 to vector<8x32xf32>
    %636 = arith.cmpf ogt, %575, %635 : vector<8x32xf32>
    %cst_278 = arith.constant 8.500000e-01 : f32
    %637 = vector.broadcast %cst_278 : f32 to vector<8x32xf32>
    %638 = arith.mulf %637, %575 : vector<8x32xf32>
    %639 = arith.addf %638, %634 : vector<8x32xf32>
    %cst_279 = arith.constant 0.000000e+00 : f32
    %640 = vector.broadcast %cst_279 : f32 to vector<8x32xf32>
    %641 = arith.select %636, %640, %639 : vector<8x32xi1>, vector<8x32xf32>
    %cst_280 = arith.constant 0.949999988 : f32
    %642 = vector.broadcast %cst_280 : f32 to vector<8x32xf32>
    %643 = arith.cmpf ogt, %641, %642 : vector<8x32xf32>
    %644 = arith.extui %643 : vector<8x32xi1> to vector<8x32xi32>
    %645 = arith.sitofp %644 : vector<8x32xi32> to vector<8x32xf32>
    %c0_281 = arith.constant 0 : index
    %c0_282 = arith.constant 0 : index
    %646 = vector.load %arg12[%c0_281, %c0_282] : memref<32x128xf32, #tpu.memory_space<vmem>>, vector<32x128xf32>
    %cst_283 = arith.constant dense<0.000000e+00> : vector<8x128xf32>
    %647 = tpu.matmul %645, %646, %cst_283 {dimension_numbers = #tpu.dot_dimension_numbers<[1], [0], [0], [1], [0, 0, 1, 1], [], []>} : vector<8x32xf32>, vector<32x128xf32>, vector<8x128xf32> -> vector<8x128xf32>
    %648 = vector.broadcast %187 : vector<1x128xf32> to vector<8x128xf32>
    %649 = arith.addf %647, %648 : vector<8x128xf32>
    %650 = arith.negf %649 : vector<8x128xf32>
    %651 = math.exp %650 : vector<8x128xf32>
    %cst_284 = arith.constant 1.000000e+00 : f32
    %652 = vector.broadcast %cst_284 : f32 to vector<8x128xf32>
    %653 = arith.addf %652, %651 : vector<8x128xf32>
    %654 = arith.divf %652, %653 : vector<8x128xf32>
    %655 = arith.addf %589, %654 : vector<8x128xf32>
    %cst_285 = arith.constant 8.000000e-01 : f32
    %656 = vector.broadcast %cst_285 : f32 to vector<8x64xf32>
    %657 = arith.cmpf ogt, %596, %656 : vector<8x64xf32>
    %cst_286 = arith.constant 0.949999988 : f32
    %658 = vector.broadcast %cst_286 : f32 to vector<8x64xf32>
    %659 = arith.mulf %658, %596 : vector<8x64xf32>
    %660 = arith.addf %659, %188 : vector<8x64xf32>
    %cst_287 = arith.constant 0.000000e+00 : f32
    %661 = vector.broadcast %cst_287 : f32 to vector<8x64xf32>
    %662 = arith.select %657, %661, %660 : vector<8x64xi1>, vector<8x64xf32>
    %cst_288 = arith.constant 8.000000e-01 : f32
    %663 = vector.broadcast %cst_288 : f32 to vector<8x64xf32>
    %664 = arith.cmpf ogt, %662, %663 : vector<8x64xf32>
    %665 = arith.extui %664 : vector<8x64xi1> to vector<8x64xi32>
    %666 = arith.sitofp %665 : vector<8x64xi32> to vector<8x64xf32>
    %c0_289 = arith.constant 0 : index
    %c0_290 = arith.constant 0 : index
    %667 = vector.load %arg9[%c0_289, %c0_290] : memref<64x64xf32, #tpu.memory_space<vmem>>, vector<64x64xf32>
    %cst_291 = arith.constant dense<0.000000e+00> : vector<8x64xf32>
    %668 = tpu.matmul %666, %667, %cst_291 {dimension_numbers = #tpu.dot_dimension_numbers<[1], [0], [0], [1], [0, 0, 1, 1], [], []>} : vector<8x64xf32>, vector<64x64xf32>, vector<8x64xf32> -> vector<8x64xf32>
    %669 = vector.broadcast %184 : vector<1x64xf32> to vector<8x64xf32>
    %670 = arith.addf %668, %669 : vector<8x64xf32>
    %cst_292 = arith.constant 8.500000e-01 : f32
    %671 = vector.broadcast %cst_292 : f32 to vector<8x64xf32>
    %672 = arith.cmpf ogt, %611, %671 : vector<8x64xf32>
    %cst_293 = arith.constant 9.200000e-01 : f32
    %673 = vector.broadcast %cst_293 : f32 to vector<8x64xf32>
    %674 = arith.mulf %673, %611 : vector<8x64xf32>
    %675 = arith.addf %674, %670 : vector<8x64xf32>
    %cst_294 = arith.constant 0.000000e+00 : f32
    %676 = vector.broadcast %cst_294 : f32 to vector<8x64xf32>
    %677 = arith.select %672, %676, %675 : vector<8x64xi1>, vector<8x64xf32>
    %cst_295 = arith.constant 8.500000e-01 : f32
    %678 = vector.broadcast %cst_295 : f32 to vector<8x64xf32>
    %679 = arith.cmpf ogt, %677, %678 : vector<8x64xf32>
    %680 = arith.extui %679 : vector<8x64xi1> to vector<8x64xi32>
    %681 = arith.sitofp %680 : vector<8x64xi32> to vector<8x64xf32>
    %c0_296 = arith.constant 0 : index
    %c0_297 = arith.constant 0 : index
    %682 = vector.load %arg10[%c0_296, %c0_297] : memref<64x32xf32, #tpu.memory_space<vmem>>, vector<64x32xf32>
    %cst_298 = arith.constant dense<0.000000e+00> : vector<8x32xf32>
    %683 = tpu.matmul %681, %682, %cst_298 {dimension_numbers = #tpu.dot_dimension_numbers<[1], [0], [0], [1], [0, 0, 1, 1], [], []>} : vector<8x64xf32>, vector<64x32xf32>, vector<8x32xf32> -> vector<8x32xf32>
    %684 = vector.broadcast %185 : vector<1x32xf32> to vector<8x32xf32>
    %685 = arith.addf %683, %684 : vector<8x32xf32>
    %cst_299 = arith.constant 0.899999976 : f32
    %686 = vector.broadcast %cst_299 : f32 to vector<8x32xf32>
    %687 = arith.cmpf ogt, %626, %686 : vector<8x32xf32>
    %cst_300 = arith.constant 0.899999976 : f32
    %688 = vector.broadcast %cst_300 : f32 to vector<8x32xf32>
    %689 = arith.mulf %688, %626 : vector<8x32xf32>
    %690 = arith.addf %689, %685 : vector<8x32xf32>
    %cst_301 = arith.constant 0.000000e+00 : f32
    %691 = vector.broadcast %cst_301 : f32 to vector<8x32xf32>
    %692 = arith.select %687, %691, %690 : vector<8x32xi1>, vector<8x32xf32>
    %cst_302 = arith.constant 0.899999976 : f32
    %693 = vector.broadcast %cst_302 : f32 to vector<8x32xf32>
    %694 = arith.cmpf ogt, %692, %693 : vector<8x32xf32>
    %695 = arith.extui %694 : vector<8x32xi1> to vector<8x32xi32>
    %696 = arith.sitofp %695 : vector<8x32xi32> to vector<8x32xf32>
    %c0_303 = arith.constant 0 : index
    %c0_304 = arith.constant 0 : index
    %697 = vector.load %arg11[%c0_303, %c0_304] : memref<32x32xf32, #tpu.memory_space<vmem>>, vector<32x32xf32>
    %cst_305 = arith.constant dense<0.000000e+00> : vector<8x32xf32>
    %698 = tpu.matmul %696, %697, %cst_305 {dimension_numbers = #tpu.dot_dimension_numbers<[1], [0], [0], [1], [0, 0, 1, 1], [], []>} : vector<8x32xf32>, vector<32x32xf32>, vector<8x32xf32> -> vector<8x32xf32>
    %699 = vector.broadcast %186 : vector<1x32xf32> to vector<8x32xf32>
    %700 = arith.addf %698, %699 : vector<8x32xf32>
    %cst_306 = arith.constant 0.949999988 : f32
    %701 = vector.broadcast %cst_306 : f32 to vector<8x32xf32>
    %702 = arith.cmpf ogt, %641, %701 : vector<8x32xf32>
    %cst_307 = arith.constant 8.500000e-01 : f32
    %703 = vector.broadcast %cst_307 : f32 to vector<8x32xf32>
    %704 = arith.mulf %703, %641 : vector<8x32xf32>
    %705 = arith.addf %704, %700 : vector<8x32xf32>
    %cst_308 = arith.constant 0.000000e+00 : f32
    %706 = vector.broadcast %cst_308 : f32 to vector<8x32xf32>
    %707 = arith.select %702, %706, %705 : vector<8x32xi1>, vector<8x32xf32>
    %cst_309 = arith.constant 0.949999988 : f32
    %708 = vector.broadcast %cst_309 : f32 to vector<8x32xf32>
    %709 = arith.cmpf ogt, %707, %708 : vector<8x32xf32>
    %710 = arith.extui %709 : vector<8x32xi1> to vector<8x32xi32>
    %711 = arith.sitofp %710 : vector<8x32xi32> to vector<8x32xf32>
    %c0_310 = arith.constant 0 : index
    %c0_311 = arith.constant 0 : index
    %712 = vector.load %arg12[%c0_310, %c0_311] : memref<32x128xf32, #tpu.memory_space<vmem>>, vector<32x128xf32>
    %cst_312 = arith.constant dense<0.000000e+00> : vector<8x128xf32>
    %713 = tpu.matmul %711, %712, %cst_312 {dimension_numbers = #tpu.dot_dimension_numbers<[1], [0], [0], [1], [0, 0, 1, 1], [], []>} : vector<8x32xf32>, vector<32x128xf32>, vector<8x128xf32> -> vector<8x128xf32>
    %714 = vector.broadcast %187 : vector<1x128xf32> to vector<8x128xf32>
    %715 = arith.addf %713, %714 : vector<8x128xf32>
    %716 = arith.negf %715 : vector<8x128xf32>
    %717 = math.exp %716 : vector<8x128xf32>
    %cst_313 = arith.constant 1.000000e+00 : f32
    %718 = vector.broadcast %cst_313 : f32 to vector<8x128xf32>
    %719 = arith.addf %718, %717 : vector<8x128xf32>
    %720 = arith.divf %718, %719 : vector<8x128xf32>
    %721 = arith.addf %655, %720 : vector<8x128xf32>
    %cst_314 = arith.constant 8.000000e-01 : f32
    %722 = vector.broadcast %cst_314 : f32 to vector<8x64xf32>
    %723 = arith.cmpf ogt, %662, %722 : vector<8x64xf32>
    %cst_315 = arith.constant 0.949999988 : f32
    %724 = vector.broadcast %cst_315 : f32 to vector<8x64xf32>
    %725 = arith.mulf %724, %662 : vector<8x64xf32>
    %726 = arith.addf %725, %188 : vector<8x64xf32>
    %cst_316 = arith.constant 0.000000e+00 : f32
    %727 = vector.broadcast %cst_316 : f32 to vector<8x64xf32>
    %728 = arith.select %723, %727, %726 : vector<8x64xi1>, vector<8x64xf32>
    %cst_317 = arith.constant 8.000000e-01 : f32
    %729 = vector.broadcast %cst_317 : f32 to vector<8x64xf32>
    %730 = arith.cmpf ogt, %728, %729 : vector<8x64xf32>
    %731 = arith.extui %730 : vector<8x64xi1> to vector<8x64xi32>
    %732 = arith.sitofp %731 : vector<8x64xi32> to vector<8x64xf32>
    %c0_318 = arith.constant 0 : index
    %c0_319 = arith.constant 0 : index
    %733 = vector.load %arg9[%c0_318, %c0_319] : memref<64x64xf32, #tpu.memory_space<vmem>>, vector<64x64xf32>
    %cst_320 = arith.constant dense<0.000000e+00> : vector<8x64xf32>
    %734 = tpu.matmul %732, %733, %cst_320 {dimension_numbers = #tpu.dot_dimension_numbers<[1], [0], [0], [1], [0, 0, 1, 1], [], []>} : vector<8x64xf32>, vector<64x64xf32>, vector<8x64xf32> -> vector<8x64xf32>
    %735 = vector.broadcast %184 : vector<1x64xf32> to vector<8x64xf32>
    %736 = arith.addf %734, %735 : vector<8x64xf32>
    %cst_321 = arith.constant 8.500000e-01 : f32
    %737 = vector.broadcast %cst_321 : f32 to vector<8x64xf32>
    %738 = arith.cmpf ogt, %677, %737 : vector<8x64xf32>
    %cst_322 = arith.constant 9.200000e-01 : f32
    %739 = vector.broadcast %cst_322 : f32 to vector<8x64xf32>
    %740 = arith.mulf %739, %677 : vector<8x64xf32>
    %741 = arith.addf %740, %736 : vector<8x64xf32>
    %cst_323 = arith.constant 0.000000e+00 : f32
    %742 = vector.broadcast %cst_323 : f32 to vector<8x64xf32>
    %743 = arith.select %738, %742, %741 : vector<8x64xi1>, vector<8x64xf32>
    %cst_324 = arith.constant 8.500000e-01 : f32
    %744 = vector.broadcast %cst_324 : f32 to vector<8x64xf32>
    %745 = arith.cmpf ogt, %743, %744 : vector<8x64xf32>
    %746 = arith.extui %745 : vector<8x64xi1> to vector<8x64xi32>
    %747 = arith.sitofp %746 : vector<8x64xi32> to vector<8x64xf32>
    %c0_325 = arith.constant 0 : index
    %c0_326 = arith.constant 0 : index
    %748 = vector.load %arg10[%c0_325, %c0_326] : memref<64x32xf32, #tpu.memory_space<vmem>>, vector<64x32xf32>
    %cst_327 = arith.constant dense<0.000000e+00> : vector<8x32xf32>
    %749 = tpu.matmul %747, %748, %cst_327 {dimension_numbers = #tpu.dot_dimension_numbers<[1], [0], [0], [1], [0, 0, 1, 1], [], []>} : vector<8x64xf32>, vector<64x32xf32>, vector<8x32xf32> -> vector<8x32xf32>
    %750 = vector.broadcast %185 : vector<1x32xf32> to vector<8x32xf32>
    %751 = arith.addf %749, %750 : vector<8x32xf32>
    %cst_328 = arith.constant 0.899999976 : f32
    %752 = vector.broadcast %cst_328 : f32 to vector<8x32xf32>
    %753 = arith.cmpf ogt, %692, %752 : vector<8x32xf32>
    %cst_329 = arith.constant 0.899999976 : f32
    %754 = vector.broadcast %cst_329 : f32 to vector<8x32xf32>
    %755 = arith.mulf %754, %692 : vector<8x32xf32>
    %756 = arith.addf %755, %751 : vector<8x32xf32>
    %cst_330 = arith.constant 0.000000e+00 : f32
    %757 = vector.broadcast %cst_330 : f32 to vector<8x32xf32>
    %758 = arith.select %753, %757, %756 : vector<8x32xi1>, vector<8x32xf32>
    %cst_331 = arith.constant 0.899999976 : f32
    %759 = vector.broadcast %cst_331 : f32 to vector<8x32xf32>
    %760 = arith.cmpf ogt, %758, %759 : vector<8x32xf32>
    %761 = arith.extui %760 : vector<8x32xi1> to vector<8x32xi32>
    %762 = arith.sitofp %761 : vector<8x32xi32> to vector<8x32xf32>
    %c0_332 = arith.constant 0 : index
    %c0_333 = arith.constant 0 : index
    %763 = vector.load %arg11[%c0_332, %c0_333] : memref<32x32xf32, #tpu.memory_space<vmem>>, vector<32x32xf32>
    %cst_334 = arith.constant dense<0.000000e+00> : vector<8x32xf32>
    %764 = tpu.matmul %762, %763, %cst_334 {dimension_numbers = #tpu.dot_dimension_numbers<[1], [0], [0], [1], [0, 0, 1, 1], [], []>} : vector<8x32xf32>, vector<32x32xf32>, vector<8x32xf32> -> vector<8x32xf32>
    %765 = vector.broadcast %186 : vector<1x32xf32> to vector<8x32xf32>
    %766 = arith.addf %764, %765 : vector<8x32xf32>
    %cst_335 = arith.constant 0.949999988 : f32
    %767 = vector.broadcast %cst_335 : f32 to vector<8x32xf32>
    %768 = arith.cmpf ogt, %707, %767 : vector<8x32xf32>
    %cst_336 = arith.constant 8.500000e-01 : f32
    %769 = vector.broadcast %cst_336 : f32 to vector<8x32xf32>
    %770 = arith.mulf %769, %707 : vector<8x32xf32>
    %771 = arith.addf %770, %766 : vector<8x32xf32>
    %cst_337 = arith.constant 0.000000e+00 : f32
    %772 = vector.broadcast %cst_337 : f32 to vector<8x32xf32>
    %773 = arith.select %768, %772, %771 : vector<8x32xi1>, vector<8x32xf32>
    %cst_338 = arith.constant 0.949999988 : f32
    %774 = vector.broadcast %cst_338 : f32 to vector<8x32xf32>
    %775 = arith.cmpf ogt, %773, %774 : vector<8x32xf32>
    %776 = arith.extui %775 : vector<8x32xi1> to vector<8x32xi32>
    %777 = arith.sitofp %776 : vector<8x32xi32> to vector<8x32xf32>
    %c0_339 = arith.constant 0 : index
    %c0_340 = arith.constant 0 : index
    %778 = vector.load %arg12[%c0_339, %c0_340] : memref<32x128xf32, #tpu.memory_space<vmem>>, vector<32x128xf32>
    %cst_341 = arith.constant dense<0.000000e+00> : vector<8x128xf32>
    %779 = tpu.matmul %777, %778, %cst_341 {dimension_numbers = #tpu.dot_dimension_numbers<[1], [0], [0], [1], [0, 0, 1, 1], [], []>} : vector<8x32xf32>, vector<32x128xf32>, vector<8x128xf32> -> vector<8x128xf32>
    %780 = vector.broadcast %187 : vector<1x128xf32> to vector<8x128xf32>
    %781 = arith.addf %779, %780 : vector<8x128xf32>
    %782 = arith.negf %781 : vector<8x128xf32>
    %783 = math.exp %782 : vector<8x128xf32>
    %cst_342 = arith.constant 1.000000e+00 : f32
    %784 = vector.broadcast %cst_342 : f32 to vector<8x128xf32>
    %785 = arith.addf %784, %783 : vector<8x128xf32>
    %786 = arith.divf %784, %785 : vector<8x128xf32>
    %787 = arith.addf %721, %786 : vector<8x128xf32>
    %cst_343 = arith.constant 8.000000e-01 : f32
    %788 = vector.broadcast %cst_343 : f32 to vector<8x64xf32>
    %789 = arith.cmpf ogt, %728, %788 : vector<8x64xf32>
    %cst_344 = arith.constant 0.949999988 : f32
    %790 = vector.broadcast %cst_344 : f32 to vector<8x64xf32>
    %791 = arith.mulf %790, %728 : vector<8x64xf32>
    %792 = arith.addf %791, %188 : vector<8x64xf32>
    %cst_345 = arith.constant 0.000000e+00 : f32
    %793 = vector.broadcast %cst_345 : f32 to vector<8x64xf32>
    %794 = arith.select %789, %793, %792 : vector<8x64xi1>, vector<8x64xf32>
    %cst_346 = arith.constant 8.000000e-01 : f32
    %795 = vector.broadcast %cst_346 : f32 to vector<8x64xf32>
    %796 = arith.cmpf ogt, %794, %795 : vector<8x64xf32>
    %797 = arith.extui %796 : vector<8x64xi1> to vector<8x64xi32>
    %798 = arith.sitofp %797 : vector<8x64xi32> to vector<8x64xf32>
    %c0_347 = arith.constant 0 : index
    %c0_348 = arith.constant 0 : index
    %799 = vector.load %arg9[%c0_347, %c0_348] : memref<64x64xf32, #tpu.memory_space<vmem>>, vector<64x64xf32>
    %cst_349 = arith.constant dense<0.000000e+00> : vector<8x64xf32>
    %800 = tpu.matmul %798, %799, %cst_349 {dimension_numbers = #tpu.dot_dimension_numbers<[1], [0], [0], [1], [0, 0, 1, 1], [], []>} : vector<8x64xf32>, vector<64x64xf32>, vector<8x64xf32> -> vector<8x64xf32>
    %801 = vector.broadcast %184 : vector<1x64xf32> to vector<8x64xf32>
    %802 = arith.addf %800, %801 : vector<8x64xf32>
    %cst_350 = arith.constant 8.500000e-01 : f32
    %803 = vector.broadcast %cst_350 : f32 to vector<8x64xf32>
    %804 = arith.cmpf ogt, %743, %803 : vector<8x64xf32>
    %cst_351 = arith.constant 9.200000e-01 : f32
    %805 = vector.broadcast %cst_351 : f32 to vector<8x64xf32>
    %806 = arith.mulf %805, %743 : vector<8x64xf32>
    %807 = arith.addf %806, %802 : vector<8x64xf32>
    %cst_352 = arith.constant 0.000000e+00 : f32
    %808 = vector.broadcast %cst_352 : f32 to vector<8x64xf32>
    %809 = arith.select %804, %808, %807 : vector<8x64xi1>, vector<8x64xf32>
    %cst_353 = arith.constant 8.500000e-01 : f32
    %810 = vector.broadcast %cst_353 : f32 to vector<8x64xf32>
    %811 = arith.cmpf ogt, %809, %810 : vector<8x64xf32>
    %812 = arith.extui %811 : vector<8x64xi1> to vector<8x64xi32>
    %813 = arith.sitofp %812 : vector<8x64xi32> to vector<8x64xf32>
    %c0_354 = arith.constant 0 : index
    %c0_355 = arith.constant 0 : index
    %814 = vector.load %arg10[%c0_354, %c0_355] : memref<64x32xf32, #tpu.memory_space<vmem>>, vector<64x32xf32>
    %cst_356 = arith.constant dense<0.000000e+00> : vector<8x32xf32>
    %815 = tpu.matmul %813, %814, %cst_356 {dimension_numbers = #tpu.dot_dimension_numbers<[1], [0], [0], [1], [0, 0, 1, 1], [], []>} : vector<8x64xf32>, vector<64x32xf32>, vector<8x32xf32> -> vector<8x32xf32>
    %816 = vector.broadcast %185 : vector<1x32xf32> to vector<8x32xf32>
    %817 = arith.addf %815, %816 : vector<8x32xf32>
    %cst_357 = arith.constant 0.899999976 : f32
    %818 = vector.broadcast %cst_357 : f32 to vector<8x32xf32>
    %819 = arith.cmpf ogt, %758, %818 : vector<8x32xf32>
    %cst_358 = arith.constant 0.899999976 : f32
    %820 = vector.broadcast %cst_358 : f32 to vector<8x32xf32>
    %821 = arith.mulf %820, %758 : vector<8x32xf32>
    %822 = arith.addf %821, %817 : vector<8x32xf32>
    %cst_359 = arith.constant 0.000000e+00 : f32
    %823 = vector.broadcast %cst_359 : f32 to vector<8x32xf32>
    %824 = arith.select %819, %823, %822 : vector<8x32xi1>, vector<8x32xf32>
    %cst_360 = arith.constant 0.899999976 : f32
    %825 = vector.broadcast %cst_360 : f32 to vector<8x32xf32>
    %826 = arith.cmpf ogt, %824, %825 : vector<8x32xf32>
    %827 = arith.extui %826 : vector<8x32xi1> to vector<8x32xi32>
    %828 = arith.sitofp %827 : vector<8x32xi32> to vector<8x32xf32>
    %c0_361 = arith.constant 0 : index
    %c0_362 = arith.constant 0 : index
    %829 = vector.load %arg11[%c0_361, %c0_362] : memref<32x32xf32, #tpu.memory_space<vmem>>, vector<32x32xf32>
    %cst_363 = arith.constant dense<0.000000e+00> : vector<8x32xf32>
    %830 = tpu.matmul %828, %829, %cst_363 {dimension_numbers = #tpu.dot_dimension_numbers<[1], [0], [0], [1], [0, 0, 1, 1], [], []>} : vector<8x32xf32>, vector<32x32xf32>, vector<8x32xf32> -> vector<8x32xf32>
    %831 = vector.broadcast %186 : vector<1x32xf32> to vector<8x32xf32>
    %832 = arith.addf %830, %831 : vector<8x32xf32>
    %cst_364 = arith.constant 0.949999988 : f32
    %833 = vector.broadcast %cst_364 : f32 to vector<8x32xf32>
    %834 = arith.cmpf ogt, %773, %833 : vector<8x32xf32>
    %cst_365 = arith.constant 8.500000e-01 : f32
    %835 = vector.broadcast %cst_365 : f32 to vector<8x32xf32>
    %836 = arith.mulf %835, %773 : vector<8x32xf32>
    %837 = arith.addf %836, %832 : vector<8x32xf32>
    %cst_366 = arith.constant 0.000000e+00 : f32
    %838 = vector.broadcast %cst_366 : f32 to vector<8x32xf32>
    %839 = arith.select %834, %838, %837 : vector<8x32xi1>, vector<8x32xf32>
    %cst_367 = arith.constant 0.949999988 : f32
    %840 = vector.broadcast %cst_367 : f32 to vector<8x32xf32>
    %841 = arith.cmpf ogt, %839, %840 : vector<8x32xf32>
    %842 = arith.extui %841 : vector<8x32xi1> to vector<8x32xi32>
    %843 = arith.sitofp %842 : vector<8x32xi32> to vector<8x32xf32>
    %c0_368 = arith.constant 0 : index
    %c0_369 = arith.constant 0 : index
    %844 = vector.load %arg12[%c0_368, %c0_369] : memref<32x128xf32, #tpu.memory_space<vmem>>, vector<32x128xf32>
    %cst_370 = arith.constant dense<0.000000e+00> : vector<8x128xf32>
    %845 = tpu.matmul %843, %844, %cst_370 {dimension_numbers = #tpu.dot_dimension_numbers<[1], [0], [0], [1], [0, 0, 1, 1], [], []>} : vector<8x32xf32>, vector<32x128xf32>, vector<8x128xf32> -> vector<8x128xf32>
    %846 = vector.broadcast %187 : vector<1x128xf32> to vector<8x128xf32>
    %847 = arith.addf %845, %846 : vector<8x128xf32>
    %848 = arith.negf %847 : vector<8x128xf32>
    %849 = math.exp %848 : vector<8x128xf32>
    %cst_371 = arith.constant 1.000000e+00 : f32
    %850 = vector.broadcast %cst_371 : f32 to vector<8x128xf32>
    %851 = arith.addf %850, %849 : vector<8x128xf32>
    %852 = arith.divf %850, %851 : vector<8x128xf32>
    %853 = arith.addf %787, %852 : vector<8x128xf32>
    %cst_372 = arith.constant 1.000000e-01 : f32
    %854 = vector.broadcast %cst_372 : f32 to vector<8x128xf32>
    %855 = arith.mulf %853, %854 : vector<8x128xf32>
    %c0_373 = arith.constant 0 : index
    %c0_374 = arith.constant 0 : index
    %856 = vector.load %arg13[%c0_373, %c0_374] : memref<8x128xf32, #tpu.memory_space<vmem>>, vector<8x128xf32>
    tpu.vector_store %arg13[%c0_373, %c0_374], %855 {strides = array<i32>} : memref<8x128xf32, #tpu.memory_space<vmem>>, vector<8x128xf32>,
    return
  }
  func.func @transform_0(%arg0: i32) -> (i32, i32) {
    %c0_i32 = arith.constant 0 : i32
    %c0_i32_0 = arith.constant 0 : i32
    return %arg0, %c0_i32 : i32, i32
  }
  func.func @transform_1(%arg0: i32) -> (i32, i32) {
    %c0_i32 = arith.constant 0 : i32
    %c0_i32_0 = arith.constant 0 : i32
    %c0_i32_1 = arith.constant 0 : i32
    return %c0_i32, %c0_i32_0 : i32, i32
  }
  func.func @transform_2(%arg0: i32) -> (i32, i32) {
    %c0_i32 = arith.constant 0 : i32
    %c0_i32_0 = arith.constant 0 : i32
    %c0_i32_1 = arith.constant 0 : i32
    return %c0_i32, %c0_i32_0 : i32, i32
  }
  func.func @transform_3(%arg0: i32) -> (i32, i32) {
    %c0_i32 = arith.constant 0 : i32
    %c0_i32_0 = arith.constant 0 : i32
    %c0_i32_1 = arith.constant 0 : i32
    return %c0_i32, %c0_i32_0 : i32, i32
  }
  func.func @transform_4(%arg0: i32) -> (i32, i32) {
    %c0_i32 = arith.constant 0 : i32
    %c0_i32_0 = arith.constant 0 : i32
    %c0_i32_1 = arith.constant 0 : i32
    return %c0_i32, %c0_i32_0 : i32, i32
  }
  func.func @transform_5(%arg0: i32) -> (i32, i32) {
    %c0_i32 = arith.constant 0 : i32
    %c0_i32_0 = arith.constant 0 : i32
    %c0_i32_1 = arith.constant 0 : i32
    return %c0_i32, %c0_i32_0 : i32, i32
  }
  func.func @transform_6(%arg0: i32) -> (i32, i32) {
    %c0_i32 = arith.constant 0 : i32
    %c0_i32_0 = arith.constant 0 : i32
    %c0_i32_1 = arith.constant 0 : i32
    return %c0_i32, %c0_i32_0 : i32, i32
  }
  func.func @transform_7(%arg0: i32) -> (i32, i32) {
    %c0_i32 = arith.constant 0 : i32
    %c0_i32_0 = arith.constant 0 : i32
    %c0_i32_1 = arith.constant 0 : i32
    return %c0_i32, %c0_i32_0 : i32, i32
  }
  func.func @transform_8(%arg0: i32) -> (i32, i32) {
    %c0_i32 = arith.constant 0 : i32
    %c0_i32_0 = arith.constant 0 : i32
    %c0_i32_1 = arith.constant 0 : i32
    return %c0_i32, %c0_i32_0 : i32, i32
  }
  func.func @transform_9(%arg0: i32) -> (i32, i32) {
    %c0_i32 = arith.constant 0 : i32
    %c0_i32_0 = arith.constant 0 : i32
    %c0_i32_1 = arith.constant 0 : i32
    return %c0_i32, %c0_i32_0 : i32, i32
  }
  func.func @transform_10(%arg0: i32) -> (i32, i32) {
    %c0_i32 = arith.constant 0 : i32
    %c0_i32_0 = arith.constant 0 : i32
    %c0_i32_1 = arith.constant 0 : i32
    return %c0_i32, %c0_i32_0 : i32, i32
  }
  func.func @transform_11(%arg0: i32) -> (i32, i32) {
    %c0_i32 = arith.constant 0 : i32
    %c0_i32_0 = arith.constant 0 : i32
    %c0_i32_1 = arith.constant 0 : i32
    return %c0_i32, %c0_i32_0 : i32, i32
  }
  func.func @transform_12(%arg0: i32) -> (i32, i32) {
    %c0_i32 = arith.constant 0 : i32
    %c0_i32_0 = arith.constant 0 : i32
    return %arg0, %c0_i32 : i32, i32
  }
}

</mosaic_0001>

<llo_original>
// kernel: enhanced_snn.1
$region0: #{enhanced_snn.1}
  #allocation0 [shape = 'u32[]', space=smem, size = 0x4, offset = 0x4, fixed_abs, tag = 'smem constant byte address 0x4 - core index']
  #allocation1 [shape = 'u32[72,128]{1,0:T(1,128)}', space=vmem, size = 0x9000, scoped, tag = 'internal scratch']
  #allocation2 [shape = 'f32[8,64]{1,0:T(8,128)}', space=vmem, size = 0x1000, scoped, tag = 'scratch operand']
  %s0 = inlined_call_operand.vmem [shape: f32[8,128], index: 0, kind: input, shape index: {}]
  %s1 = inlined_call_operand.vmem [shape: f32[1,4480], index: 1, kind: input, shape index: {}]
  %s2 = inlined_call_operand.hbm [shape: bf16[128,512], index: 2, kind: input, shape index: {}]
  %s3 = inlined_call_operand.hbm [shape: bf16[512,512], index: 3, kind: input, shape index: {}]
  %s4 = inlined_call_operand.hbm [shape: bf16[512,256], index: 4, kind: input, shape index: {}]
  %s5 = inlined_call_operand.vmem [shape: bf16[256,128], index: 5, kind: input, shape index: {}]
  %s6 = inlined_call_operand.vmem [shape: f32[128,64], index: 6, kind: input, shape index: {}]
  %s7 = inlined_call_operand.vmem [shape: f32[64,64], index: 7, kind: input, shape index: {}]
  %s8 = inlined_call_operand.hbm [shape: f32[64,64], index: 8, kind: input, shape index: {}]
  %s9 = inlined_call_operand.vmem [shape: f32[64,32], index: 9, kind: input, shape index: {}]
  %s10 = inlined_call_operand.hbm [shape: f32[32,32], index: 10, kind: input, shape index: {}]
  %s11 = inlined_call_operand.hbm [shape: f32[32,128], index: 11, kind: input, shape index: {}]
  %s12 = inlined_call_operand.vmem [shape: f32[8,128], index: 12, kind: output, shape index: {}]
  %s13 = sld [smem:[#allocation0]]
  $region82: #{enhanced_snn.1} parent=0
    _
  %s15 = ssub.s32 1, %s13
  %s16 = scalar_select 0, %s15, %s13
  $region1: #{enhanced_snn.1} parent=0
    #allocation3 [shape = 'u8[131072]{0}', space=vmem, size = 0x20000, scoped, tag = 'input window, operand 2, single buffered']
    #allocation4 [shape = 's32[1]{0}', space=sflag, size = 0x4, scoped, tag = 'scoped memory for enhanced_snn.1']
    #allocation5 [shape = 'u8[524288]{0}', space=vmem, size = 0x80000, scoped, tag = 'input window, operand 3, single buffered']
    #allocation6 [shape = 's32[1]{0}', space=sflag, size = 0x4, scoped, tag = 'scoped memory for enhanced_snn.1']
    #allocation7 [shape = 'u8[262144]{0}', space=vmem, size = 0x40000, scoped, tag = 'input window, operand 4, single buffered']
    #allocation8 [shape = 'u8[32768]{0}', space=vmem, size = 0x8000, scoped, tag = 'input window, operand 8, single buffered']
    #allocation9 [shape = 's32[1]{0}', space=sflag, size = 0x4, scoped, tag = 'scoped memory for enhanced_snn.1']
    #allocation10 [shape = 'u8[16384]{0}', space=vmem, size = 0x4000, scoped, tag = 'input window, operand 10, single buffered']
    #allocation11 [shape = 'u8[16384]{0}', space=vmem, size = 0x4000, scoped, tag = 'input window, operand 11, single buffered']
    #allocation12 [shape = 's32[1]{0}', space=sflag, size = 0x4, scoped, tag = 'scoped memory for enhanced_snn.1']
    %17 = vsyncpa [#allocation4], 0
    %18 = vsyncpa [#allocation6], 0
    %19 = vsyncpa [#allocation9], 0
    %20 = vsyncpa [#allocation12], 0
    // Predicated region
    $region2: #{enhanced_snn.1} parent=1 // pred_check
      _
    $region3: #{enhanced_snn.1} parent=1 // pred_check_branch
      %22 = sbr.rel (0) target = $region5
    $region4: #{enhanced_snn.1} parent=1 // pred_region
      _
    $region5: #{enhanced_snn.1} parent=1 // pred_fallthru
      _
    // Predicated region
    $region6: #{enhanced_snn.1} parent=1 // pred_check
      _
    $region7: #{enhanced_snn.1} parent=1 // pred_check_branch
      %24 = sbr.rel (0) target = $region9
    $region8: #{enhanced_snn.1} parent=1 // pred_region
      _
    $region9: #{enhanced_snn.1} parent=1 // pred_fallthru
      _
    // Predicated region
    $region10: #{enhanced_snn.1} parent=1 // pred_check
      _
    $region11: #{enhanced_snn.1} parent=1 // pred_check_branch
      %26 = sbr.rel (0) target = $region13
    $region12: #{enhanced_snn.1} parent=1 // pred_region
      %28 = vsyncadd [#allocation4], 0
      %s29 = sshll.u32 %s2, 4
      %s30 = int_to_ptr.hbm [resolvable:$true] %s29
      %s31 = sshll.u32 [#allocation3], 4
      %s32 = int_to_ptr.vmem [resolvable:$true] %s31
      %37 = dma.hbm_to_vmem [thread:$0]  %s30, 4096, %s32, [#allocation4], 256, 256, 16
    $region13: #{enhanced_snn.1} parent=1 // pred_fallthru
      _
    // Predicated region
    $region14: #{enhanced_snn.1} parent=1 // pred_check
      _
    $region15: #{enhanced_snn.1} parent=1 // pred_check_branch
      %39 = sbr.rel (0) target = $region17
    $region16: #{enhanced_snn.1} parent=1 // pred_region
      %41 = vsyncadd [#allocation6], 0
      %s42 = sshll.u32 %s3, 4
      %s43 = int_to_ptr.hbm [resolvable:$true] %s42
      %s44 = sshll.u32 [#allocation5], 4
      %s45 = int_to_ptr.vmem [resolvable:$true] %s44
      %50 = dma.hbm_to_vmem [thread:$0]  %s43, 16384, %s45, [#allocation6], 256, 256, 16
    $region17: #{enhanced_snn.1} parent=1 // pred_fallthru
      _
    // Predicated region
    $region18: #{enhanced_snn.1} parent=1 // pred_check
      _
    $region19: #{enhanced_snn.1} parent=1 // pred_check_branch
      %52 = sbr.rel (0) target = $region21
    $region20: #{enhanced_snn.1} parent=1 // pred_region
      %54 = vsyncadd [#allocation6], 0
      %s55 = sshll.u32 %s4, 4
      %s56 = int_to_ptr.hbm [resolvable:$true] %s55
      %s57 = sshll.u32 [#allocation7], 4
      %s58 = int_to_ptr.vmem [resolvable:$true] %s57
      %63 = dma.hbm_to_vmem [thread:$0]  %s56, 8192, %s58, [#allocation6], 128, 128, 8
    $region21: #{enhanced_snn.1} parent=1 // pred_fallthru
      _
    // Predicated region
    $region22: #{enhanced_snn.1} parent=1 // pred_check
      _
    $region23: #{enhanced_snn.1} parent=1 // pred_check_branch
      %65 = sbr.rel (0) target = $region25
    $region24: #{enhanced_snn.1} parent=1 // pred_region
      _
    $region25: #{enhanced_snn.1} parent=1 // pred_fallthru
      _
    // Predicated region
    $region26: #{enhanced_snn.1} parent=1 // pred_check
      _
    $region27: #{enhanced_snn.1} parent=1 // pred_check_branch
      %67 = sbr.rel (0) target = $region29
    $region28: #{enhanced_snn.1} parent=1 // pred_region
      _
    $region29: #{enhanced_snn.1} parent=1 // pred_fallthru
      _
    // Predicated region
    $region30: #{enhanced_snn.1} parent=1 // pred_check
      _
    $region31: #{enhanced_snn.1} parent=1 // pred_check_branch
      %69 = sbr.rel (0) target = $region33
    $region32: #{enhanced_snn.1} parent=1 // pred_region
      _
    $region33: #{enhanced_snn.1} parent=1 // pred_fallthru
      _
    // Predicated region
    $region34: #{enhanced_snn.1} parent=1 // pred_check
      _
    $region35: #{enhanced_snn.1} parent=1 // pred_check_branch
      %71 = sbr.rel (0) target = $region37
    $region36: #{enhanced_snn.1} parent=1 // pred_region
      %73 = vsyncadd [#allocation9], 0
      %s74 = sshll.u32 %s8, 4
      %s75 = int_to_ptr.hbm [resolvable:$true] %s74
      %s76 = sshll.u32 [#allocation8], 4
      %s77 = int_to_ptr.vmem [resolvable:$true] %s76
      %82 = dma.hbm_to_vmem [thread:$0]  %s75, 1024, %s77, [#allocation9], 128, 128, 8
    $region37: #{enhanced_snn.1} parent=1 // pred_fallthru
      _
    // Predicated region
    $region38: #{enhanced_snn.1} parent=1 // pred_check
      _
    $region39: #{enhanced_snn.1} parent=1 // pred_check_branch
      %84 = sbr.rel (0) target = $region41
    $region40: #{enhanced_snn.1} parent=1 // pred_region
      _
    $region41: #{enhanced_snn.1} parent=1 // pred_fallthru
      _
    // Predicated region
    $region42: #{enhanced_snn.1} parent=1 // pred_check
      _
    $region43: #{enhanced_snn.1} parent=1 // pred_check_branch
      %86 = sbr.rel (0) target = $region45
    $region44: #{enhanced_snn.1} parent=1 // pred_region
      %88 = vsyncadd [#allocation9], 0
      %s89 = sshll.u32 %s10, 4
      %s90 = int_to_ptr.hbm [resolvable:$true] %s89
      %s91 = sshll.u32 [#allocation10], 4
      %s92 = int_to_ptr.vmem [resolvable:$true] %s91
      %97 = dma.hbm_to_vmem [thread:$0]  %s90, 512, %s92, [#allocation9], 128, 128, 8
    $region45: #{enhanced_snn.1} parent=1 // pred_fallthru
      _
    // Predicated region
    $region46: #{enhanced_snn.1} parent=1 // pred_check
      _
    $region47: #{enhanced_snn.1} parent=1 // pred_check_branch
      %99 = sbr.rel (0) target = $region49
    $region48: #{enhanced_snn.1} parent=1 // pred_region
      %101 = vsyncadd [#allocation12], 0
      %s102 = sshll.u32 %s11, 4
      %s103 = int_to_ptr.hbm [resolvable:$true] %s102
      %s104 = sshll.u32 [#allocation11], 4
      %s105 = int_to_ptr.vmem [resolvable:$true] %s104
      %110 = dma.hbm_to_vmem [thread:$0]  %s103, 512, %s105, [#allocation12], 128, 128, 8
    $region49: #{enhanced_snn.1} parent=1 // pred_fallthru
      _
    // Predicated region
    $region50: #{enhanced_snn.1} parent=1 // pred_check
      _
    $region51: #{enhanced_snn.1} parent=1 // pred_check_branch
      %112 = sbr.rel (0) target = $region53
    $region52: #{enhanced_snn.1} parent=1 // pred_region
      %114 = dma.done [#allocation4], 4096
    $region53: #{enhanced_snn.1} parent=1 // pred_fallthru
      _
    // Predicated region
    $region54: #{enhanced_snn.1} parent=1 // pred_check
      _
    $region55: #{enhanced_snn.1} parent=1 // pred_check_branch
      %116 = sbr.rel (0) target = $region57
    $region56: #{enhanced_snn.1} parent=1 // pred_region
      %118 = dma.done [#allocation6], 16384
    $region57: #{enhanced_snn.1} parent=1 // pred_fallthru
      _
    // Predicated region
    $region58: #{enhanced_snn.1} parent=1 // pred_check
      _
    $region59: #{enhanced_snn.1} parent=1 // pred_check_branch
      %120 = sbr.rel (0) target = $region61
    $region60: #{enhanced_snn.1} parent=1 // pred_region
      %122 = dma.done [#allocation6], 8192
    $region61: #{enhanced_snn.1} parent=1 // pred_fallthru
      _
    // Predicated region
    $region62: #{enhanced_snn.1} parent=1 // pred_check
      _
    $region63: #{enhanced_snn.1} parent=1 // pred_check_branch
      %124 = sbr.rel (0) target = $region65
    $region64: #{enhanced_snn.1} parent=1 // pred_region
      %126 = dma.done [#allocation9], 1024
    $region65: #{enhanced_snn.1} parent=1 // pred_fallthru
      _
    // Predicated region
    $region66: #{enhanced_snn.1} parent=1 // pred_check
      _
    $region67: #{enhanced_snn.1} parent=1 // pred_check_branch
      %128 = sbr.rel (0) target = $region69
    $region68: #{enhanced_snn.1} parent=1 // pred_region
      %130 = dma.done [#allocation9], 512
    $region69: #{enhanced_snn.1} parent=1 // pred_fallthru
      _
    // Predicated region
    $region70: #{enhanced_snn.1} parent=1 // pred_check
      _
    $region71: #{enhanced_snn.1} parent=1 // pred_check_branch
      %132 = sbr.rel (0) target = $region73
    $region72: #{enhanced_snn.1} parent=1 // pred_region
      %134 = dma.done [#allocation12], 512
    $region73: #{enhanced_snn.1} parent=1 // pred_fallthru
      _
    %v135 = vld [vmem:[%s0] sm:$0xff]
    %v136 = vld [vmem:[%s1] sm:$0x1]
    %v137 = vld [vmem:[%s1 + $0x1] sm:$0x1]
    %138 = vadd.xlane.f32.xlu0 %v135
    %v139 = vpop.xlane.xlu0 %138
    %v140 = vrcp.pop 128.0
    %v141 = vmul.f32 128.0, %v140
    %v142 = vsub.f32 1.0, %v141
    %v143 = vmul.f32 %v140, %v142
    %v144 = vadd.f32 %v140, %v143
    %vm145 = vweird.f32 %v140
    %v146 = vsel %vm145, %v140, %v144
    %v147 = vmul.f32 %v139, %v146
    %v148 = vmul.f32 %v135, %v135
    %149 = vadd.xlane.f32.xlu0 %v148
    %v150 = vpop.xlane.xlu0 %149
    %v151 = vmul.f32 %v150, %v146
    %v152 = vmul.f32 %v147, %v147
    %v153 = vsub.f32 %v151, %v152
    %v154 = vmax.f32 %v153, 0.0
    %v155 = vsub.f32 %v135, %v147
    %v156 = vadd.f32 %v154, 1e-05
    %v157 = vrsqrt.pop %v156
    %v158 = vmul.f32 %v157, %v156
    %v159 = vmul.f32 %v158, %v157
    %v160 = vmul.f32 0.5, %v159
    %v161 = vsub.f32 1.5, %v160
    %v162 = vmul.f32 %v157, %v161
    %vm163 = vweird.f32 %v156
    %vm164 = vweird.f32 %v157
    %vm165 = vmor %vm163, %vm164
    %v166 = vsel %vm165, %v157, %v162
    %v167 = vmul.f32 %v155, %v166
    %v169 = vperm.slane %v136, 0
    %v171 = vmul.f32 %v167, %v169
    %v173 = vperm.slane %v137, 0
    %v175 = vadd.f32 %v171, %v173
    %v176 = vld [vmem:[#allocation3] sm:$0xff]
    %v177 = vld [vmem:[#allocation3 + $0x8] sm:$0xff]
    %v178 = vld [vmem:[#allocation3 + $0x10] sm:$0xff]
    %v179 = vld [vmem:[#allocation3 + $0x18] sm:$0xff]
    %v180 = vld [vmem:[#allocation3 + $0x20] sm:$0xff]
    %v181 = vld [vmem:[#allocation3 + $0x28] sm:$0xff]
    %v182 = vld [vmem:[#allocation3 + $0x30] sm:$0xff]
    %v183 = vld [vmem:[#allocation3 + $0x38] sm:$0xff]
    %v184 = vld [vmem:[#allocation3 + $0x40] sm:$0xff]
    %v185 = vld [vmem:[#allocation3 + $0x48] sm:$0xff]
    %v186 = vld [vmem:[#allocation3 + $0x50] sm:$0xff]
    %v187 = vld [vmem:[#allocation3 + $0x58] sm:$0xff]
    %v188 = vld [vmem:[#allocation3 + $0x60] sm:$0xff]
    %v189 = vld [vmem:[#allocation3 + $0x68] sm:$0xff]
    %v190 = vld [vmem:[#allocation3 + $0x70] sm:$0xff]
    %v191 = vld [vmem:[#allocation3 + $0x78] sm:$0xff]
    %v192 = vld [vmem:[#allocation3 + $0x80] sm:$0xff]
    %v193 = vld [vmem:[#allocation3 + $0x88] sm:$0xff]
    %v194 = vld [vmem:[#allocation3 + $0x90] sm:$0xff]
    %v195 = vld [vmem:[#allocation3 + $0x98] sm:$0xff]
    %v196 = vld [vmem:[#allocation3 + $0xa0] sm:$0xff]
    %v197 = vld [vmem:[#allocation3 + $0xa8] sm:$0xff]
    %v198 = vld [vmem:[#allocation3 + $0xb0] sm:$0xff]
    %v199 = vld [vmem:[#allocation3 + $0xb8] sm:$0xff]
    %v200 = vld [vmem:[#allocation3 + $0xc0] sm:$0xff]
    %v201 = vld [vmem:[#allocation3 + $0xc8] sm:$0xff]
    %v202 = vld [vmem:[#allocation3 + $0xd0] sm:$0xff]
    %v203 = vld [vmem:[#allocation3 + $0xd8] sm:$0xff]
    %v204 = vld [vmem:[#allocation3 + $0xe0] sm:$0xff]
    %v205 = vld [vmem:[#allocation3 + $0xe8] sm:$0xff]
    %v206 = vld [vmem:[#allocation3 + $0xf0] sm:$0xff]
    %v207 = vld [vmem:[#allocation3 + $0xf8] sm:$0xff]
    %v208 = vpack.c.bf16 %v175, %v175
    %v209 = vld [vmem:[%s1 + $0x2] sm:$0xf]
    %v211 = vperm.slane %v209, 0
    %v212 = vperm.slane %v209, 1
    %v213 = vperm.slane %v209, 2
    %v214 = vperm.slane %v209, 3
    %v251 = vunpack.c.l.b16 %v176
    %v252 = vunpack.c.h.b16 %v176
    %v253 = vunpack.c.l.b16 %v177
    %v254 = vunpack.c.h.b16 %v177
    %v255 = vunpack.c.l.b16 %v178
    %v256 = vunpack.c.h.b16 %v178
    %v257 = vunpack.c.l.b16 %v179
    %v258 = vunpack.c.h.b16 %v179
    %v259 = vunpack.c.l.b16 %v180
    %v260 = vunpack.c.h.b16 %v180
    %v261 = vunpack.c.l.b16 %v181
    %v262 = vunpack.c.h.b16 %v181
    %v263 = vunpack.c.l.b16 %v182
    %v264 = vunpack.c.h.b16 %v182
    %v265 = vunpack.c.l.b16 %v183
    %v266 = vunpack.c.h.b16 %v183
    %v267 = vunpack.c.l.b16 %v184
    %v268 = vunpack.c.h.b16 %v184
    %v269 = vunpack.c.l.b16 %v185
    %v270 = vunpack.c.h.b16 %v185
    %v271 = vunpack.c.l.b16 %v186
    %v272 = vunpack.c.h.b16 %v186
    %v273 = vunpack.c.l.b16 %v187
    %v274 = vunpack.c.h.b16 %v187
    %v275 = vunpack.c.l.b16 %v188
    %v276 = vunpack.c.h.b16 %v188
    %v277 = vunpack.c.l.b16 %v189
    %v278 = vunpack.c.h.b16 %v189
    %v279 = vunpack.c.l.b16 %v190
    %v280 = vunpack.c.h.b16 %v190
    %v281 = vunpack.c.l.b16 %v191
    %v282 = vunpack.c.h.b16 %v191
    %v283 = vunpack.c.l.b16 %v192
    %v284 = vunpack.c.h.b16 %v192
    %v285 = vunpack.c.l.b16 %v193
    %v286 = vunpack.c.h.b16 %v193
    %v287 = vunpack.c.l.b16 %v194
    %v288 = vunpack.c.h.b16 %v194
    %v289 = vunpack.c.l.b16 %v195
    %v290 = vunpack.c.h.b16 %v195
    %v291 = vunpack.c.l.b16 %v196
    %v292 = vunpack.c.h.b16 %v196
    %v293 = vunpack.c.l.b16 %v197
    %v294 = vunpack.c.h.b16 %v197
    %v295 = vunpack.c.l.b16 %v198
    %v296 = vunpack.c.h.b16 %v198
    %v297 = vunpack.c.l.b16 %v199
    %v298 = vunpack.c.h.b16 %v199
    %v299 = vunpack.c.l.b16 %v200
    %v300 = vunpack.c.h.b16 %v200
    %v301 = vunpack.c.l.b16 %v201
    %v302 = vunpack.c.h.b16 %v201
    %v303 = vunpack.c.l.b16 %v202
    %v304 = vunpack.c.h.b16 %v202
    %v305 = vunpack.c.l.b16 %v203
    %v306 = vunpack.c.h.b16 %v203
    %v307 = vunpack.c.l.b16 %v204
    %v308 = vunpack.c.h.b16 %v204
    %v309 = vunpack.c.l.b16 %v205
    %v310 = vunpack.c.h.b16 %v205
    %v311 = vunpack.c.l.b16 %v206
    %v312 = vunpack.c.h.b16 %v206
    %v313 = vunpack.c.l.b16 %v207
    %v314 = vunpack.c.h.b16 %v207
    %v315 = vpack.c.b16 %v255, %v251
    %v316 = vpack.c.b16 %v256, %v252
    %v317 = vpack.c.b16 %v257, %v253
    %v318 = vpack.c.b16 %v258, %v254
    %v319 = vpack.c.b16 %v263, %v259
    %v320 = vpack.c.b16 %v264, %v260
    %v321 = vpack.c.b16 %v265, %v261
    %v322 = vpack.c.b16 %v266, %v262
    %v323 = vpack.c.b16 %v271, %v267
    %v324 = vpack.c.b16 %v272, %v268
    %v325 = vpack.c.b16 %v273, %v269
    %v326 = vpack.c.b16 %v274, %v270
    %v327 = vpack.c.b16 %v279, %v275
    %v328 = vpack.c.b16 %v280, %v276
    %v329 = vpack.c.b16 %v281, %v277
    %v330 = vpack.c.b16 %v282, %v278
    %v331 = vpack.c.b16 %v287, %v283
    %v332 = vpack.c.b16 %v288, %v284
    %v333 = vpack.c.b16 %v289, %v285
    %v334 = vpack.c.b16 %v290, %v286
    %v335 = vpack.c.b16 %v295, %v291
    %v336 = vpack.c.b16 %v296, %v292
    %v337 = vpack.c.b16 %v297, %v293
    %v338 = vpack.c.b16 %v298, %v294
    %v339 = vpack.c.b16 %v303, %v299
    %v340 = vpack.c.b16 %v304, %v300
    %v341 = vpack.c.b16 %v305, %v301
    %v342 = vpack.c.b16 %v306, %v302
    %v343 = vpack.c.b16 %v311, %v307
    %v344 = vpack.c.b16 %v312, %v308
    %v345 = vpack.c.b16 %v313, %v309
    %v346 = vpack.c.b16 %v314, %v310
    %379 = vmatpush.bf16.msra.mxu0 %v343
    %380 = vmatpush.bf16.msra.mxu0 %v339
    %381 = vmatpush.bf16.msra.mxu0 %v335
    %382 = vmatpush.bf16.msra.mxu0 %v331
    %383 = vmatpush.bf16.msra.mxu0 %v327
    %384 = vmatpush.bf16.msra.mxu0 %v323
    %385 = vmatpush.bf16.msra.mxu0 %v319
    %386 = vmatpush.bf16.msra.mxu0 %v315
    %387 = vmatmul.bf16.gmra.mxu0 %v208
    %v388 = vpop.f32.mrf.mxu0
    %v389 = vadd.f32 %v211, %v388
    %v390 = vpop.f32.mrf.mxu0
    %391 = vdwg.mxu0
    %392 = vmatpush.bf16.msra.mxu0 %v344
    %393 = vmatpush.bf16.msra.mxu0 %v340
    %394 = vmatpush.bf16.msra.mxu0 %v336
    %395 = vmatpush.bf16.msra.mxu0 %v332
    %396 = vmatpush.bf16.msra.mxu0 %v328
    %397 = vmatpush.bf16.msra.mxu0 %v324
    %398 = vmatpush.bf16.msra.mxu0 %v320
    %399 = vmatpush.bf16.msra.mxu0 %v316
    %400 = vmatmul.bf16.gmra.mxu0 %v208
    %v401 = vpop.f32.mrf.mxu0
    %v402 = vadd.f32 %v212, %v401
    %v403 = vpop.f32.mrf.mxu0
    %404 = vdwg.mxu0
    %405 = vmatpush.bf16.msra.mxu0 %v345
    %406 = vmatpush.bf16.msra.mxu0 %v341
    %407 = vmatpush.bf16.msra.mxu0 %v337
    %408 = vmatpush.bf16.msra.mxu0 %v333
    %409 = vmatpush.bf16.msra.mxu0 %v329
    %410 = vmatpush.bf16.msra.mxu0 %v325
    %411 = vmatpush.bf16.msra.mxu0 %v321
    %412 = vmatpush.bf16.msra.mxu0 %v317
    %413 = vmatmul.bf16.gmra.mxu0 %v208
    %v414 = vpop.f32.mrf.mxu0
    %v415 = vadd.f32 %v213, %v414
    %v416 = vpop.f32.mrf.mxu0
    %417 = vdwg.mxu0
    %418 = vmatpush.bf16.msra.mxu0 %v346
    %419 = vmatpush.bf16.msra.mxu0 %v342
    %420 = vmatpush.bf16.msra.mxu0 %v338
    %421 = vmatpush.bf16.msra.mxu0 %v334
    %422 = vmatpush.bf16.msra.mxu0 %v330
    %423 = vmatpush.bf16.msra.mxu0 %v326
    %424 = vmatpush.bf16.msra.mxu0 %v322
    %425 = vmatpush.bf16.msra.mxu0 %v318
    %426 = vmatmul.bf16.gmra.mxu0 %v208
    %v427 = vpop.f32.mrf.mxu0
    %v428 = vadd.f32 %v214, %v427
    %v429 = vpop.f32.mrf.mxu0
    %430 = vdwg.mxu0
    %v431 = vmul.f32 %v389, 0.1
    %v432 = vmul.f32 %v402, 0.1
    %v433 = vmul.f32 %v415, 0.1
    %v434 = vmul.f32 %v428, 0.1
    %v435 = vmax.f32 %v389, %v431
    %v436 = vmax.f32 %v402, %v432
    %v437 = vmax.f32 %v415, %v433
    %v438 = vmax.f32 %v428, %v434
    %v439 = vld [vmem:[%s1 + $0x6] sm:$0xf]
    %v440 = vld [vmem:[%s1 + $0xa] sm:$0xf]
    %v441 = vadd.f32 %v435, %v436
    %v442 = vadd.f32 %v441, %v437
    %v443 = vadd.f32 %v442, %v438
    %444 = vadd.xlane.f32.xlu0 %v443
    %v445 = vpop.xlane.xlu0 %444
    %v446 = vrcp.pop 512.0
    %v447 = vmul.f32 512.0, %v446
    %v448 = vsub.f32 1.0, %v447
    %v449 = vmul.f32 %v446, %v448
    %v450 = vadd.f32 %v446, %v449
    %vm451 = vweird.f32 %v446
    %v452 = vsel %vm451, %v446, %v450
    %v453 = vmul.f32 %v445, %v452
    %v454 = vmul.f32 %v435, %v435
    %v455 = vmul.f32 %v436, %v436
    %v456 = vmul.f32 %v437, %v437
    %v457 = vmul.f32 %v438, %v438
    %v458 = vadd.f32 %v454, %v455
    %v459 = vadd.f32 %v458, %v456
    %v460 = vadd.f32 %v459, %v457
    %461 = vadd.xlane.f32.xlu0 %v460
    %v462 = vpop.xlane.xlu0 %461
    %v463 = vmul.f32 %v462, %v452
    %v464 = vmul.f32 %v453, %v453
    %v465 = vsub.f32 %v463, %v464
    %v466 = vmax.f32 %v465, 0.0
    %v467 = vsub.f32 %v435, %v453
    %v468 = vsub.f32 %v436, %v453
    %v469 = vsub.f32 %v437, %v453
    %v470 = vsub.f32 %v438, %v453
    %v471 = vadd.f32 %v466, 1e-05
    %v472 = vrsqrt.pop %v471
    %v473 = vmul.f32 %v472, %v471
    %v474 = vmul.f32 %v473, %v472
    %v475 = vmul.f32 0.5, %v474
    %v476 = vsub.f32 1.5, %v475
    %v477 = vmul.f32 %v472, %v476
    %vm478 = vweird.f32 %v471
    %vm479 = vweird.f32 %v472
    %vm480 = vmor %vm478, %vm479
    %v481 = vsel %vm480, %v472, %v477
    %v482 = vmul.f32 %v467, %v481
    %v483 = vmul.f32 %v468, %v481
    %v484 = vmul.f32 %v469, %v481
    %v485 = vmul.f32 %v470, %v481
    %v487 = vperm.slane %v439, 0
    %v488 = vperm.slane %v439, 1
    %v489 = vperm.slane %v439, 2
    %v490 = vperm.slane %v439, 3
    %v495 = vmul.f32 %v482, %v487
    %v496 = vmul.f32 %v483, %v488
    %v497 = vmul.f32 %v484, %v489
    %v498 = vmul.f32 %v485, %v490
    %v500 = vperm.slane %v440, 0
    %v501 = vperm.slane %v440, 1
    %v502 = vperm.slane %v440, 2
    %v503 = vperm.slane %v440, 3
    %v508 = vadd.f32 %v495, %v500
    %v509 = vadd.f32 %v496, %v501
    %v510 = vadd.f32 %v497, %v502
    %v511 = vadd.f32 %v498, %v503
    %v512 = vld [vmem:[#allocation5] sm:$0xff]
    %v513 = vld [vmem:[#allocation5 + $0x8] sm:$0xff]
    %v514 = vld [vmem:[#allocation5 + $0x10] sm:$0xff]
    %v515 = vld [vmem:[#allocation5 + $0x18] sm:$0xff]
    %v516 = vld [vmem:[#allocation5 + $0x20] sm:$0xff]
    %v517 = vld [vmem:[#allocation5 + $0x28] sm:$0xff]
    %v518 = vld [vmem:[#allocation5 + $0x30] sm:$0xff]
    %v519 = vld [vmem:[#allocation5 + $0x38] sm:$0xff]
    %v520 = vld [vmem:[#allocation5 + $0x40] sm:$0xff]
    %v521 = vld [vmem:[#allocation5 + $0x48] sm:$0xff]
    %v522 = vld [vmem:[#allocation5 + $0x50] sm:$0xff]
    %v523 = vld [vmem:[#allocation5 + $0x58] sm:$0xff]
    %v524 = vld [vmem:[#allocation5 + $0x60] sm:$0xff]
    %v525 = vld [vmem:[#allocation5 + $0x68] sm:$0xff]
    %v526 = vld [vmem:[#allocation5 + $0x70] sm:$0xff]
    %v527 = vld [vmem:[#allocation5 + $0x78] sm:$0xff]
    %v528 = vld [vmem:[#allocation5 + $0x80] sm:$0xff]
    %v529 = vld [vmem:[#allocation5 + $0x88] sm:$0xff]
    %v530 = vld [vmem:[#allocation5 + $0x90] sm:$0xff]
    %v531 = vld [vmem:[#allocation5 + $0x98] sm:$0xff]
    %v532 = vld [vmem:[#allocation5 + $0xa0] sm:$0xff]
    %v533 = vld [vmem:[#allocation5 + $0xa8] sm:$0xff]
    %v534 = vld [vmem:[#allocation5 + $0xb0] sm:$0xff]
    %v535 = vld [vmem:[#allocation5 + $0xb8] sm:$0xff]
    %v536 = vld [vmem:[#allocation5 + $0xc0] sm:$0xff]
    %v537 = vld [vmem:[#allocation5 + $0xc8] sm:$0xff]
    %v538 = vld [vmem:[#allocation5 + $0xd0] sm:$0xff]
    %v539 = vld [vmem:[#allocation5 + $0xd8] sm:$0xff]
    %v540 = vld [vmem:[#allocation5 + $0xe0] sm:$0xff]
    %v541 = vld [vmem:[#allocation5 + $0xe8] sm:$0xff]
    %v542 = vld [vmem:[#allocation5 + $0xf0] sm:$0xff]
    %v543 = vld [vmem:[#allocation5 + $0xf8] sm:$0xff]
    %v544 = vld [vmem:[#allocation5 + $0x100] sm:$0xff]
    %v545 = vld [vmem:[#allocation5 + $0x108] sm:$0xff]
    %v546 = vld [vmem:[#allocation5 + $0x110] sm:$0xff]
    %v547 = vld [vmem:[#allocation5 + $0x118] sm:$0xff]
    %v548 = vld [vmem:[#allocation5 + $0x120] sm:$0xff]
    %v549 = vld [vmem:[#allocation5 + $0x128] sm:$0xff]
    %v550 = vld [vmem:[#allocation5 + $0x130] sm:$0xff]
    %v551 = vld [vmem:[#allocation5 + $0x138] sm:$0xff]
    %v552 = vld [vmem:[#allocation5 + $0x140] sm:$0xff]
    %v553 = vld [vmem:[#allocation5 + $0x148] sm:$0xff]
    %v554 = vld [vmem:[#allocation5 + $0x150] sm:$0xff]
    %v555 = vld [vmem:[#allocation5 + $0x158] sm:$0xff]
    %v556 = vld [vmem:[#allocation5 + $0x160] sm:$0xff]
    %v557 = vld [vmem:[#allocation5 + $0x168] sm:$0xff]
    %v558 = vld [vmem:[#allocation5 + $0x170] sm:$0xff]
    %v559 = vld [vmem:[#allocation5 + $0x178] sm:$0xff]
    %v560 = vld [vmem:[#allocation5 + $0x180] sm:$0xff]
    %v561 = vld [vmem:[#allocation5 + $0x188] sm:$0xff]
    %v562 = vld [vmem:[#allocation5 + $0x190] sm:$0xff]
    %v563 = vld [vmem:[#allocation5 + $0x198] sm:$0xff]
    %v564 = vld [vmem:[#allocation5 + $0x1a0] sm:$0xff]
    %v565 = vld [vmem:[#allocation5 + $0x1a8] sm:$0xff]
    %v566 = vld [vmem:[#allocation5 + $0x1b0] sm:$0xff]
    %v567 = vld [vmem:[#allocation5 + $0x1b8] sm:$0xff]
    %v568 = vld [vmem:[#allocation5 + $0x1c0] sm:$0xff]
    %v569 = vld [vmem:[#allocation5 + $0x1c8] sm:$0xff]
    %v570 = vld [vmem:[#allocation5 + $0x1d0] sm:$0xff]
    %v571 = vld [vmem:[#allocation5 + $0x1d8] sm:$0xff]
    %v572 = vld [vmem:[#allocation5 + $0x1e0] sm:$0xff]
    %v573 = vld [vmem:[#allocation5 + $0x1e8] sm:$0xff]
    %v574 = vld [vmem:[#allocation5 + $0x1f0] sm:$0xff]
    %v575 = vld [vmem:[#allocation5 + $0x1f8] sm:$0xff]
    %v576 = vld [vmem:[#allocation5 + $0x200] sm:$0xff]
    %v577 = vld [vmem:[#allocation5 + $0x208] sm:$0xff]
    %v578 = vld [vmem:[#allocation5 + $0x210] sm:$0xff]
    %v579 = vld [vmem:[#allocation5 + $0x218] sm:$0xff]
    %v580 = vld [vmem:[#allocation5 + $0x220] sm:$0xff]
    %v581 = vld [vmem:[#allocation5 + $0x228] sm:$0xff]
    %v582 = vld [vmem:[#allocation5 + $0x230] sm:$0xff]
    %v583 = vld [vmem:[#allocation5 + $0x238] sm:$0xff]
    %v584 = vld [vmem:[#allocation5 + $0x240] sm:$0xff]
    %v585 = vld [vmem:[#allocation5 + $0x248] sm:$0xff]
    %v586 = vld [vmem:[#allocation5 + $0x250] sm:$0xff]
    %v587 = vld [vmem:[#allocation5 + $0x258] sm:$0xff]
    %v588 = vld [vmem:[#allocation5 + $0x260] sm:$0xff]
    %v589 = vld [vmem:[#allocation5 + $0x268] sm:$0xff]
    %v590 = vld [vmem:[#allocation5 + $0x270] sm:$0xff]
    %v591 = vld [vmem:[#allocation5 + $0x278] sm:$0xff]
    %v592 = vld [vmem:[#allocation5 + $0x280] sm:$0xff]
    %v593 = vld [vmem:[#allocation5 + $0x288] sm:$0xff]
    %v594 = vld [vmem:[#allocation5 + $0x290] sm:$0xff]
    %v595 = vld [vmem:[#allocation5 + $0x298] sm:$0xff]
    %v596 = vld [vmem:[#allocation5 + $0x2a0] sm:$0xff]
    %v597 = vld [vmem:[#allocation5 + $0x2a8] sm:$0xff]
    %v598 = vld [vmem:[#allocation5 + $0x2b0] sm:$0xff]
    %v599 = vld [vmem:[#allocation5 + $0x2b8] sm:$0xff]
    %v600 = vld [vmem:[#allocation5 + $0x2c0] sm:$0xff]
    %v601 = vld [vmem:[#allocation5 + $0x2c8] sm:$0xff]
    %v602 = vld [vmem:[#allocation5 + $0x2d0] sm:$0xff]
    %v603 = vld [vmem:[#allocation5 + $0x2d8] sm:$0xff]
    %v604 = vld [vmem:[#allocation5 + $0x2e0] sm:$0xff]
    %v605 = vld [vmem:[#allocation5 + $0x2e8] sm:$0xff]
    %v606 = vld [vmem:[#allocation5 + $0x2f0] sm:$0xff]
    %v607 = vld [vmem:[#allocation5 + $0x2f8] sm:$0xff]
    %v608 = vld [vmem:[#allocation5 + $0x300] sm:$0xff]
    %v609 = vld [vmem:[#allocation5 + $0x308] sm:$0xff]
    %v610 = vld [vmem:[#allocation5 + $0x310] sm:$0xff]
    %v611 = vld [vmem:[#allocation5 + $0x318] sm:$0xff]
    %v612 = vld [vmem:[#allocation5 + $0x320] sm:$0xff]
    %v613 = vld [vmem:[#allocation5 + $0x328] sm:$0xff]
    %v614 = vld [vmem:[#allocation5 + $0x330] sm:$0xff]
    %v615 = vld [vmem:[#allocation5 + $0x338] sm:$0xff]
    %v616 = vld [vmem:[#allocation5 + $0x340] sm:$0xff]
    %v617 = vld [vmem:[#allocation5 + $0x348] sm:$0xff]
    %v618 = vld [vmem:[#allocation5 + $0x350] sm:$0xff]
    %v619 = vld [vmem:[#allocation5 + $0x358] sm:$0xff]
    %v620 = vld [vmem:[#allocation5 + $0x360] sm:$0xff]
    %v621 = vld [vmem:[#allocation5 + $0x368] sm:$0xff]
    %v622 = vld [vmem:[#allocation5 + $0x370] sm:$0xff]
    %v623 = vld [vmem:[#allocation5 + $0x378] sm:$0xff]
    %v624 = vld [vmem:[#allocation5 + $0x380] sm:$0xff]
    %v625 = vld [vmem:[#allocation5 + $0x388] sm:$0xff]
    %v626 = vld [vmem:[#allocation5 + $0x390] sm:$0xff]
    %v627 = vld [vmem:[#allocation5 + $0x398] sm:$0xff]
    %v628 = vld [vmem:[#allocation5 + $0x3a0] sm:$0xff]
    %v629 = vld [vmem:[#allocation5 + $0x3a8] sm:$0xff]
    %v630 = vld [vmem:[#allocation5 + $0x3b0] sm:$0xff]
    %v631 = vld [vmem:[#allocation5 + $0x3b8] sm:$0xff]
    %v632 = vld [vmem:[#allocation5 + $0x3c0] sm:$0xff]
    %v633 = vld [vmem:[#allocation5 + $0x3c8] sm:$0xff]
    %v634 = vld [vmem:[#allocation5 + $0x3d0] sm:$0xff]
    %v635 = vld [vmem:[#allocation5 + $0x3d8] sm:$0xff]
    %v636 = vld [vmem:[#allocation5 + $0x3e0] sm:$0xff]
    %v637 = vld [vmem:[#allocation5 + $0x3e8] sm:$0xff]
    %v638 = vld [vmem:[#allocation5 + $0x3f0] sm:$0xff]
    %v639 = vld [vmem:[#allocation5 + $0x3f8] sm:$0xff]
    %v640 = vpack.c.bf16 %v508, %v508
    %v641 = vpack.c.bf16 %v509, %v509
    %v642 = vpack.c.bf16 %v510, %v510
    %v643 = vpack.c.bf16 %v511, %v511
    %v644 = vld [vmem:[%s1 + $0xe] sm:$0xf]
    %v646 = vperm.slane %v644, 0
    %v647 = vperm.slane %v644, 1
    %v648 = vperm.slane %v644, 2
    %v649 = vperm.slane %v644, 3
    %v782 = vunpack.c.l.b16 %v512
    %v783 = vunpack.c.h.b16 %v512
    %v784 = vunpack.c.l.b16 %v513
    %v785 = vunpack.c.h.b16 %v513
    %v786 = vunpack.c.l.b16 %v514
    %v787 = vunpack.c.h.b16 %v514
    %v788 = vunpack.c.l.b16 %v515
    %v789 = vunpack.c.h.b16 %v515
    %v790 = vunpack.c.l.b16 %v516
    %v791 = vunpack.c.h.b16 %v516
    %v792 = vunpack.c.l.b16 %v517
    %v793 = vunpack.c.h.b16 %v517
    %v794 = vunpack.c.l.b16 %v518
    %v795 = vunpack.c.h.b16 %v518
    %v796 = vunpack.c.l.b16 %v519
    %v797 = vunpack.c.h.b16 %v519
    %v798 = vunpack.c.l.b16 %v520
    %v799 = vunpack.c.h.b16 %v520
    %v800 = vunpack.c.l.b16 %v521
    %v801 = vunpack.c.h.b16 %v521
    %v802 = vunpack.c.l.b16 %v522
    %v803 = vunpack.c.h.b16 %v522
    %v804 = vunpack.c.l.b16 %v523
    %v805 = vunpack.c.h.b16 %v523
    %v806 = vunpack.c.l.b16 %v524
    %v807 = vunpack.c.h.b16 %v524
    %v808 = vunpack.c.l.b16 %v525
    %v809 = vunpack.c.h.b16 %v525
    %v810 = vunpack.c.l.b16 %v526
    %v811 = vunpack.c.h.b16 %v526
    %v812 = vunpack.c.l.b16 %v527
    %v813 = vunpack.c.h.b16 %v527
    %v814 = vunpack.c.l.b16 %v528
    %v815 = vunpack.c.h.b16 %v528
    %v816 = vunpack.c.l.b16 %v529
    %v817 = vunpack.c.h.b16 %v529
    %v818 = vunpack.c.l.b16 %v530
    %v819 = vunpack.c.h.b16 %v530
    %v820 = vunpack.c.l.b16 %v531
    %v821 = vunpack.c.h.b16 %v531
    %v822 = vunpack.c.l.b16 %v532
    %v823 = vunpack.c.h.b16 %v532
    %v824 = vunpack.c.l.b16 %v533
    %v825 = vunpack.c.h.b16 %v533
    %v826 = vunpack.c.l.b16 %v534
    %v827 = vunpack.c.h.b16 %v534
    %v828 = vunpack.c.l.b16 %v535
    %v829 = vunpack.c.h.b16 %v535
    %v830 = vunpack.c.l.b16 %v536
    %v831 = vunpack.c.h.b16 %v536
    %v832 = vunpack.c.l.b16 %v537
    %v833 = vunpack.c.h.b16 %v537
    %v834 = vunpack.c.l.b16 %v538
    %v835 = vunpack.c.h.b16 %v538
    %v836 = vunpack.c.l.b16 %v539
    %v837 = vunpack.c.h.b16 %v539
    %v838 = vunpack.c.l.b16 %v540
    %v839 = vunpack.c.h.b16 %v540
    %v840 = vunpack.c.l.b16 %v541
    %v841 = vunpack.c.h.b16 %v541
    %v842 = vunpack.c.l.b16 %v542
    %v843 = vunpack.c.h.b16 %v542
    %v844 = vunpack.c.l.b16 %v543
    %v845 = vunpack.c.h.b16 %v543
    %v846 = vunpack.c.l.b16 %v544
    %v847 = vunpack.c.h.b16 %v544
    %v848 = vunpack.c.l.b16 %v545
    %v849 = vunpack.c.h.b16 %v545
    %v850 = vunpack.c.l.b16 %v546
    %v851 = vunpack.c.h.b16 %v546
    %v852 = vunpack.c.l.b16 %v547
    %v853 = vunpack.c.h.b16 %v547
    %v854 = vunpack.c.l.b16 %v548
    %v855 = vunpack.c.h.b16 %v548
    %v856 = vunpack.c.l.b16 %v549
    %v857 = vunpack.c.h.b16 %v549
    %v858 = vunpack.c.l.b16 %v550
    %v859 = vunpack.c.h.b16 %v550
    %v860 = vunpack.c.l.b16 %v551
    %v861 = vunpack.c.h.b16 %v551
    %v862 = vunpack.c.l.b16 %v552
    %v863 = vunpack.c.h.b16 %v552
    %v864 = vunpack.c.l.b16 %v553
    %v865 = vunpack.c.h.b16 %v553
    %v866 = vunpack.c.l.b16 %v554
    %v867 = vunpack.c.h.b16 %v554
    %v868 = vunpack.c.l.b16 %v555
    %v869 = vunpack.c.h.b16 %v555
    %v870 = vunpack.c.l.b16 %v556
    %v871 = vunpack.c.h.b16 %v556
    %v872 = vunpack.c.l.b16 %v557
    %v873 = vunpack.c.h.b16 %v557
    %v874 = vunpack.c.l.b16 %v558
    %v875 = vunpack.c.h.b16 %v558
    %v876 = vunpack.c.l.b16 %v559
    %v877 = vunpack.c.h.b16 %v559
    %v878 = vunpack.c.l.b16 %v560
    %v879 = vunpack.c.h.b16 %v560
    %v880 = vunpack.c.l.b16 %v561
    %v881 = vunpack.c.h.b16 %v561
    %v882 = vunpack.c.l.b16 %v562
    %v883 = vunpack.c.h.b16 %v562
    %v884 = vunpack.c.l.b16 %v563
    %v885 = vunpack.c.h.b16 %v563
    %v886 = vunpack.c.l.b16 %v564
    %v887 = vunpack.c.h.b16 %v564
    %v888 = vunpack.c.l.b16 %v565
    %v889 = vunpack.c.h.b16 %v565
    %v890 = vunpack.c.l.b16 %v566
    %v891 = vunpack.c.h.b16 %v566
    %v892 = vunpack.c.l.b16 %v567
    %v893 = vunpack.c.h.b16 %v567
    %v894 = vunpack.c.l.b16 %v568
    %v895 = vunpack.c.h.b16 %v568
    %v896 = vunpack.c.l.b16 %v569
    %v897 = vunpack.c.h.b16 %v569
    %v898 = vunpack.c.l.b16 %v570
    %v899 = vunpack.c.h.b16 %v570
    %v900 = vunpack.c.l.b16 %v571
    %v901 = vunpack.c.h.b16 %v571
    %v902 = vunpack.c.l.b16 %v572
    %v903 = vunpack.c.h.b16 %v572
    %v904 = vunpack.c.l.b16 %v573
    %v905 = vunpack.c.h.b16 %v573
    %v906 = vunpack.c.l.b16 %v574
    %v907 = vunpack.c.h.b16 %v574
    %v908 = vunpack.c.l.b16 %v575
    %v909 = vunpack.c.h.b16 %v575
    %v910 = vunpack.c.l.b16 %v576
    %v911 = vunpack.c.h.b16 %v576
    %v912 = vunpack.c.l.b16 %v577
    %v913 = vunpack.c.h.b16 %v577
    %v914 = vunpack.c.l.b16 %v578
    %v915 = vunpack.c.h.b16 %v578
    %v916 = vunpack.c.l.b16 %v579
    %v917 = vunpack.c.h.b16 %v579
    %v918 = vunpack.c.l.b16 %v580
    %v919 = vunpack.c.h.b16 %v580
    %v920 = vunpack.c.l.b16 %v581
    %v921 = vunpack.c.h.b16 %v581
    %v922 = vunpack.c.l.b16 %v582
    %v923 = vunpack.c.h.b16 %v582
    %v924 = vunpack.c.l.b16 %v583
    %v925 = vunpack.c.h.b16 %v583
    %v926 = vunpack.c.l.b16 %v584
    %v927 = vunpack.c.h.b16 %v584
    %v928 = vunpack.c.l.b16 %v585
    %v929 = vunpack.c.h.b16 %v585
    %v930 = vunpack.c.l.b16 %v586
    %v931 = vunpack.c.h.b16 %v586
    %v932 = vunpack.c.l.b16 %v587
    %v933 = vunpack.c.h.b16 %v587
    %v934 = vunpack.c.l.b16 %v588
    %v935 = vunpack.c.h.b16 %v588
    %v936 = vunpack.c.l.b16 %v589
    %v937 = vunpack.c.h.b16 %v589
    %v938 = vunpack.c.l.b16 %v590
    %v939 = vunpack.c.h.b16 %v590
    %v940 = vunpack.c.l.b16 %v591
    %v941 = vunpack.c.h.b16 %v591
    %v942 = vunpack.c.l.b16 %v592
    %v943 = vunpack.c.h.b16 %v592
    %v944 = vunpack.c.l.b16 %v593
    %v945 = vunpack.c.h.b16 %v593
    %v946 = vunpack.c.l.b16 %v594
    %v947 = vunpack.c.h.b16 %v594
    %v948 = vunpack.c.l.b16 %v595
    %v949 = vunpack.c.h.b16 %v595
    %v950 = vunpack.c.l.b16 %v596
    %v951 = vunpack.c.h.b16 %v596
    %v952 = vunpack.c.l.b16 %v597
    %v953 = vunpack.c.h.b16 %v597
    %v954 = vunpack.c.l.b16 %v598
    %v955 = vunpack.c.h.b16 %v598
    %v956 = vunpack.c.l.b16 %v599
    %v957 = vunpack.c.h.b16 %v599
    %v958 = vunpack.c.l.b16 %v600
    %v959 = vunpack.c.h.b16 %v600
    %v960 = vunpack.c.l.b16 %v601
    %v961 = vunpack.c.h.b16 %v601
    %v962 = vunpack.c.l.b16 %v602
    %v963 = vunpack.c.h.b16 %v602
    %v964 = vunpack.c.l.b16 %v603
    %v965 = vunpack.c.h.b16 %v603
    %v966 = vunpack.c.l.b16 %v604
    %v967 = vunpack.c.h.b16 %v604
    %v968 = vunpack.c.l.b16 %v605
    %v969 = vunpack.c.h.b16 %v605
    %v970 = vunpack.c.l.b16 %v606
    %v971 = vunpack.c.h.b16 %v606
    %v972 = vunpack.c.l.b16 %v607
    %v973 = vunpack.c.h.b16 %v607
    %v974 = vunpack.c.l.b16 %v608
    %v975 = vunpack.c.h.b16 %v608
    %v976 = vunpack.c.l.b16 %v609
    %v977 = vunpack.c.h.b16 %v609
    %v978 = vunpack.c.l.b16 %v610
    %v979 = vunpack.c.h.b16 %v610
    %v980 = vunpack.c.l.b16 %v611
    %v981 = vunpack.c.h.b16 %v611
    %v982 = vunpack.c.l.b16 %v612
    %v983 = vunpack.c.h.b16 %v612
    %v984 = vunpack.c.l.b16 %v613
    %v985 = vunpack.c.h.b16 %v613
    %v986 = vunpack.c.l.b16 %v614
    %v987 = vunpack.c.h.b16 %v614
    %v988 = vunpack.c.l.b16 %v615
    %v989 = vunpack.c.h.b16 %v615
    %v990 = vunpack.c.l.b16 %v616
    %v991 = vunpack.c.h.b16 %v616
    %v992 = vunpack.c.l.b16 %v617
    %v993 = vunpack.c.h.b16 %v617
    %v994 = vunpack.c.l.b16 %v618
    %v995 = vunpack.c.h.b16 %v618
    %v996 = vunpack.c.l.b16 %v619
    %v997 = vunpack.c.h.b16 %v619
    %v998 = vunpack.c.l.b16 %v620
    %v999 = vunpack.c.h.b16 %v620
    %v1000 = vunpack.c.l.b16 %v621
    %v1001 = vunpack.c.h.b16 %v621
    %v1002 = vunpack.c.l.b16 %v622
    %v1003 = vunpack.c.h.b16 %v622
    %v1004 = vunpack.c.l.b16 %v623
    %v1005 = vunpack.c.h.b16 %v623
    %v1006 = vunpack.c.l.b16 %v624
    %v1007 = vunpack.c.h.b16 %v624
    %v1008 = vunpack.c.l.b16 %v625
    %v1009 = vunpack.c.h.b16 %v625
    %v1010 = vunpack.c.l.b16 %v626
    %v1011 = vunpack.c.h.b16 %v626
    %v1012 = vunpack.c.l.b16 %v627
    %v1013 = vunpack.c.h.b16 %v627
    %v1014 = vunpack.c.l.b16 %v628
    %v1015 = vunpack.c.h.b16 %v628
    %v1016 = vunpack.c.l.b16 %v629
    %v1017 = vunpack.c.h.b16 %v629
    %v1018 = vunpack.c.l.b16 %v630
    %v1019 = vunpack.c.h.b16 %v630
    %v1020 = vunpack.c.l.b16 %v631
    %v1021 = vunpack.c.h.b16 %v631
    %v1022 = vunpack.c.l.b16 %v632
    %v1023 = vunpack.c.h.b16 %v632
    %v1024 = vunpack.c.l.b16 %v633
    %v1025 = vunpack.c.h.b16 %v633
    %v1026 = vunpack.c.l.b16 %v634
    %v1027 = vunpack.c.h.b16 %v634
    %v1028 = vunpack.c.l.b16 %v635
    %v1029 = vunpack.c.h.b16 %v635
    %v1030 = vunpack.c.l.b16 %v636
    %v1031 = vunpack.c.h.b16 %v636
    %v1032 = vunpack.c.l.b16 %v637
    %v1033 = vunpack.c.h.b16 %v637
    %v1034 = vunpack.c.l.b16 %v638
    %v1035 = vunpack.c.h.b16 %v638
    %v1036 = vunpack.c.l.b16 %v639
    %v1037 = vunpack.c.h.b16 %v639
    %v1038 = vpack.c.b16 %v786, %v782
    %v1039 = vpack.c.b16 %v787, %v783
    %v1040 = vpack.c.b16 %v788, %v784
    %v1041 = vpack.c.b16 %v789, %v785
    %v1042 = vpack.c.b16 %v794, %v790
    %v1043 = vpack.c.b16 %v795, %v791
    %v1044 = vpack.c.b16 %v796, %v792
    %v1045 = vpack.c.b16 %v797, %v793
    %v1046 = vpack.c.b16 %v802, %v798
    %v1047 = vpack.c.b16 %v803, %v799
    %v1048 = vpack.c.b16 %v804, %v800
    %v1049 = vpack.c.b16 %v805, %v801
    %v1050 = vpack.c.b16 %v810, %v806
    %v1051 = vpack.c.b16 %v811, %v807
    %v1052 = vpack.c.b16 %v812, %v808
    %v1053 = vpack.c.b16 %v813, %v809
    %v1054 = vpack.c.b16 %v818, %v814
    %v1055 = vpack.c.b16 %v819, %v815
    %v1056 = vpack.c.b16 %v820, %v816
    %v1057 = vpack.c.b16 %v821, %v817
    %v1058 = vpack.c.b16 %v826, %v822
    %v1059 = vpack.c.b16 %v827, %v823
    %v1060 = vpack.c.b16 %v828, %v824
    %v1061 = vpack.c.b16 %v829, %v825
    %v1062 = vpack.c.b16 %v834, %v830
    %v1063 = vpack.c.b16 %v835, %v831
    %v1064 = vpack.c.b16 %v836, %v832
    %v1065 = vpack.c.b16 %v837, %v833
    %v1066 = vpack.c.b16 %v842, %v838
    %v1067 = vpack.c.b16 %v843, %v839
    %v1068 = vpack.c.b16 %v844, %v840
    %v1069 = vpack.c.b16 %v845, %v841
    %v1070 = vpack.c.b16 %v850, %v846
    %v1071 = vpack.c.b16 %v851, %v847
    %v1072 = vpack.c.b16 %v852, %v848
    %v1073 = vpack.c.b16 %v853, %v849
    %v1074 = vpack.c.b16 %v858, %v854
    %v1075 = vpack.c.b16 %v859, %v855
    %v1076 = vpack.c.b16 %v860, %v856
    %v1077 = vpack.c.b16 %v861, %v857
    %v1078 = vpack.c.b16 %v866, %v862
    %v1079 = vpack.c.b16 %v867, %v863
    %v1080 = vpack.c.b16 %v868, %v864
    %v1081 = vpack.c.b16 %v869, %v865
    %v1082 = vpack.c.b16 %v874, %v870
    %v1083 = vpack.c.b16 %v875, %v871
    %v1084 = vpack.c.b16 %v876, %v872
    %v1085 = vpack.c.b16 %v877, %v873
    %v1086 = vpack.c.b16 %v882, %v878
    %v1087 = vpack.c.b16 %v883, %v879
    %v1088 = vpack.c.b16 %v884, %v880
    %v1089 = vpack.c.b16 %v885, %v881
    %v1090 = vpack.c.b16 %v890, %v886
    %v1091 = vpack.c.b16 %v891, %v887
    %v1092 = vpack.c.b16 %v892, %v888
    %v1093 = vpack.c.b16 %v893, %v889
    %v1094 = vpack.c.b16 %v898, %v894
    %v1095 = vpack.c.b16 %v899, %v895
    %v1096 = vpack.c.b16 %v900, %v896
    %v1097 = vpack.c.b16 %v901, %v897
    %v1098 = vpack.c.b16 %v906, %v902
    %v1099 = vpack.c.b16 %v907, %v903
    %v1100 = vpack.c.b16 %v908, %v904
    %v1101 = vpack.c.b16 %v909, %v905
    %v1102 = vpack.c.b16 %v914, %v910
    %v1103 = vpack.c.b16 %v915, %v911
    %v1104 = vpack.c.b16 %v916, %v912
    %v1105 = vpack.c.b16 %v917, %v913
    %v1106 = vpack.c.b16 %v922, %v918
    %v1107 = vpack.c.b16 %v923, %v919
    %v1108 = vpack.c.b16 %v924, %v920
    %v1109 = vpack.c.b16 %v925, %v921
    %v1110 = vpack.c.b16 %v930, %v926
    %v1111 = vpack.c.b16 %v931, %v927
    %v1112 = vpack.c.b16 %v932, %v928
    %v1113 = vpack.c.b16 %v933, %v929
    %v1114 = vpack.c.b16 %v938, %v934
    %v1115 = vpack.c.b16 %v939, %v935
    %v1116 = vpack.c.b16 %v940, %v936
    %v1117 = vpack.c.b16 %v941, %v937
    %v1118 = vpack.c.b16 %v946, %v942
    %v1119 = vpack.c.b16 %v947, %v943
    %v1120 = vpack.c.b16 %v948, %v944
    %v1121 = vpack.c.b16 %v949, %v945
    %v1122 = vpack.c.b16 %v954, %v950
    %v1123 = vpack.c.b16 %v955, %v951
    %v1124 = vpack.c.b16 %v956, %v952
    %v1125 = vpack.c.b16 %v957, %v953
    %v1126 = vpack.c.b16 %v962, %v958
    %v1127 = vpack.c.b16 %v963, %v959
    %v1128 = vpack.c.b16 %v964, %v960
    %v1129 = vpack.c.b16 %v965, %v961
    %v1130 = vpack.c.b16 %v970, %v966
    %v1131 = vpack.c.b16 %v971, %v967
    %v1132 = vpack.c.b16 %v972, %v968
    %v1133 = vpack.c.b16 %v973, %v969
    %v1134 = vpack.c.b16 %v978, %v974
    %v1135 = vpack.c.b16 %v979, %v975
    %v1136 = vpack.c.b16 %v980, %v976
    %v1137 = vpack.c.b16 %v981, %v977
    %v1138 = vpack.c.b16 %v986, %v982
    %v1139 = vpack.c.b16 %v987, %v983
    %v1140 = vpack.c.b16 %v988, %v984
    %v1141 = vpack.c.b16 %v989, %v985
    %v1142 = vpack.c.b16 %v994, %v990
    %v1143 = vpack.c.b16 %v995, %v991
    %v1144 = vpack.c.b16 %v996, %v992
    %v1145 = vpack.c.b16 %v997, %v993
    %v1146 = vpack.c.b16 %v1002, %v998
    %v1147 = vpack.c.b16 %v1003, %v999
    %v1148 = vpack.c.b16 %v1004, %v1000
    %v1149 = vpack.c.b16 %v1005, %v1001
    %v1150 = vpack.c.b16 %v1010, %v1006
    %v1151 = vpack.c.b16 %v1011, %v1007
    %v1152 = vpack.c.b16 %v1012, %v1008
    %v1153 = vpack.c.b16 %v1013, %v1009
    %v1154 = vpack.c.b16 %v1018, %v1014
    %v1155 = vpack.c.b16 %v1019, %v1015
    %v1156 = vpack.c.b16 %v1020, %v1016
    %v1157 = vpack.c.b16 %v1021, %v1017
    %v1158 = vpack.c.b16 %v1026, %v1022
    %v1159 = vpack.c.b16 %v1027, %v1023
    %v1160 = vpack.c.b16 %v1028, %v1024
    %v1161 = vpack.c.b16 %v1029, %v1025
    %v1162 = vpack.c.b16 %v1034, %v1030
    %v1163 = vpack.c.b16 %v1035, %v1031
    %v1164 = vpack.c.b16 %v1036, %v1032
    %v1165 = vpack.c.b16 %v1037, %v1033
    %1294 = vmatpush.bf16.msra.mxu0 %v1066
    %1295 = vmatpush.bf16.msra.mxu0 %v1062
    %1296 = vmatpush.bf16.msra.mxu0 %v1058
    %1297 = vmatpush.bf16.msra.mxu0 %v1054
    %1298 = vmatpush.bf16.msra.mxu0 %v1050
    %1299 = vmatpush.bf16.msra.mxu0 %v1046
    %1300 = vmatpush.bf16.msra.mxu0 %v1042
    %1301 = vmatpush.bf16.msra.mxu0 %v1038
    %1302 = vmatmul.bf16.gmra.mxu0 %v640
    %v1303 = vpop.f32.mrf.mxu0
    %v1304 = vadd.f32 %v646, %v1303
    %v1305 = vpop.f32.mrf.mxu0
    %1306 = vdwg.mxu0
    %1307 = vmatpush.bf16.msra.mxu0 %v1098
    %1308 = vmatpush.bf16.msra.mxu0 %v1094
    %1309 = vmatpush.bf16.msra.mxu0 %v1090
    %1310 = vmatpush.bf16.msra.mxu0 %v1086
    %1311 = vmatpush.bf16.msra.mxu0 %v1082
    %1312 = vmatpush.bf16.msra.mxu0 %v1078
    %1313 = vmatpush.bf16.msra.mxu0 %v1074
    %1314 = vmatpush.bf16.msra.mxu0 %v1070
    %1315 = vmatmul.bf16.gmra.mxu0 %v641
    %v1316 = vpop.f32.mrf.mxu0
    %v1317 = vadd.f32 %v1304, %v1316
    %v1318 = vpop.f32.mrf.mxu0
    %1319 = vdwg.mxu0
    %1320 = vmatpush.bf16.msra.mxu0 %v1130
    %1321 = vmatpush.bf16.msra.mxu0 %v1126
    %1322 = vmatpush.bf16.msra.mxu0 %v1122
    %1323 = vmatpush.bf16.msra.mxu0 %v1118
    %1324 = vmatpush.bf16.msra.mxu0 %v1114
    %1325 = vmatpush.bf16.msra.mxu0 %v1110
    %1326 = vmatpush.bf16.msra.mxu0 %v1106
    %1327 = vmatpush.bf16.msra.mxu0 %v1102
    %1328 = vmatmul.bf16.gmra.mxu0 %v642
    %v1329 = vpop.f32.mrf.mxu0
    %v1330 = vadd.f32 %v1317, %v1329
    %v1331 = vpop.f32.mrf.mxu0
    %1332 = vdwg.mxu0
    %1333 = vmatpush.bf16.msra.mxu0 %v1162
    %1334 = vmatpush.bf16.msra.mxu0 %v1158
    %1335 = vmatpush.bf16.msra.mxu0 %v1154
    %1336 = vmatpush.bf16.msra.mxu0 %v1150
    %1337 = vmatpush.bf16.msra.mxu0 %v1146
    %1338 = vmatpush.bf16.msra.mxu0 %v1142
    %1339 = vmatpush.bf16.msra.mxu0 %v1138
    %1340 = vmatpush.bf16.msra.mxu0 %v1134
    %1341 = vmatmul.bf16.gmra.mxu0 %v643
    %v1342 = vpop.f32.mrf.mxu0
    %v1343 = vadd.f32 %v1330, %v1342
    %v1344 = vpop.f32.mrf.mxu0
    %1345 = vdwg.mxu0
    %1346 = vmatpush.bf16.msra.mxu0 %v1067
    %1347 = vmatpush.bf16.msra.mxu0 %v1063
    %1348 = vmatpush.bf16.msra.mxu0 %v1059
    %1349 = vmatpush.bf16.msra.mxu0 %v1055
    %1350 = vmatpush.bf16.msra.mxu0 %v1051
    %1351 = vmatpush.bf16.msra.mxu0 %v1047
    %1352 = vmatpush.bf16.msra.mxu0 %v1043
    %1353 = vmatpush.bf16.msra.mxu0 %v1039
    %1354 = vmatmul.bf16.gmra.mxu0 %v640
    %v1355 = vpop.f32.mrf.mxu0
    %v1356 = vadd.f32 %v647, %v1355
    %v1357 = vpop.f32.mrf.mxu0
    %1358 = vdwg.mxu0
    %1359 = vmatpush.bf16.msra.mxu0 %v1099
    %1360 = vmatpush.bf16.msra.mxu0 %v1095
    %1361 = vmatpush.bf16.msra.mxu0 %v1091
    %1362 = vmatpush.bf16.msra.mxu0 %v1087
    %1363 = vmatpush.bf16.msra.mxu0 %v1083
    %1364 = vmatpush.bf16.msra.mxu0 %v1079
    %1365 = vmatpush.bf16.msra.mxu0 %v1075
    %1366 = vmatpush.bf16.msra.mxu0 %v1071
    %1367 = vmatmul.bf16.gmra.mxu0 %v641
    %v1368 = vpop.f32.mrf.mxu0
    %v1369 = vadd.f32 %v1356, %v1368
    %v1370 = vpop.f32.mrf.mxu0
    %1371 = vdwg.mxu0
    %1372 = vmatpush.bf16.msra.mxu0 %v1131
    %1373 = vmatpush.bf16.msra.mxu0 %v1127
    %1374 = vmatpush.bf16.msra.mxu0 %v1123
    %1375 = vmatpush.bf16.msra.mxu0 %v1119
    %1376 = vmatpush.bf16.msra.mxu0 %v1115
    %1377 = vmatpush.bf16.msra.mxu0 %v1111
    %1378 = vmatpush.bf16.msra.mxu0 %v1107
    %1379 = vmatpush.bf16.msra.mxu0 %v1103
    %1380 = vmatmul.bf16.gmra.mxu0 %v642
    %v1381 = vpop.f32.mrf.mxu0
    %v1382 = vadd.f32 %v1369, %v1381
    %v1383 = vpop.f32.mrf.mxu0
    %1384 = vdwg.mxu0
    %1385 = vmatpush.bf16.msra.mxu0 %v1163
    %1386 = vmatpush.bf16.msra.mxu0 %v1159
    %1387 = vmatpush.bf16.msra.mxu0 %v1155
    %1388 = vmatpush.bf16.msra.mxu0 %v1151
    %1389 = vmatpush.bf16.msra.mxu0 %v1147
    %1390 = vmatpush.bf16.msra.mxu0 %v1143
    %1391 = vmatpush.bf16.msra.mxu0 %v1139
    %1392 = vmatpush.bf16.msra.mxu0 %v1135
    %1393 = vmatmul.bf16.gmra.mxu0 %v643
    %v1394 = vpop.f32.mrf.mxu0
    %v1395 = vadd.f32 %v1382, %v1394
    %v1396 = vpop.f32.mrf.mxu0
    %1397 = vdwg.mxu0
    %1398 = vmatpush.bf16.msra.mxu0 %v1068
    %1399 = vmatpush.bf16.msra.mxu0 %v1064
    %1400 = vmatpush.bf16.msra.mxu0 %v1060
    %1401 = vmatpush.bf16.msra.mxu0 %v1056
    %1402 = vmatpush.bf16.msra.mxu0 %v1052
    %1403 = vmatpush.bf16.msra.mxu0 %v1048
    %1404 = vmatpush.bf16.msra.mxu0 %v1044
    %1405 = vmatpush.bf16.msra.mxu0 %v1040
    %1406 = vmatmul.bf16.gmra.mxu0 %v640
    %v1407 = vpop.f32.mrf.mxu0
    %v1408 = vadd.f32 %v648, %v1407
    %v1409 = vpop.f32.mrf.mxu0
    %1410 = vdwg.mxu0
    %1411 = vmatpush.bf16.msra.mxu0 %v1100
    %1412 = vmatpush.bf16.msra.mxu0 %v1096
    %1413 = vmatpush.bf16.msra.mxu0 %v1092
    %1414 = vmatpush.bf16.msra.mxu0 %v1088
    %1415 = vmatpush.bf16.msra.mxu0 %v1084
    %1416 = vmatpush.bf16.msra.mxu0 %v1080
    %1417 = vmatpush.bf16.msra.mxu0 %v1076
    %1418 = vmatpush.bf16.msra.mxu0 %v1072
    %1419 = vmatmul.bf16.gmra.mxu0 %v641
    %v1420 = vpop.f32.mrf.mxu0
    %v1421 = vadd.f32 %v1408, %v1420
    %v1422 = vpop.f32.mrf.mxu0
    %1423 = vdwg.mxu0
    %1424 = vmatpush.bf16.msra.mxu0 %v1132
    %1425 = vmatpush.bf16.msra.mxu0 %v1128
    %1426 = vmatpush.bf16.msra.mxu0 %v1124
    %1427 = vmatpush.bf16.msra.mxu0 %v1120
    %1428 = vmatpush.bf16.msra.mxu0 %v1116
    %1429 = vmatpush.bf16.msra.mxu0 %v1112
    %1430 = vmatpush.bf16.msra.mxu0 %v1108
    %1431 = vmatpush.bf16.msra.mxu0 %v1104
    %1432 = vmatmul.bf16.gmra.mxu0 %v642
    %v1433 = vpop.f32.mrf.mxu0
    %v1434 = vadd.f32 %v1421, %v1433
    %v1435 = vpop.f32.mrf.mxu0
    %1436 = vdwg.mxu0
    %1437 = vmatpush.bf16.msra.mxu0 %v1164
    %1438 = vmatpush.bf16.msra.mxu0 %v1160
    %1439 = vmatpush.bf16.msra.mxu0 %v1156
    %1440 = vmatpush.bf16.msra.mxu0 %v1152
    %1441 = vmatpush.bf16.msra.mxu0 %v1148
    %1442 = vmatpush.bf16.msra.mxu0 %v1144
    %1443 = vmatpush.bf16.msra.mxu0 %v1140
    %1444 = vmatpush.bf16.msra.mxu0 %v1136
    %1445 = vmatmul.bf16.gmra.mxu0 %v643
    %v1446 = vpop.f32.mrf.mxu0
    %v1447 = vadd.f32 %v1434, %v1446
    %v1448 = vpop.f32.mrf.mxu0
    %1449 = vdwg.mxu0
    %1450 = vmatpush.bf16.msra.mxu0 %v1069
    %1451 = vmatpush.bf16.msra.mxu0 %v1065
    %1452 = vmatpush.bf16.msra.mxu0 %v1061
    %1453 = vmatpush.bf16.msra.mxu0 %v1057
    %1454 = vmatpush.bf16.msra.mxu0 %v1053
    %1455 = vmatpush.bf16.msra.mxu0 %v1049
    %1456 = vmatpush.bf16.msra.mxu0 %v1045
    %1457 = vmatpush.bf16.msra.mxu0 %v1041
    %1458 = vmatmul.bf16.gmra.mxu0 %v640
    %v1459 = vpop.f32.mrf.mxu0
    %v1460 = vadd.f32 %v649, %v1459
    %v1461 = vpop.f32.mrf.mxu0
    %1462 = vdwg.mxu0
    %1463 = vmatpush.bf16.msra.mxu0 %v1101
    %1464 = vmatpush.bf16.msra.mxu0 %v1097
    %1465 = vmatpush.bf16.msra.mxu0 %v1093
    %1466 = vmatpush.bf16.msra.mxu0 %v1089
    %1467 = vmatpush.bf16.msra.mxu0 %v1085
    %1468 = vmatpush.bf16.msra.mxu0 %v1081
    %1469 = vmatpush.bf16.msra.mxu0 %v1077
    %1470 = vmatpush.bf16.msra.mxu0 %v1073
    %1471 = vmatmul.bf16.gmra.mxu0 %v641
    %v1472 = vpop.f32.mrf.mxu0
    %v1473 = vadd.f32 %v1460, %v1472
    %v1474 = vpop.f32.mrf.mxu0
    %1475 = vdwg.mxu0
    %1476 = vmatpush.bf16.msra.mxu0 %v1133
    %1477 = vmatpush.bf16.msra.mxu0 %v1129
    %1478 = vmatpush.bf16.msra.mxu0 %v1125
    %1479 = vmatpush.bf16.msra.mxu0 %v1121
    %1480 = vmatpush.bf16.msra.mxu0 %v1117
    %1481 = vmatpush.bf16.msra.mxu0 %v1113
    %1482 = vmatpush.bf16.msra.mxu0 %v1109
    %1483 = vmatpush.bf16.msra.mxu0 %v1105
    %1484 = vmatmul.bf16.gmra.mxu0 %v642
    %v1485 = vpop.f32.mrf.mxu0
    %v1486 = vadd.f32 %v1473, %v1485
    %v1487 = vpop.f32.mrf.mxu0
    %1488 = vdwg.mxu0
    %1489 = vmatpush.bf16.msra.mxu0 %v1165
    %1490 = vmatpush.bf16.msra.mxu0 %v1161
    %1491 = vmatpush.bf16.msra.mxu0 %v1157
    %1492 = vmatpush.bf16.msra.mxu0 %v1153
    %1493 = vmatpush.bf16.msra.mxu0 %v1149
    %1494 = vmatpush.bf16.msra.mxu0 %v1145
    %1495 = vmatpush.bf16.msra.mxu0 %v1141
    %1496 = vmatpush.bf16.msra.mxu0 %v1137
    %1497 = vmatmul.bf16.gmra.mxu0 %v643
    %v1498 = vpop.f32.mrf.mxu0
    %v1499 = vadd.f32 %v1486, %v1498
    %v1500 = vpop.f32.mrf.mxu0
    %1501 = vdwg.mxu0
    %v1502 = vld [vmem:[#allocation7] sm:$0xff]
    %v1503 = vld [vmem:[#allocation7 + $0x8] sm:$0xff]
    %v1504 = vld [vmem:[#allocation7 + $0x10] sm:$0xff]
    %v1505 = vld [vmem:[#allocation7 + $0x18] sm:$0xff]
    %v1506 = vld [vmem:[#allocation7 + $0x20] sm:$0xff]
    %v1507 = vld [vmem:[#allocation7 + $0x28] sm:$0xff]
    %v1508 = vld [vmem:[#allocation7 + $0x30] sm:$0xff]
    %v1509 = vld [vmem:[#allocation7 + $0x38] sm:$0xff]
    %v1510 = vld [vmem:[#allocation7 + $0x40] sm:$0xff]
    %v1511 = vld [vmem:[#allocation7 + $0x48] sm:$0xff]
    %v1512 = vld [vmem:[#allocation7 + $0x50] sm:$0xff]
    %v1513 = vld [vmem:[#allocation7 + $0x58] sm:$0xff]
    %v1514 = vld [vmem:[#allocation7 + $0x60] sm:$0xff]
    %v1515 = vld [vmem:[#allocation7 + $0x68] sm:$0xff]
    %v1516 = vld [vmem:[#allocation7 + $0x70] sm:$0xff]
    %v1517 = vld [vmem:[#allocation7 + $0x78] sm:$0xff]
    %v1518 = vld [vmem:[#allocation7 + $0x80] sm:$0xff]
    %v1519 = vld [vmem:[#allocation7 + $0x88] sm:$0xff]
    %v1520 = vld [vmem:[#allocation7 + $0x90] sm:$0xff]
    %v1521 = vld [vmem:[#allocation7 + $0x98] sm:$0xff]
    %v1522 = vld [vmem:[#allocation7 + $0xa0] sm:$0xff]
    %v1523 = vld [vmem:[#allocation7 + $0xa8] sm:$0xff]
    %v1524 = vld [vmem:[#allocation7 + $0xb0] sm:$0xff]
    %v1525 = vld [vmem:[#allocation7 + $0xb8] sm:$0xff]
    %v1526 = vld [vmem:[#allocation7 + $0xc0] sm:$0xff]
    %v1527 = vld [vmem:[#allocation7 + $0xc8] sm:$0xff]
    %v1528 = vld [vmem:[#allocation7 + $0xd0] sm:$0xff]
    %v1529 = vld [vmem:[#allocation7 + $0xd8] sm:$0xff]
    %v1530 = vld [vmem:[#allocation7 + $0xe0] sm:$0xff]
    %v1531 = vld [vmem:[#allocation7 + $0xe8] sm:$0xff]
    %v1532 = vld [vmem:[#allocation7 + $0xf0] sm:$0xff]
    %v1533 = vld [vmem:[#allocation7 + $0xf8] sm:$0xff]
    %v1534 = vld [vmem:[#allocation7 + $0x100] sm:$0xff]
    %v1535 = vld [vmem:[#allocation7 + $0x108] sm:$0xff]
    %v1536 = vld [vmem:[#allocation7 + $0x110] sm:$0xff]
    %v1537 = vld [vmem:[#allocation7 + $0x118] sm:$0xff]
    %v1538 = vld [vmem:[#allocation7 + $0x120] sm:$0xff]
    %v1539 = vld [vmem:[#allocation7 + $0x128] sm:$0xff]
    %v1540 = vld [vmem:[#allocation7 + $0x130] sm:$0xff]
    %v1541 = vld [vmem:[#allocation7 + $0x138] sm:$0xff]
    %v1542 = vld [vmem:[#allocation7 + $0x140] sm:$0xff]
    %v1543 = vld [vmem:[#allocation7 + $0x148] sm:$0xff]
    %v1544 = vld [vmem:[#allocation7 + $0x150] sm:$0xff]
    %v1545 = vld [vmem:[#allocation7 + $0x158] sm:$0xff]
    %v1546 = vld [vmem:[#allocation7 + $0x160] sm:$0xff]
    %v1547 = vld [vmem:[#allocation7 + $0x168] sm:$0xff]
    %v1548 = vld [vmem:[#allocation7 + $0x170] sm:$0xff]
    %v1549 = vld [vmem:[#allocation7 + $0x178] sm:$0xff]
    %v1550 = vld [vmem:[#allocation7 + $0x180] sm:$0xff]
    %v1551 = vld [vmem:[#allocation7 + $0x188] sm:$0xff]
    %v1552 = vld [vmem:[#allocation7 + $0x190] sm:$0xff]
    %v1553 = vld [vmem:[#allocation7 + $0x198] sm:$0xff]
    %v1554 = vld [vmem:[#allocation7 + $0x1a0] sm:$0xff]
    %v1555 = vld [vmem:[#allocation7 + $0x1a8] sm:$0xff]
    %v1556 = vld [vmem:[#allocation7 + $0x1b0] sm:$0xff]
    %v1557 = vld [vmem:[#allocation7 + $0x1b8] sm:$0xff]
    %v1558 = vld [vmem:[#allocation7 + $0x1c0] sm:$0xff]
    %v1559 = vld [vmem:[#allocation7 + $0x1c8] sm:$0xff]
    %v1560 = vld [vmem:[#allocation7 + $0x1d0] sm:$0xff]
    %v1561 = vld [vmem:[#allocation7 + $0x1d8] sm:$0xff]
    %v1562 = vld [vmem:[#allocation7 + $0x1e0] sm:$0xff]
    %v1563 = vld [vmem:[#allocation7 + $0x1e8] sm:$0xff]
    %v1564 = vld [vmem:[#allocation7 + $0x1f0] sm:$0xff]
    %v1565 = vld [vmem:[#allocation7 + $0x1f8] sm:$0xff]
    %v1566 = vpack.c.bf16 %v1343, %v1343
    %v1567 = vpack.c.bf16 %v1395, %v1395
    %v1568 = vpack.c.bf16 %v1447, %v1447
    %v1569 = vpack.c.bf16 %v1499, %v1499
    %v1570 = vld [vmem:[%s1 + $0x12] sm:$0x3]
    %v1572 = vperm.slane %v1570, 0
    %v1573 = vperm.slane %v1570, 1
    %v1640 = vunpack.c.l.b16 %v1502
    %v1641 = vunpack.c.h.b16 %v1502
    %v1642 = vunpack.c.l.b16 %v1503
    %v1643 = vunpack.c.h.b16 %v1503
    %v1644 = vunpack.c.l.b16 %v1504
    %v1645 = vunpack.c.h.b16 %v1504
    %v1646 = vunpack.c.l.b16 %v1505
    %v1647 = vunpack.c.h.b16 %v1505
    %v1648 = vunpack.c.l.b16 %v1506
    %v1649 = vunpack.c.h.b16 %v1506
    %v1650 = vunpack.c.l.b16 %v1507
    %v1651 = vunpack.c.h.b16 %v1507
    %v1652 = vunpack.c.l.b16 %v1508
    %v1653 = vunpack.c.h.b16 %v1508
    %v1654 = vunpack.c.l.b16 %v1509
    %v1655 = vunpack.c.h.b16 %v1509
    %v1656 = vunpack.c.l.b16 %v1510
    %v1657 = vunpack.c.h.b16 %v1510
    %v1658 = vunpack.c.l.b16 %v1511
    %v1659 = vunpack.c.h.b16 %v1511
    %v1660 = vunpack.c.l.b16 %v1512
    %v1661 = vunpack.c.h.b16 %v1512
    %v1662 = vunpack.c.l.b16 %v1513
    %v1663 = vunpack.c.h.b16 %v1513
    %v1664 = vunpack.c.l.b16 %v1514
    %v1665 = vunpack.c.h.b16 %v1514
    %v1666 = vunpack.c.l.b16 %v1515
    %v1667 = vunpack.c.h.b16 %v1515
    %v1668 = vunpack.c.l.b16 %v1516
    %v1669 = vunpack.c.h.b16 %v1516
    %v1670 = vunpack.c.l.b16 %v1517
    %v1671 = vunpack.c.h.b16 %v1517
    %v1672 = vunpack.c.l.b16 %v1518
    %v1673 = vunpack.c.h.b16 %v1518
    %v1674 = vunpack.c.l.b16 %v1519
    %v1675 = vunpack.c.h.b16 %v1519
    %v1676 = vunpack.c.l.b16 %v1520
    %v1677 = vunpack.c.h.b16 %v1520
    %v1678 = vunpack.c.l.b16 %v1521
    %v1679 = vunpack.c.h.b16 %v1521
    %v1680 = vunpack.c.l.b16 %v1522
    %v1681 = vunpack.c.h.b16 %v1522
    %v1682 = vunpack.c.l.b16 %v1523
    %v1683 = vunpack.c.h.b16 %v1523
    %v1684 = vunpack.c.l.b16 %v1524
    %v1685 = vunpack.c.h.b16 %v1524
    %v1686 = vunpack.c.l.b16 %v1525
    %v1687 = vunpack.c.h.b16 %v1525
    %v1688 = vunpack.c.l.b16 %v1526
    %v1689 = vunpack.c.h.b16 %v1526
    %v1690 = vunpack.c.l.b16 %v1527
    %v1691 = vunpack.c.h.b16 %v1527
    %v1692 = vunpack.c.l.b16 %v1528
    %v1693 = vunpack.c.h.b16 %v1528
    %v1694 = vunpack.c.l.b16 %v1529
    %v1695 = vunpack.c.h.b16 %v1529
    %v1696 = vunpack.c.l.b16 %v1530
    %v1697 = vunpack.c.h.b16 %v1530
    %v1698 = vunpack.c.l.b16 %v1531
    %v1699 = vunpack.c.h.b16 %v1531
    %v1700 = vunpack.c.l.b16 %v1532
    %v1701 = vunpack.c.h.b16 %v1532
    %v1702 = vunpack.c.l.b16 %v1533
    %v1703 = vunpack.c.h.b16 %v1533
    %v1704 = vunpack.c.l.b16 %v1534
    %v1705 = vunpack.c.h.b16 %v1534
    %v1706 = vunpack.c.l.b16 %v1535
    %v1707 = vunpack.c.h.b16 %v1535
    %v1708 = vunpack.c.l.b16 %v1536
    %v1709 = vunpack.c.h.b16 %v1536
    %v1710 = vunpack.c.l.b16 %v1537
    %v1711 = vunpack.c.h.b16 %v1537
    %v1712 = vunpack.c.l.b16 %v1538
    %v1713 = vunpack.c.h.b16 %v1538
    %v1714 = vunpack.c.l.b16 %v1539
    %v1715 = vunpack.c.h.b16 %v1539
    %v1716 = vunpack.c.l.b16 %v1540
    %v1717 = vunpack.c.h.b16 %v1540
    %v1718 = vunpack.c.l.b16 %v1541
    %v1719 = vunpack.c.h.b16 %v1541
    %v1720 = vunpack.c.l.b16 %v1542
    %v1721 = vunpack.c.h.b16 %v1542
    %v1722 = vunpack.c.l.b16 %v1543
    %v1723 = vunpack.c.h.b16 %v1543
    %v1724 = vunpack.c.l.b16 %v1544
    %v1725 = vunpack.c.h.b16 %v1544
    %v1726 = vunpack.c.l.b16 %v1545
    %v1727 = vunpack.c.h.b16 %v1545
    %v1728 = vunpack.c.l.b16 %v1546
    %v1729 = vunpack.c.h.b16 %v1546
    %v1730 = vunpack.c.l.b16 %v1547
    %v1731 = vunpack.c.h.b16 %v1547
    %v1732 = vunpack.c.l.b16 %v1548
    %v1733 = vunpack.c.h.b16 %v1548
    %v1734 = vunpack.c.l.b16 %v1549
    %v1735 = vunpack.c.h.b16 %v1549
    %v1736 = vunpack.c.l.b16 %v1550
    %v1737 = vunpack.c.h.b16 %v1550
    %v1738 = vunpack.c.l.b16 %v1551
    %v1739 = vunpack.c.h.b16 %v1551
    %v1740 = vunpack.c.l.b16 %v1552
    %v1741 = vunpack.c.h.b16 %v1552
    %v1742 = vunpack.c.l.b16 %v1553
    %v1743 = vunpack.c.h.b16 %v1553
    %v1744 = vunpack.c.l.b16 %v1554
    %v1745 = vunpack.c.h.b16 %v1554
    %v1746 = vunpack.c.l.b16 %v1555
    %v1747 = vunpack.c.h.b16 %v1555
    %v1748 = vunpack.c.l.b16 %v1556
    %v1749 = vunpack.c.h.b16 %v1556
    %v1750 = vunpack.c.l.b16 %v1557
    %v1751 = vunpack.c.h.b16 %v1557
    %v1752 = vunpack.c.l.b16 %v1558
    %v1753 = vunpack.c.h.b16 %v1558
    %v1754 = vunpack.c.l.b16 %v1559
    %v1755 = vunpack.c.h.b16 %v1559
    %v1756 = vunpack.c.l.b16 %v1560
    %v1757 = vunpack.c.h.b16 %v1560
    %v1758 = vunpack.c.l.b16 %v1561
    %v1759 = vunpack.c.h.b16 %v1561
    %v1760 = vunpack.c.l.b16 %v1562
    %v1761 = vunpack.c.h.b16 %v1562
    %v1762 = vunpack.c.l.b16 %v1563
    %v1763 = vunpack.c.h.b16 %v1563
    %v1764 = vunpack.c.l.b16 %v1564
    %v1765 = vunpack.c.h.b16 %v1564
    %v1766 = vunpack.c.l.b16 %v1565
    %v1767 = vunpack.c.h.b16 %v1565
    %v1768 = vpack.c.b16 %v1642, %v1640
    %v1769 = vpack.c.b16 %v1643, %v1641
    %v1770 = vpack.c.b16 %v1646, %v1644
    %v1771 = vpack.c.b16 %v1647, %v1645
    %v1772 = vpack.c.b16 %v1650, %v1648
    %v1773 = vpack.c.b16 %v1651, %v1649
    %v1774 = vpack.c.b16 %v1654, %v1652
    %v1775 = vpack.c.b16 %v1655, %v1653
    %v1776 = vpack.c.b16 %v1658, %v1656
    %v1777 = vpack.c.b16 %v1659, %v1657
    %v1778 = vpack.c.b16 %v1662, %v1660
    %v1779 = vpack.c.b16 %v1663, %v1661
    %v1780 = vpack.c.b16 %v1666, %v1664
    %v1781 = vpack.c.b16 %v1667, %v1665
    %v1782 = vpack.c.b16 %v1670, %v1668
    %v1783 = vpack.c.b16 %v1671, %v1669
    %v1784 = vpack.c.b16 %v1674, %v1672
    %v1785 = vpack.c.b16 %v1675, %v1673
    %v1786 = vpack.c.b16 %v1678, %v1676
    %v1787 = vpack.c.b16 %v1679, %v1677
    %v1788 = vpack.c.b16 %v1682, %v1680
    %v1789 = vpack.c.b16 %v1683, %v1681
    %v1790 = vpack.c.b16 %v1686, %v1684
    %v1791 = vpack.c.b16 %v1687, %v1685
    %v1792 = vpack.c.b16 %v1690, %v1688
    %v1793 = vpack.c.b16 %v1691, %v1689
    %v1794 = vpack.c.b16 %v1694, %v1692
    %v1795 = vpack.c.b16 %v1695, %v1693
    %v1796 = vpack.c.b16 %v1698, %v1696
    %v1797 = vpack.c.b16 %v1699, %v1697
    %v1798 = vpack.c.b16 %v1702, %v1700
    %v1799 = vpack.c.b16 %v1703, %v1701
    %v1800 = vpack.c.b16 %v1706, %v1704
    %v1801 = vpack.c.b16 %v1707, %v1705
    %v1802 = vpack.c.b16 %v1710, %v1708
    %v1803 = vpack.c.b16 %v1711, %v1709
    %v1804 = vpack.c.b16 %v1714, %v1712
    %v1805 = vpack.c.b16 %v1715, %v1713
    %v1806 = vpack.c.b16 %v1718, %v1716
    %v1807 = vpack.c.b16 %v1719, %v1717
    %v1808 = vpack.c.b16 %v1722, %v1720
    %v1809 = vpack.c.b16 %v1723, %v1721
    %v1810 = vpack.c.b16 %v1726, %v1724
    %v1811 = vpack.c.b16 %v1727, %v1725
    %v1812 = vpack.c.b16 %v1730, %v1728
    %v1813 = vpack.c.b16 %v1731, %v1729
    %v1814 = vpack.c.b16 %v1734, %v1732
    %v1815 = vpack.c.b16 %v1735, %v1733
    %v1816 = vpack.c.b16 %v1738, %v1736
    %v1817 = vpack.c.b16 %v1739, %v1737
    %v1818 = vpack.c.b16 %v1742, %v1740
    %v1819 = vpack.c.b16 %v1743, %v1741
    %v1820 = vpack.c.b16 %v1746, %v1744
    %v1821 = vpack.c.b16 %v1747, %v1745
    %v1822 = vpack.c.b16 %v1750, %v1748
    %v1823 = vpack.c.b16 %v1751, %v1749
    %v1824 = vpack.c.b16 %v1754, %v1752
    %v1825 = vpack.c.b16 %v1755, %v1753
    %v1826 = vpack.c.b16 %v1758, %v1756
    %v1827 = vpack.c.b16 %v1759, %v1757
    %v1828 = vpack.c.b16 %v1762, %v1760
    %v1829 = vpack.c.b16 %v1763, %v1761
    %v1830 = vpack.c.b16 %v1766, %v1764
    %v1831 = vpack.c.b16 %v1767, %v1765
    %1896 = vmatpush.bf16.msra.mxu0 %v1782
    %1897 = vmatpush.bf16.msra.mxu0 %v1780
    %1898 = vmatpush.bf16.msra.mxu0 %v1778
    %1899 = vmatpush.bf16.msra.mxu0 %v1776
    %1900 = vmatpush.bf16.msra.mxu0 %v1774
    %1901 = vmatpush.bf16.msra.mxu0 %v1772
    %1902 = vmatpush.bf16.msra.mxu0 %v1770
    %1903 = vmatpush.bf16.msra.mxu0 %v1768
    %1904 = vmatmul.bf16.gmra.mxu0 %v1566
    %v1905 = vpop.f32.mrf.mxu0
    %v1906 = vadd.f32 %v1572, %v1905
    %v1907 = vpop.f32.mrf.mxu0
    %1908 = vdwg.mxu0
    %1909 = vmatpush.bf16.msra.mxu0 %v1798
    %1910 = vmatpush.bf16.msra.mxu0 %v1796
    %1911 = vmatpush.bf16.msra.mxu0 %v1794
    %1912 = vmatpush.bf16.msra.mxu0 %v1792
    %1913 = vmatpush.bf16.msra.mxu0 %v1790
    %1914 = vmatpush.bf16.msra.mxu0 %v1788
    %1915 = vmatpush.bf16.msra.mxu0 %v1786
    %1916 = vmatpush.bf16.msra.mxu0 %v1784
    %1917 = vmatmul.bf16.gmra.mxu0 %v1567
    %v1918 = vpop.f32.mrf.mxu0
    %v1919 = vadd.f32 %v1906, %v1918
    %v1920 = vpop.f32.mrf.mxu0
    %1921 = vdwg.mxu0
    %1922 = vmatpush.bf16.msra.mxu0 %v1814
    %1923 = vmatpush.bf16.msra.mxu0 %v1812
    %1924 = vmatpush.bf16.msra.mxu0 %v1810
    %1925 = vmatpush.bf16.msra.mxu0 %v1808
    %1926 = vmatpush.bf16.msra.mxu0 %v1806
    %1927 = vmatpush.bf16.msra.mxu0 %v1804
    %1928 = vmatpush.bf16.msra.mxu0 %v1802
    %1929 = vmatpush.bf16.msra.mxu0 %v1800
    %1930 = vmatmul.bf16.gmra.mxu0 %v1568
    %v1931 = vpop.f32.mrf.mxu0
    %v1932 = vadd.f32 %v1919, %v1931
    %v1933 = vpop.f32.mrf.mxu0
    %1934 = vdwg.mxu0
    %1935 = vmatpush.bf16.msra.mxu0 %v1830
    %1936 = vmatpush.bf16.msra.mxu0 %v1828
    %1937 = vmatpush.bf16.msra.mxu0 %v1826
    %1938 = vmatpush.bf16.msra.mxu0 %v1824
    %1939 = vmatpush.bf16.msra.mxu0 %v1822
    %1940 = vmatpush.bf16.msra.mxu0 %v1820
    %1941 = vmatpush.bf16.msra.mxu0 %v1818
    %1942 = vmatpush.bf16.msra.mxu0 %v1816
    %1943 = vmatmul.bf16.gmra.mxu0 %v1569
    %v1944 = vpop.f32.mrf.mxu0
    %v1945 = vadd.f32 %v1932, %v1944
    %v1946 = vpop.f32.mrf.mxu0
    %1947 = vdwg.mxu0
    %1948 = vmatpush.bf16.msra.mxu0 %v1783
    %1949 = vmatpush.bf16.msra.mxu0 %v1781
    %1950 = vmatpush.bf16.msra.mxu0 %v1779
    %1951 = vmatpush.bf16.msra.mxu0 %v1777
    %1952 = vmatpush.bf16.msra.mxu0 %v1775
    %1953 = vmatpush.bf16.msra.mxu0 %v1773
    %1954 = vmatpush.bf16.msra.mxu0 %v1771
    %1955 = vmatpush.bf16.msra.mxu0 %v1769
    %1956 = vmatmul.bf16.gmra.mxu0 %v1566
    %v1957 = vpop.f32.mrf.mxu0
    %v1958 = vadd.f32 %v1573, %v1957
    %v1959 = vpop.f32.mrf.mxu0
    %1960 = vdwg.mxu0
    %1961 = vmatpush.bf16.msra.mxu0 %v1799
    %1962 = vmatpush.bf16.msra.mxu0 %v1797
    %1963 = vmatpush.bf16.msra.mxu0 %v1795
    %1964 = vmatpush.bf16.msra.mxu0 %v1793
    %1965 = vmatpush.bf16.msra.mxu0 %v1791
    %1966 = vmatpush.bf16.msra.mxu0 %v1789
    %1967 = vmatpush.bf16.msra.mxu0 %v1787
    %1968 = vmatpush.bf16.msra.mxu0 %v1785
    %1969 = vmatmul.bf16.gmra.mxu0 %v1567
    %v1970 = vpop.f32.mrf.mxu0
    %v1971 = vadd.f32 %v1958, %v1970
    %v1972 = vpop.f32.mrf.mxu0
    %1973 = vdwg.mxu0
    %1974 = vmatpush.bf16.msra.mxu0 %v1815
    %1975 = vmatpush.bf16.msra.mxu0 %v1813
    %1976 = vmatpush.bf16.msra.mxu0 %v1811
    %1977 = vmatpush.bf16.msra.mxu0 %v1809
    %1978 = vmatpush.bf16.msra.mxu0 %v1807
    %1979 = vmatpush.bf16.msra.mxu0 %v1805
    %1980 = vmatpush.bf16.msra.mxu0 %v1803
    %1981 = vmatpush.bf16.msra.mxu0 %v1801
    %1982 = vmatmul.bf16.gmra.mxu0 %v1568
    %v1983 = vpop.f32.mrf.mxu0
    %v1984 = vadd.f32 %v1971, %v1983
    %v1985 = vpop.f32.mrf.mxu0
    %1986 = vdwg.mxu0
    %1987 = vmatpush.bf16.msra.mxu0 %v1831
    %1988 = vmatpush.bf16.msra.mxu0 %v1829
    %1989 = vmatpush.bf16.msra.mxu0 %v1827
    %1990 = vmatpush.bf16.msra.mxu0 %v1825
    %1991 = vmatpush.bf16.msra.mxu0 %v1823
    %1992 = vmatpush.bf16.msra.mxu0 %v1821
    %1993 = vmatpush.bf16.msra.mxu0 %v1819
    %1994 = vmatpush.bf16.msra.mxu0 %v1817
    %1995 = vmatmul.bf16.gmra.mxu0 %v1569
    %v1996 = vpop.f32.mrf.mxu0
    %v1997 = vadd.f32 %v1984, %v1996
    %v1998 = vpop.f32.mrf.mxu0
    %1999 = vdwg.mxu0
    %v2000 = vmul.f32 %v1945, 0.1
    %v2001 = vmul.f32 %v1997, 0.1
    %v2002 = vmax.f32 %v1945, %v2000
    %v2003 = vmax.f32 %v1997, %v2001
    %v2004 = vld [vmem:[%s1 + $0x14] sm:$0x3]
    %v2005 = vld [vmem:[%s1 + $0x16] sm:$0x3]
    %v2006 = vadd.f32 %v2002, %v2003
    %2007 = vadd.xlane.f32.xlu0 %v2006
    %v2008 = vpop.xlane.xlu0 %2007
    %v2009 = vrcp.pop 256.0
    %v2010 = vmul.f32 256.0, %v2009
    %v2011 = vsub.f32 1.0, %v2010
    %v2012 = vmul.f32 %v2009, %v2011
    %v2013 = vadd.f32 %v2009, %v2012
    %vm2014 = vweird.f32 %v2009
    %v2015 = vsel %vm2014, %v2009, %v2013
    %v2016 = vmul.f32 %v2008, %v2015
    %v2017 = vmul.f32 %v2002, %v2002
    %v2018 = vmul.f32 %v2003, %v2003
    %v2019 = vadd.f32 %v2017, %v2018
    %2020 = vadd.xlane.f32.xlu0 %v2019
    %v2021 = vpop.xlane.xlu0 %2020
    %v2022 = vmul.f32 %v2021, %v2015
    %v2023 = vmul.f32 %v2016, %v2016
    %v2024 = vsub.f32 %v2022, %v2023
    %v2025 = vmax.f32 %v2024, 0.0
    %v2026 = vsub.f32 %v2002, %v2016
    %v2027 = vsub.f32 %v2003, %v2016
    %v2028 = vadd.f32 %v2025, 1e-05
    %v2029 = vrsqrt.pop %v2028
    %v2030 = vmul.f32 %v2029, %v2028
    %v2031 = vmul.f32 %v2030, %v2029
    %v2032 = vmul.f32 0.5, %v2031
    %v2033 = vsub.f32 1.5, %v2032
    %v2034 = vmul.f32 %v2029, %v2033
    %vm2035 = vweird.f32 %v2028
    %vm2036 = vweird.f32 %v2029
    %vm2037 = vmor %vm2035, %vm2036
    %v2038 = vsel %vm2037, %v2029, %v2034
    %v2039 = vmul.f32 %v2026, %v2038
    %v2040 = vmul.f32 %v2027, %v2038
    %v2042 = vperm.slane %v2004, 0
    %v2043 = vperm.slane %v2004, 1
    %v2046 = vmul.f32 %v2039, %v2042
    %v2047 = vmul.f32 %v2040, %v2043
    %v2049 = vperm.slane %v2005, 0
    %v2050 = vperm.slane %v2005, 1
    %v2053 = vadd.f32 %v2046, %v2049
    %v2054 = vadd.f32 %v2047, %v2050
    %v2055 = vadd.f32 %v2053, %v1343
    %v2056 = vadd.f32 %v2054, %v1395
    %v2057 = vld [vmem:[%s5] sm:$0xf]
    %v2058 = vld [vmem:[%s5 + $0x4] sm:$0xf]
    %v2059 = vld [vmem:[%s5 + $0x8] sm:$0xf]
    %v2060 = vld [vmem:[%s5 + $0xc] sm:$0xf]
    %v2061 = vld [vmem:[%s5 + $0x10] sm:$0xf]
    %v2062 = vld [vmem:[%s5 + $0x14] sm:$0xf]
    %v2063 = vld [vmem:[%s5 + $0x18] sm:$0xf]
    %v2064 = vld [vmem:[%s5 + $0x1c] sm:$0xf]
    %v2065 = vld [vmem:[%s5 + $0x20] sm:$0xf]
    %v2066 = vld [vmem:[%s5 + $0x24] sm:$0xf]
    %v2067 = vld [vmem:[%s5 + $0x28] sm:$0xf]
    %v2068 = vld [vmem:[%s5 + $0x2c] sm:$0xf]
    %v2069 = vld [vmem:[%s5 + $0x30] sm:$0xf]
    %v2070 = vld [vmem:[%s5 + $0x34] sm:$0xf]
    %v2071 = vld [vmem:[%s5 + $0x38] sm:$0xf]
    %v2072 = vld [vmem:[%s5 + $0x3c] sm:$0xf]
    %v2073 = vld [vmem:[%s5 + $0x40] sm:$0xf]
    %v2074 = vld [vmem:[%s5 + $0x44] sm:$0xf]
    %v2075 = vld [vmem:[%s5 + $0x48] sm:$0xf]
    %v2076 = vld [vmem:[%s5 + $0x4c] sm:$0xf]
    %v2077 = vld [vmem:[%s5 + $0x50] sm:$0xf]
    %v2078 = vld [vmem:[%s5 + $0x54] sm:$0xf]
    %v2079 = vld [vmem:[%s5 + $0x58] sm:$0xf]
    %v2080 = vld [vmem:[%s5 + $0x5c] sm:$0xf]
    %v2081 = vld [vmem:[%s5 + $0x60] sm:$0xf]
    %v2082 = vld [vmem:[%s5 + $0x64] sm:$0xf]
    %v2083 = vld [vmem:[%s5 + $0x68] sm:$0xf]
    %v2084 = vld [vmem:[%s5 + $0x6c] sm:$0xf]
    %v2085 = vld [vmem:[%s5 + $0x70] sm:$0xf]
    %v2086 = vld [vmem:[%s5 + $0x74] sm:$0xf]
    %v2087 = vld [vmem:[%s5 + $0x78] sm:$0xf]
    %v2088 = vld [vmem:[%s5 + $0x7c] sm:$0xf]
    %v2089 = vpack.c.bf16 %v2055, %v2055
    %v2090 = vpack.c.bf16 %v2056, %v2056
    %v2091 = vld [vmem:[%s1 + $0x18] sm:$0x1]
    %v2093 = vperm.slane %v2091, 0
    %v2127 = vunpack.c.l.b16 %v2057
    %v2128 = vunpack.c.l.b16 %v2058
    %v2129 = vunpack.c.l.b16 %v2059
    %v2130 = vunpack.c.l.b16 %v2060
    %v2131 = vunpack.c.l.b16 %v2061
    %v2132 = vunpack.c.l.b16 %v2062
    %v2133 = vunpack.c.l.b16 %v2063
    %v2134 = vunpack.c.l.b16 %v2064
    %v2135 = vunpack.c.l.b16 %v2065
    %v2136 = vunpack.c.l.b16 %v2066
    %v2137 = vunpack.c.l.b16 %v2067
    %v2138 = vunpack.c.l.b16 %v2068
    %v2139 = vunpack.c.l.b16 %v2069
    %v2140 = vunpack.c.l.b16 %v2070
    %v2141 = vunpack.c.l.b16 %v2071
    %v2142 = vunpack.c.l.b16 %v2072
    %v2143 = vunpack.c.l.b16 %v2073
    %v2144 = vunpack.c.l.b16 %v2074
    %v2145 = vunpack.c.l.b16 %v2075
    %v2146 = vunpack.c.l.b16 %v2076
    %v2147 = vunpack.c.l.b16 %v2077
    %v2148 = vunpack.c.l.b16 %v2078
    %v2149 = vunpack.c.l.b16 %v2079
    %v2150 = vunpack.c.l.b16 %v2080
    %v2151 = vunpack.c.l.b16 %v2081
    %v2152 = vunpack.c.l.b16 %v2082
    %v2153 = vunpack.c.l.b16 %v2083
    %v2154 = vunpack.c.l.b16 %v2084
    %v2155 = vunpack.c.l.b16 %v2085
    %v2156 = vunpack.c.l.b16 %v2086
    %v2157 = vunpack.c.l.b16 %v2087
    %v2158 = vunpack.c.l.b16 %v2088
    %v2159 = vpack.c.b16 %v2128, %v2127
    %v2160 = vpack.c.b16 %v2130, %v2129
    %v2161 = vpack.c.b16 %v2132, %v2131
    %v2162 = vpack.c.b16 %v2134, %v2133
    %v2163 = vpack.c.b16 %v2136, %v2135
    %v2164 = vpack.c.b16 %v2138, %v2137
    %v2165 = vpack.c.b16 %v2140, %v2139
    %v2166 = vpack.c.b16 %v2142, %v2141
    %v2167 = vpack.c.b16 %v2144, %v2143
    %v2168 = vpack.c.b16 %v2146, %v2145
    %v2169 = vpack.c.b16 %v2148, %v2147
    %v2170 = vpack.c.b16 %v2150, %v2149
    %v2171 = vpack.c.b16 %v2152, %v2151
    %v2172 = vpack.c.b16 %v2154, %v2153
    %v2173 = vpack.c.b16 %v2156, %v2155
    %v2174 = vpack.c.b16 %v2158, %v2157
    %2191 = vmatpush.bf16.msra.mxu0 %v2166
    %2192 = vmatpush.bf16.msra.mxu0 %v2165
    %2193 = vmatpush.bf16.msra.mxu0 %v2164
    %2194 = vmatpush.bf16.msra.mxu0 %v2163
    %2195 = vmatpush.bf16.msra.mxu0 %v2162
    %2196 = vmatpush.bf16.msra.mxu0 %v2161
    %2197 = vmatpush.bf16.msra.mxu0 %v2160
    %2198 = vmatpush.bf16.msra.mxu0 %v2159
    %2199 = vmatmul.bf16.gmra.mxu0 %v2089
    %v2200 = vpop.f32.mrf.mxu0
    %v2201 = vadd.f32 %v2093, %v2200
    %v2202 = vpop.f32.mrf.mxu0
    %2203 = vdwg.mxu0
    %2204 = vmatpush.bf16.msra.mxu0 %v2174
    %2205 = vmatpush.bf16.msra.mxu0 %v2173
    %2206 = vmatpush.bf16.msra.mxu0 %v2172
    %2207 = vmatpush.bf16.msra.mxu0 %v2171
    %2208 = vmatpush.bf16.msra.mxu0 %v2170
    %2209 = vmatpush.bf16.msra.mxu0 %v2169
    %2210 = vmatpush.bf16.msra.mxu0 %v2168
    %2211 = vmatpush.bf16.msra.mxu0 %v2167
    %2212 = vmatmul.bf16.gmra.mxu0 %v2090
    %v2213 = vpop.f32.mrf.mxu0
    %v2214 = vadd.f32 %v2201, %v2213
    %v2215 = vpop.f32.mrf.mxu0
    %2216 = vdwg.mxu0
    %v2217 = vmul.f32 %v2214, 0.1
    %v2218 = vmax.f32 %v2214, %v2217
    %v2219 = vld [vmem:[%s1 + $0x19] sm:$0x1]
    %v2220 = vld [vmem:[%s1 + $0x1a] sm:$0x1]
    %2221 = vadd.xlane.f32.xlu0 %v2218
    %v2222 = vpop.xlane.xlu0 %2221
    %v2223 = vmul.f32 %v2222, %v146
    %v2224 = vmul.f32 %v2218, %v2218
    %2225 = vadd.xlane.f32.xlu0 %v2224
    %v2226 = vpop.xlane.xlu0 %2225
    %v2227 = vmul.f32 %v2226, %v146
    %v2228 = vmul.f32 %v2223, %v2223
    %v2229 = vsub.f32 %v2227, %v2228
    %v2230 = vmax.f32 %v2229, 0.0
    %v2231 = vsub.f32 %v2218, %v2223
    %v2232 = vadd.f32 %v2230, 1e-05
    %v2233 = vrsqrt.pop %v2232
    %v2234 = vmul.f32 %v2233, %v2232
    %v2235 = vmul.f32 %v2234, %v2233
    %v2236 = vmul.f32 0.5, %v2235
    %v2237 = vsub.f32 1.5, %v2236
    %v2238 = vmul.f32 %v2233, %v2237
    %vm2239 = vweird.f32 %v2232
    %vm2240 = vweird.f32 %v2233
    %vm2241 = vmor %vm2239, %vm2240
    %v2242 = vsel %vm2241, %v2233, %v2238
    %v2243 = vmul.f32 %v2231, %v2242
    %v2245 = vperm.slane %v2219, 0
    %v2247 = vmul.f32 %v2243, %v2245
    %v2249 = vperm.slane %v2220, 0
    %v2251 = vadd.f32 %v2247, %v2249
    %v2252 = vadd.f32 %v2251, %v2055
    %v2253 = vld [vmem:[%s6] sm:$0xff]
    %v2254 = vld [vmem:[%s6 + $0x8] sm:$0xff]
    %v2255 = vld [vmem:[%s6 + $0x10] sm:$0xff]
    %v2256 = vld [vmem:[%s6 + $0x18] sm:$0xff]
    %v2257 = vld [vmem:[%s6 + $0x20] sm:$0xff]
    %v2258 = vld [vmem:[%s6 + $0x28] sm:$0xff]
    %v2259 = vld [vmem:[%s6 + $0x30] sm:$0xff]
    %v2260 = vld [vmem:[%s6 + $0x38] sm:$0xff]
    %v2261 = vld [vmem:[%s6 + $0x40] sm:$0xff]
    %v2262 = vld [vmem:[%s6 + $0x48] sm:$0xff]
    %v2263 = vld [vmem:[%s6 + $0x50] sm:$0xff]
    %v2264 = vld [vmem:[%s6 + $0x58] sm:$0xff]
    %v2265 = vld [vmem:[%s6 + $0x60] sm:$0xff]
    %v2266 = vld [vmem:[%s6 + $0x68] sm:$0xff]
    %v2267 = vld [vmem:[%s6 + $0x70] sm:$0xff]
    %v2268 = vld [vmem:[%s6 + $0x78] sm:$0xff]
    %v2269 = vld [vmem:[%s1 + $0x1b] sm:$0x1]
    %v2271 = vperm.slane %v2269, 0
    %2273 = vmatpush.msra.mxu0 %v2268
    %2274 = vmatpush.msra.mxu0 %v2267
    %2275 = vmatpush.msra.mxu0 %v2266
    %2276 = vmatpush.msra.mxu0 %v2265
    %2277 = vmatpush.msra.mxu0 %v2264
    %2278 = vmatpush.msra.mxu0 %v2263
    %2279 = vmatpush.msra.mxu0 %v2262
    %2280 = vmatpush.msra.mxu0 %v2261
    %2281 = vmatpush.msra.mxu0 %v2260
    %2282 = vmatpush.msra.mxu0 %v2259
    %2283 = vmatpush.msra.mxu0 %v2258
    %2284 = vmatpush.msra.mxu0 %v2257
    %2285 = vmatpush.msra.mxu0 %v2256
    %2286 = vmatpush.msra.mxu0 %v2255
    %2287 = vmatpush.msra.mxu0 %v2254
    %2288 = vmatpush.msra.mxu0 %v2253
    %2289 = vmatmul.f32.gmra.mxu0 %v2252
    %v2290 = vpop.f32.mrf.mxu0
    %v2291 = vadd.f32 %v2271, %v2290
    %2292 = vdwg.mxu0
    %v2293 = vmul.f32 %v2291, 0.1
    %v2294 = vmax.f32 %v2291, %v2293
    %v2295 = vld [vmem:[%s1 + $0x1c] sm:$0x1]
    %v2296 = vld [vmem:[%s1 + $0x1d] sm:$0x1]
    %vm2297 = vcmask 523264
    %v2298 = vsel %vm2297, %v2294, 0.0
    %2299 = vadd.xlane.f32.xlu0 %v2298
    %v2300 = vpop.xlane.xlu0 %2299
    %v2301 = vrcp.pop 64.0
    %v2302 = vmul.f32 64.0, %v2301
    %v2303 = vsub.f32 1.0, %v2302
    %v2304 = vmul.f32 %v2301, %v2303
    %v2305 = vadd.f32 %v2301, %v2304
    %vm2306 = vweird.f32 %v2301
    %v2307 = vsel %vm2306, %v2301, %v2305
    %v2308 = vmul.f32 %v2300, %v2307
    %v2309 = vmul.f32 %v2294, %v2294
    %v2310 = vsel %vm2297, %v2309, 0.0
    %2311 = vadd.xlane.f32.xlu0 %v2310
    %v2312 = vpop.xlane.xlu0 %2311
    %v2313 = vmul.f32 %v2312, %v2307
    %v2314 = vmul.f32 %v2308, %v2308
    %v2315 = vsub.f32 %v2313, %v2314
    %v2316 = vmax.f32 %v2315, 0.0
    %v2317 = vsub.f32 %v2294, %v2308
    %v2318 = vadd.f32 %v2316, 1e-05
    %v2319 = vrsqrt.pop %v2318
    %v2320 = vmul.f32 %v2319, %v2318
    %v2321 = vmul.f32 %v2320, %v2319
    %v2322 = vmul.f32 0.5, %v2321
    %v2323 = vsub.f32 1.5, %v2322
    %v2324 = vmul.f32 %v2319, %v2323
    %vm2325 = vweird.f32 %v2318
    %vm2326 = vweird.f32 %v2319
    %vm2327 = vmor %vm2325, %vm2326
    %v2328 = vsel %vm2327, %v2319, %v2324
    %v2329 = vmul.f32 %v2317, %v2328
    %v2331 = vperm.slane %v2295, 0
    %v2333 = vmul.f32 %v2329, %v2331
    %v2335 = vperm.slane %v2296, 0
    %v2337 = vadd.f32 %v2333, %v2335
    %v2338 = vadd.f32 %v2337, %v2252
    %v2339 = vld [vmem:[%s7] sm:$0xff]
    %v2340 = vld [vmem:[%s7 + $0x8] sm:$0xff]
    %v2341 = vld [vmem:[%s7 + $0x10] sm:$0xff]
    %v2342 = vld [vmem:[%s7 + $0x18] sm:$0xff]
    %v2343 = vld [vmem:[%s7 + $0x20] sm:$0xff]
    %v2344 = vld [vmem:[%s7 + $0x28] sm:$0xff]
    %v2345 = vld [vmem:[%s7 + $0x30] sm:$0xff]
    %v2346 = vld [vmem:[%s7 + $0x38] sm:$0xff]
    %v2347 = vld [vmem:[%s1 + $0x1e] sm:$0x1]
    %v2349 = vperm.slane %v2347, 0
    %v2352 = vsel %vm2297, %v2338, 0
    %2354 = vmatpush.msra.mxu0 0.0
    %2355 = vmatpush.msra.mxu0 0.0
    %2356 = vmatpush.msra.mxu0 0.0
    %2357 = vmatpush.msra.mxu0 0.0
    %2358 = vmatpush.msra.mxu0 0.0
    %2359 = vmatpush.msra.mxu0 0.0
    %2360 = vmatpush.msra.mxu0 0.0
    %2361 = vmatpush.msra.mxu0 0.0
    %2362 = vmatpush.msra.mxu0 %v2346
    %2363 = vmatpush.msra.mxu0 %v2345
    %2364 = vmatpush.msra.mxu0 %v2344
    %2365 = vmatpush.msra.mxu0 %v2343
    %2366 = vmatpush.msra.mxu0 %v2342
    %2367 = vmatpush.msra.mxu0 %v2341
    %2368 = vmatpush.msra.mxu0 %v2340
    %2369 = vmatpush.msra.mxu0 %v2339
    %2370 = vmatmul.f32.gmra.mxu0 %v2352
    %v2371 = vpop.f32.mrf.mxu0
    %v2372 = vadd.f32 %v2349, %v2371
    %2373 = vdwg.mxu0
    %2374 = vst.msk [vmem:[#allocation2] sm:$0xff] %vm2297, %v2372
    %v2375 = vld [vmem:[%s1 + $0x1f] sm:$0x1]
    %v2376 = vld [vmem:[%s1 + $0x20] sm:$0x1]
    %v2377 = vld [vmem:[%s1 + $0x21] sm:$0x1]
    %v2378 = vld [vmem:[%s1 + $0x22] sm:$0x1]
    %v2379 = vld [vmem:[#allocation2] sm:$0xff]
    %vm2380 = vcmp.gt.f32.partialorder 0.0, 0.8
    %v2381 = vadd.f32 %v2379, 0.0
    %v2382 = vsel %vm2380, 0.0, %v2381
    %vm2383 = vcmp.gt.f32.partialorder %v2382, 0.8
    %v2384 = vsel %vm2383, 1, 0
    %v2385 = vcvt.s32.f32 %v2384
    %v2386 = vld [vmem:[#allocation8] sm:$0xff]
    %v2387 = vld [vmem:[#allocation8 + $0x8] sm:$0xff]
    %v2388 = vld [vmem:[#allocation8 + $0x10] sm:$0xff]
    %v2389 = vld [vmem:[#allocation8 + $0x18] sm:$0xff]
    %v2390 = vld [vmem:[#allocation8 + $0x20] sm:$0xff]
    %v2391 = vld [vmem:[#allocation8 + $0x28] sm:$0xff]
    %v2392 = vld [vmem:[#allocation8 + $0x30] sm:$0xff]
    %v2393 = vld [vmem:[#allocation8 + $0x38] sm:$0xff]
    %v2395 = vperm.slane %v2375, 0
    %v2398 = vsel %vm2297, %v2385, 0
    %2400 = vmatpush.msra.mxu0 0.0
    %2401 = vmatpush.msra.mxu0 0.0
    %2402 = vmatpush.msra.mxu0 0.0
    %2403 = vmatpush.msra.mxu0 0.0
    %2404 = vmatpush.msra.mxu0 0.0
    %2405 = vmatpush.msra.mxu0 0.0
    %2406 = vmatpush.msra.mxu0 0.0
    %2407 = vmatpush.msra.mxu0 0.0
    %2408 = vmatpush.msra.mxu0 %v2393
    %2409 = vmatpush.msra.mxu0 %v2392
    %2410 = vmatpush.msra.mxu0 %v2391
    %2411 = vmatpush.msra.mxu0 %v2390
    %2412 = vmatpush.msra.mxu0 %v2389
    %2413 = vmatpush.msra.mxu0 %v2388
    %2414 = vmatpush.msra.mxu0 %v2387
    %2415 = vmatpush.msra.mxu0 %v2386
    %2416 = vmatmul.f32.gmra.mxu0 %v2398
    %v2417 = vpop.f32.mrf.mxu0
    %v2418 = vadd.f32 %v2395, %v2417
    %2419 = vdwg.mxu0
    %vm2420 = vcmp.gt.f32.partialorder 0.0, 0.85
    %v2421 = vadd.f32 %v2418, 0.0
    %v2422 = vsel %vm2420, 0.0, %v2421
    %vm2423 = vcmp.gt.f32.partialorder %v2422, 0.85
    %v2424 = vsel %vm2423, 1, 0
    %v2425 = vcvt.s32.f32 %v2424
    %v2426 = vld [vmem:[%s9] sm:$0xff]
    %v2427 = vld [vmem:[%s9 + $0x8] sm:$0xff]
    %v2428 = vld [vmem:[%s9 + $0x10] sm:$0xff]
    %v2429 = vld [vmem:[%s9 + $0x18] sm:$0xff]
    %v2430 = vld [vmem:[%s9 + $0x20] sm:$0xff]
    %v2431 = vld [vmem:[%s9 + $0x28] sm:$0xff]
    %v2432 = vld [vmem:[%s9 + $0x30] sm:$0xff]
    %v2433 = vld [vmem:[%s9 + $0x38] sm:$0xff]
    %v2435 = vperm.slane %v2376, 0
    %v2438 = vsel %vm2297, %v2425, 0
    %2440 = vmatpush.msra.mxu0 0.0
    %2441 = vmatpush.msra.mxu0 0.0
    %2442 = vmatpush.msra.mxu0 0.0
    %2443 = vmatpush.msra.mxu0 0.0
    %2444 = vmatpush.msra.mxu0 0.0
    %2445 = vmatpush.msra.mxu0 0.0
    %2446 = vmatpush.msra.mxu0 0.0
    %2447 = vmatpush.msra.mxu0 0.0
    %2448 = vmatpush.msra.mxu0 %v2433
    %2449 = vmatpush.msra.mxu0 %v2432
    %2450 = vmatpush.msra.mxu0 %v2431
    %2451 = vmatpush.msra.mxu0 %v2430
    %2452 = vmatpush.msra.mxu0 %v2429
    %2453 = vmatpush.msra.mxu0 %v2428
    %2454 = vmatpush.msra.mxu0 %v2427
    %2455 = vmatpush.msra.mxu0 %v2426
    %2456 = vmatmul.f32.gmra.mxu0 %v2438
    %v2457 = vpop.f32.mrf.mxu0
    %v2458 = vadd.f32 %v2435, %v2457
    %2459 = vdwg.mxu0
    %vm2460 = vcmp.gt.f32.partialorder 0.0, 0.9
    %v2461 = vadd.f32 %v2458, 0.0
    %v2462 = vsel %vm2460, 0.0, %v2461
    %vm2463 = vcmp.gt.f32.partialorder %v2462, 0.9
    %v2464 = vsel %vm2463, 1, 0
    %v2465 = vcvt.s32.f32 %v2464
    %v2466 = vld [vmem:[#allocation10] sm:$0xff]
    %v2467 = vld [vmem:[#allocation10 + $0x8] sm:$0xff]
    %v2468 = vld [vmem:[#allocation10 + $0x10] sm:$0xff]
    %v2469 = vld [vmem:[#allocation10 + $0x18] sm:$0xff]
    %v2471 = vperm.slane %v2377, 0
    %vm2473 = vcmask 261120
    %v2475 = vsel %vm2473, %v2465, 0
    %2477 = vmatpush.msra.mxu0 0.0
    %2478 = vmatpush.msra.mxu0 0.0
    %2479 = vmatpush.msra.mxu0 0.0
    %2480 = vmatpush.msra.mxu0 0.0
    %2481 = vmatpush.msra.mxu0 0.0
    %2482 = vmatpush.msra.mxu0 0.0
    %2483 = vmatpush.msra.mxu0 0.0
    %2484 = vmatpush.msra.mxu0 0.0
    %2485 = vmatpush.msra.mxu0 0.0
    %2486 = vmatpush.msra.mxu0 0.0
    %2487 = vmatpush.msra.mxu0 0.0
    %2488 = vmatpush.msra.mxu0 0.0
    %2489 = vmatpush.msra.mxu0 %v2469
    %2490 = vmatpush.msra.mxu0 %v2468
    %2491 = vmatpush.msra.mxu0 %v2467
    %2492 = vmatpush.msra.mxu0 %v2466
    %2493 = vmatmul.f32.gmra.mxu0 %v2475
    %v2494 = vpop.f32.mrf.mxu0
    %v2495 = vadd.f32 %v2471, %v2494
    %2496 = vdwg.mxu0
    %vm2497 = vcmp.gt.f32.partialorder 0.0, 0.95
    %v2498 = vadd.f32 %v2495, 0.0
    %v2499 = vsel %vm2497, 0.0, %v2498
    %vm2500 = vcmp.gt.f32.partialorder %v2499, 0.95
    %v2501 = vsel %vm2500, 1, 0
    %v2502 = vcvt.s32.f32 %v2501
    %v2503 = vld [vmem:[#allocation11] sm:$0xff]
    %v2504 = vld [vmem:[#allocation11 + $0x8] sm:$0xff]
    %v2505 = vld [vmem:[#allocation11 + $0x10] sm:$0xff]
    %v2506 = vld [vmem:[#allocation11 + $0x18] sm:$0xff]
    %v2508 = vperm.slane %v2378, 0
    %v2511 = vsel %vm2473, %v2502, 0
    %2513 = vmatpush.msra.mxu0 0.0
    %2514 = vmatpush.msra.mxu0 0.0
    %2515 = vmatpush.msra.mxu0 0.0
    %2516 = vmatpush.msra.mxu0 0.0
    %2517 = vmatpush.msra.mxu0 0.0
    %2518 = vmatpush.msra.mxu0 0.0
    %2519 = vmatpush.msra.mxu0 0.0
    %2520 = vmatpush.msra.mxu0 0.0
    %2521 = vmatpush.msra.mxu0 0.0
    %2522 = vmatpush.msra.mxu0 0.0
    %2523 = vmatpush.msra.mxu0 0.0
    %2524 = vmatpush.msra.mxu0 0.0
    %2525 = vmatpush.msra.mxu0 %v2506
    %2526 = vmatpush.msra.mxu0 %v2505
    %2527 = vmatpush.msra.mxu0 %v2504
    %2528 = vmatpush.msra.mxu0 %v2503
    %2529 = vmatmul.f32.gmra.mxu0 %v2511
    %v2530 = vpop.f32.mrf.mxu0
    %v2531 = vadd.f32 %v2508, %v2530
    %2532 = vdwg.mxu0
    %v2533 = vxor.u32 %v2531, 2147483648
    %v2534 = vmul.f32 %v2533, 1.442695
    %v2535 = vpow.pop %v2534
    %v2536 = vadd.f32 %v2535, 1.0
    %v2537 = vrcp.pop %v2536
    %v2538 = vmul.f32 %v2536, %v2537
    %v2539 = vsub.f32 1.0, %v2538
    %v2540 = vmul.f32 %v2537, %v2539
    %v2541 = vadd.f32 %v2537, %v2540
    %vm2542 = vweird.f32 %v2536
    %vm2543 = vweird.f32 %v2537
    %vm2544 = vmor %vm2542, %vm2543
    %v2545 = vsel %vm2544, %v2537, %v2541
    %v2546 = vand.u32 2147483647, %v2536
    %vm2547 = vcmp.eq.f32.partialorder %v2546, 8.507059e+37
    %v2548 = vand.u32 %v2536, 2147483648
    %v2549 = vor.u32 1.1754944e-38, %v2548
    %v2550 = vsel %vm2547, %v2549, %v2545
    %v2551 = vmul.f32 1.0, %v2550
    %v2552 = vadd.f32 %v2551, 0.0
    %v2553 = vmul.f32 %v2382, 0.95
    %v2554 = vadd.f32 %v2553, %v2379
    %v2555 = vsel %vm2383, 0.0, %v2554
    %vm2556 = vcmp.gt.f32.partialorder %v2555, 0.8
    %v2557 = vsel %vm2556, 1, 0
    %v2558 = vcvt.s32.f32 %v2557
    %v2560 = vsel %vm2297, %v2558, 0
    %2562 = vmatpush.msra.mxu0 0.0
    %2563 = vmatpush.msra.mxu0 0.0
    %2564 = vmatpush.msra.mxu0 0.0
    %2565 = vmatpush.msra.mxu0 0.0
    %2566 = vmatpush.msra.mxu0 0.0
    %2567 = vmatpush.msra.mxu0 0.0
    %2568 = vmatpush.msra.mxu0 0.0
    %2569 = vmatpush.msra.mxu0 0.0
    %2570 = vmatpush.msra.mxu0 %v2393
    %2571 = vmatpush.msra.mxu0 %v2392
    %2572 = vmatpush.msra.mxu0 %v2391
    %2573 = vmatpush.msra.mxu0 %v2390
    %2574 = vmatpush.msra.mxu0 %v2389
    %2575 = vmatpush.msra.mxu0 %v2388
    %2576 = vmatpush.msra.mxu0 %v2387
    %2577 = vmatpush.msra.mxu0 %v2386
    %2578 = vmatmul.f32.gmra.mxu0 %v2560
    %v2579 = vpop.f32.mrf.mxu0
    %v2580 = vadd.f32 %v2395, %v2579
    %2581 = vdwg.mxu0
    %v2582 = vmul.f32 %v2422, 0.92
    %v2583 = vadd.f32 %v2582, %v2580
    %v2584 = vsel %vm2423, 0.0, %v2583
    %vm2585 = vcmp.gt.f32.partialorder %v2584, 0.85
    %v2586 = vsel %vm2585, 1, 0
    %v2587 = vcvt.s32.f32 %v2586
    %v2589 = vsel %vm2297, %v2587, 0
    %2591 = vmatpush.msra.mxu0 0.0
    %2592 = vmatpush.msra.mxu0 0.0
    %2593 = vmatpush.msra.mxu0 0.0
    %2594 = vmatpush.msra.mxu0 0.0
    %2595 = vmatpush.msra.mxu0 0.0
    %2596 = vmatpush.msra.mxu0 0.0
    %2597 = vmatpush.msra.mxu0 0.0
    %2598 = vmatpush.msra.mxu0 0.0
    %2599 = vmatpush.msra.mxu0 %v2433
    %2600 = vmatpush.msra.mxu0 %v2432
    %2601 = vmatpush.msra.mxu0 %v2431
    %2602 = vmatpush.msra.mxu0 %v2430
    %2603 = vmatpush.msra.mxu0 %v2429
    %2604 = vmatpush.msra.mxu0 %v2428
    %2605 = vmatpush.msra.mxu0 %v2427
    %2606 = vmatpush.msra.mxu0 %v2426
    %2607 = vmatmul.f32.gmra.mxu0 %v2589
    %v2608 = vpop.f32.mrf.mxu0
    %v2609 = vadd.f32 %v2435, %v2608
    %2610 = vdwg.mxu0
    %v2611 = vmul.f32 %v2462, 0.9
    %v2612 = vadd.f32 %v2611, %v2609
    %v2613 = vsel %vm2463, 0.0, %v2612
    %vm2614 = vcmp.gt.f32.partialorder %v2613, 0.9
    %v2615 = vsel %vm2614, 1, 0
    %v2616 = vcvt.s32.f32 %v2615
    %v2618 = vsel %vm2473, %v2616, 0
    %2620 = vmatpush.msra.mxu0 0.0
    %2621 = vmatpush.msra.mxu0 0.0
    %2622 = vmatpush.msra.mxu0 0.0
    %2623 = vmatpush.msra.mxu0 0.0
    %2624 = vmatpush.msra.mxu0 0.0
    %2625 = vmatpush.msra.mxu0 0.0
    %2626 = vmatpush.msra.mxu0 0.0
    %2627 = vmatpush.msra.mxu0 0.0
    %2628 = vmatpush.msra.mxu0 0.0
    %2629 = vmatpush.msra.mxu0 0.0
    %2630 = vmatpush.msra.mxu0 0.0
    %2631 = vmatpush.msra.mxu0 0.0
    %2632 = vmatpush.msra.mxu0 %v2469
    %2633 = vmatpush.msra.mxu0 %v2468
    %2634 = vmatpush.msra.mxu0 %v2467
    %2635 = vmatpush.msra.mxu0 %v2466
    %2636 = vmatmul.f32.gmra.mxu0 %v2618
    %v2637 = vpop.f32.mrf.mxu0
    %v2638 = vadd.f32 %v2471, %v2637
    %2639 = vdwg.mxu0
    %v2640 = vmul.f32 %v2499, 0.85
    %v2641 = vadd.f32 %v2640, %v2638
    %v2642 = vsel %vm2500, 0.0, %v2641
    %vm2643 = vcmp.gt.f32.partialorder %v2642, 0.95
    %v2644 = vsel %vm2643, 1, 0
    %v2645 = vcvt.s32.f32 %v2644
    %v2647 = vsel %vm2473, %v2645, 0
    %2649 = vmatpush.msra.mxu0 0.0
    %2650 = vmatpush.msra.mxu0 0.0
    %2651 = vmatpush.msra.mxu0 0.0
    %2652 = vmatpush.msra.mxu0 0.0
    %2653 = vmatpush.msra.mxu0 0.0
    %2654 = vmatpush.msra.mxu0 0.0
    %2655 = vmatpush.msra.mxu0 0.0
    %2656 = vmatpush.msra.mxu0 0.0
    %2657 = vmatpush.msra.mxu0 0.0
    %2658 = vmatpush.msra.mxu0 0.0
    %2659 = vmatpush.msra.mxu0 0.0
    %2660 = vmatpush.msra.mxu0 0.0
    %2661 = vmatpush.msra.mxu0 %v2506
    %2662 = vmatpush.msra.mxu0 %v2505
    %2663 = vmatpush.msra.mxu0 %v2504
    %2664 = vmatpush.msra.mxu0 %v2503
    %2665 = vmatmul.f32.gmra.mxu0 %v2647
    %v2666 = vpop.f32.mrf.mxu0
    %v2667 = vadd.f32 %v2508, %v2666
    %2668 = vdwg.mxu0
    %v2669 = vxor.u32 %v2667, 2147483648
    %v2670 = vmul.f32 %v2669, 1.442695
    %v2671 = vpow.pop %v2670
    %v2672 = vadd.f32 %v2671, 1.0
    %v2673 = vrcp.pop %v2672
    %v2674 = vmul.f32 %v2672, %v2673
    %v2675 = vsub.f32 1.0, %v2674
    %v2676 = vmul.f32 %v2673, %v2675
    %v2677 = vadd.f32 %v2673, %v2676
    %vm2678 = vweird.f32 %v2672
    %vm2679 = vweird.f32 %v2673
    %vm2680 = vmor %vm2678, %vm2679
    %v2681 = vsel %vm2680, %v2673, %v2677
    %v2682 = vand.u32 2147483647, %v2672
    %vm2683 = vcmp.eq.f32.partialorder %v2682, 8.507059e+37
    %v2684 = vand.u32 %v2672, 2147483648
    %v2685 = vor.u32 1.1754944e-38, %v2684
    %v2686 = vsel %vm2683, %v2685, %v2681
    %v2687 = vmul.f32 1.0, %v2686
    %v2688 = vadd.f32 %v2552, %v2687
    %v2689 = vmul.f32 %v2555, 0.95
    %v2690 = vadd.f32 %v2689, %v2379
    %v2691 = vsel %vm2556, 0.0, %v2690
    %vm2692 = vcmp.gt.f32.partialorder %v2691, 0.8
    %v2693 = vsel %vm2692, 1, 0
    %v2694 = vcvt.s32.f32 %v2693
    %v2696 = vsel %vm2297, %v2694, 0
    %2698 = vmatpush.msra.mxu0 0.0
    %2699 = vmatpush.msra.mxu0 0.0
    %2700 = vmatpush.msra.mxu0 0.0
    %2701 = vmatpush.msra.mxu0 0.0
    %2702 = vmatpush.msra.mxu0 0.0
    %2703 = vmatpush.msra.mxu0 0.0
    %2704 = vmatpush.msra.mxu0 0.0
    %2705 = vmatpush.msra.mxu0 0.0
    %2706 = vmatpush.msra.mxu0 %v2393
    %2707 = vmatpush.msra.mxu0 %v2392
    %2708 = vmatpush.msra.mxu0 %v2391
    %2709 = vmatpush.msra.mxu0 %v2390
    %2710 = vmatpush.msra.mxu0 %v2389
    %2711 = vmatpush.msra.mxu0 %v2388
    %2712 = vmatpush.msra.mxu0 %v2387
    %2713 = vmatpush.msra.mxu0 %v2386
    %2714 = vmatmul.f32.gmra.mxu0 %v2696
    %v2715 = vpop.f32.mrf.mxu0
    %v2716 = vadd.f32 %v2395, %v2715
    %2717 = vdwg.mxu0
    %v2718 = vmul.f32 %v2584, 0.92
    %v2719 = vadd.f32 %v2718, %v2716
    %v2720 = vsel %vm2585, 0.0, %v2719
    %vm2721 = vcmp.gt.f32.partialorder %v2720, 0.85
    %v2722 = vsel %vm2721, 1, 0
    %v2723 = vcvt.s32.f32 %v2722
    %v2725 = vsel %vm2297, %v2723, 0
    %2727 = vmatpush.msra.mxu0 0.0
    %2728 = vmatpush.msra.mxu0 0.0
    %2729 = vmatpush.msra.mxu0 0.0
    %2730 = vmatpush.msra.mxu0 0.0
    %2731 = vmatpush.msra.mxu0 0.0
    %2732 = vmatpush.msra.mxu0 0.0
    %2733 = vmatpush.msra.mxu0 0.0
    %2734 = vmatpush.msra.mxu0 0.0
    %2735 = vmatpush.msra.mxu0 %v2433
    %2736 = vmatpush.msra.mxu0 %v2432
    %2737 = vmatpush.msra.mxu0 %v2431
    %2738 = vmatpush.msra.mxu0 %v2430
    %2739 = vmatpush.msra.mxu0 %v2429
    %2740 = vmatpush.msra.mxu0 %v2428
    %2741 = vmatpush.msra.mxu0 %v2427
    %2742 = vmatpush.msra.mxu0 %v2426
    %2743 = vmatmul.f32.gmra.mxu0 %v2725
    %v2744 = vpop.f32.mrf.mxu0
    %v2745 = vadd.f32 %v2435, %v2744
    %2746 = vdwg.mxu0
    %v2747 = vmul.f32 %v2613, 0.9
    %v2748 = vadd.f32 %v2747, %v2745
    %v2749 = vsel %vm2614, 0.0, %v2748
    %vm2750 = vcmp.gt.f32.partialorder %v2749, 0.9
    %v2751 = vsel %vm2750, 1, 0
    %v2752 = vcvt.s32.f32 %v2751
    %v2754 = vsel %vm2473, %v2752, 0
    %2756 = vmatpush.msra.mxu0 0.0
    %2757 = vmatpush.msra.mxu0 0.0
    %2758 = vmatpush.msra.mxu0 0.0
    %2759 = vmatpush.msra.mxu0 0.0
    %2760 = vmatpush.msra.mxu0 0.0
    %2761 = vmatpush.msra.mxu0 0.0
    %2762 = vmatpush.msra.mxu0 0.0
    %2763 = vmatpush.msra.mxu0 0.0
    %2764 = vmatpush.msra.mxu0 0.0
    %2765 = vmatpush.msra.mxu0 0.0
    %2766 = vmatpush.msra.mxu0 0.0
    %2767 = vmatpush.msra.mxu0 0.0
    %2768 = vmatpush.msra.mxu0 %v2469
    %2769 = vmatpush.msra.mxu0 %v2468
    %2770 = vmatpush.msra.mxu0 %v2467
    %2771 = vmatpush.msra.mxu0 %v2466
    %2772 = vmatmul.f32.gmra.mxu0 %v2754
    %v2773 = vpop.f32.mrf.mxu0
    %v2774 = vadd.f32 %v2471, %v2773
    %2775 = vdwg.mxu0
    %v2776 = vmul.f32 %v2642, 0.85
    %v2777 = vadd.f32 %v2776, %v2774
    %v2778 = vsel %vm2643, 0.0, %v2777
    %vm2779 = vcmp.gt.f32.partialorder %v2778, 0.95
    %v2780 = vsel %vm2779, 1, 0
    %v2781 = vcvt.s32.f32 %v2780
    %v2783 = vsel %vm2473, %v2781, 0
    %2785 = vmatpush.msra.mxu0 0.0
    %2786 = vmatpush.msra.mxu0 0.0
    %2787 = vmatpush.msra.mxu0 0.0
    %2788 = vmatpush.msra.mxu0 0.0
    %2789 = vmatpush.msra.mxu0 0.0
    %2790 = vmatpush.msra.mxu0 0.0
    %2791 = vmatpush.msra.mxu0 0.0
    %2792 = vmatpush.msra.mxu0 0.0
    %2793 = vmatpush.msra.mxu0 0.0
    %2794 = vmatpush.msra.mxu0 0.0
    %2795 = vmatpush.msra.mxu0 0.0
    %2796 = vmatpush.msra.mxu0 0.0
    %2797 = vmatpush.msra.mxu0 %v2506
    %2798 = vmatpush.msra.mxu0 %v2505
    %2799 = vmatpush.msra.mxu0 %v2504
    %2800 = vmatpush.msra.mxu0 %v2503
    %2801 = vmatmul.f32.gmra.mxu0 %v2783
    %v2802 = vpop.f32.mrf.mxu0
    %v2803 = vadd.f32 %v2508, %v2802
    %2804 = vdwg.mxu0
    %v2805 = vxor.u32 %v2803, 2147483648
    %v2806 = vmul.f32 %v2805, 1.442695
    %v2807 = vpow.pop %v2806
    %v2808 = vadd.f32 %v2807, 1.0
    %v2809 = vrcp.pop %v2808
    %v2810 = vmul.f32 %v2808, %v2809
    %v2811 = vsub.f32 1.0, %v2810
    %v2812 = vmul.f32 %v2809, %v2811
    %v2813 = vadd.f32 %v2809, %v2812
    %vm2814 = vweird.f32 %v2808
    %vm2815 = vweird.f32 %v2809
    %vm2816 = vmor %vm2814, %vm2815
    %v2817 = vsel %vm2816, %v2809, %v2813
    %v2818 = vand.u32 2147483647, %v2808
    %vm2819 = vcmp.eq.f32.partialorder %v2818, 8.507059e+37
    %v2820 = vand.u32 %v2808, 2147483648
    %v2821 = vor.u32 1.1754944e-38, %v2820
    %v2822 = vsel %vm2819, %v2821, %v2817
    %v2823 = vmul.f32 1.0, %v2822
    %v2824 = vadd.f32 %v2688, %v2823
    %v2825 = vmul.f32 %v2691, 0.95
    %v2826 = vadd.f32 %v2825, %v2379
    %v2827 = vsel %vm2692, 0.0, %v2826
    %vm2828 = vcmp.gt.f32.partialorder %v2827, 0.8
    %v2829 = vsel %vm2828, 1, 0
    %v2830 = vcvt.s32.f32 %v2829
    %v2832 = vsel %vm2297, %v2830, 0
    %2834 = vmatpush.msra.mxu0 0.0
    %2835 = vmatpush.msra.mxu0 0.0
    %2836 = vmatpush.msra.mxu0 0.0
    %2837 = vmatpush.msra.mxu0 0.0
    %2838 = vmatpush.msra.mxu0 0.0
    %2839 = vmatpush.msra.mxu0 0.0
    %2840 = vmatpush.msra.mxu0 0.0
    %2841 = vmatpush.msra.mxu0 0.0
    %2842 = vmatpush.msra.mxu0 %v2393
    %2843 = vmatpush.msra.mxu0 %v2392
    %2844 = vmatpush.msra.mxu0 %v2391
    %2845 = vmatpush.msra.mxu0 %v2390
    %2846 = vmatpush.msra.mxu0 %v2389
    %2847 = vmatpush.msra.mxu0 %v2388
    %2848 = vmatpush.msra.mxu0 %v2387
    %2849 = vmatpush.msra.mxu0 %v2386
    %2850 = vmatmul.f32.gmra.mxu0 %v2832
    %v2851 = vpop.f32.mrf.mxu0
    %v2852 = vadd.f32 %v2395, %v2851
    %2853 = vdwg.mxu0
    %v2854 = vmul.f32 %v2720, 0.92
    %v2855 = vadd.f32 %v2854, %v2852
    %v2856 = vsel %vm2721, 0.0, %v2855
    %vm2857 = vcmp.gt.f32.partialorder %v2856, 0.85
    %v2858 = vsel %vm2857, 1, 0
    %v2859 = vcvt.s32.f32 %v2858
    %v2861 = vsel %vm2297, %v2859, 0
    %2863 = vmatpush.msra.mxu0 0.0
    %2864 = vmatpush.msra.mxu0 0.0
    %2865 = vmatpush.msra.mxu0 0.0
    %2866 = vmatpush.msra.mxu0 0.0
    %2867 = vmatpush.msra.mxu0 0.0
    %2868 = vmatpush.msra.mxu0 0.0
    %2869 = vmatpush.msra.mxu0 0.0
    %2870 = vmatpush.msra.mxu0 0.0
    %2871 = vmatpush.msra.mxu0 %v2433
    %2872 = vmatpush.msra.mxu0 %v2432
    %2873 = vmatpush.msra.mxu0 %v2431
    %2874 = vmatpush.msra.mxu0 %v2430
    %2875 = vmatpush.msra.mxu0 %v2429
    %2876 = vmatpush.msra.mxu0 %v2428
    %2877 = vmatpush.msra.mxu0 %v2427
    %2878 = vmatpush.msra.mxu0 %v2426
    %2879 = vmatmul.f32.gmra.mxu0 %v2861
    %v2880 = vpop.f32.mrf.mxu0
    %v2881 = vadd.f32 %v2435, %v2880
    %2882 = vdwg.mxu0
    %v2883 = vmul.f32 %v2749, 0.9
    %v2884 = vadd.f32 %v2883, %v2881
    %v2885 = vsel %vm2750, 0.0, %v2884
    %vm2886 = vcmp.gt.f32.partialorder %v2885, 0.9
    %v2887 = vsel %vm2886, 1, 0
    %v2888 = vcvt.s32.f32 %v2887
    %v2890 = vsel %vm2473, %v2888, 0
    %2892 = vmatpush.msra.mxu0 0.0
    %2893 = vmatpush.msra.mxu0 0.0
    %2894 = vmatpush.msra.mxu0 0.0
    %2895 = vmatpush.msra.mxu0 0.0
    %2896 = vmatpush.msra.mxu0 0.0
    %2897 = vmatpush.msra.mxu0 0.0
    %2898 = vmatpush.msra.mxu0 0.0
    %2899 = vmatpush.msra.mxu0 0.0
    %2900 = vmatpush.msra.mxu0 0.0
    %2901 = vmatpush.msra.mxu0 0.0
    %2902 = vmatpush.msra.mxu0 0.0
    %2903 = vmatpush.msra.mxu0 0.0
    %2904 = vmatpush.msra.mxu0 %v2469
    %2905 = vmatpush.msra.mxu0 %v2468
    %2906 = vmatpush.msra.mxu0 %v2467
    %2907 = vmatpush.msra.mxu0 %v2466
    %2908 = vmatmul.f32.gmra.mxu0 %v2890
    %v2909 = vpop.f32.mrf.mxu0
    %v2910 = vadd.f32 %v2471, %v2909
    %2911 = vdwg.mxu0
    %v2912 = vmul.f32 %v2778, 0.85
    %v2913 = vadd.f32 %v2912, %v2910
    %v2914 = vsel %vm2779, 0.0, %v2913
    %vm2915 = vcmp.gt.f32.partialorder %v2914, 0.95
    %v2916 = vsel %vm2915, 1, 0
    %v2917 = vcvt.s32.f32 %v2916
    %v2919 = vsel %vm2473, %v2917, 0
    %2921 = vmatpush.msra.mxu0 0.0
    %2922 = vmatpush.msra.mxu0 0.0
    %2923 = vmatpush.msra.mxu0 0.0
    %2924 = vmatpush.msra.mxu0 0.0
    %2925 = vmatpush.msra.mxu0 0.0
    %2926 = vmatpush.msra.mxu0 0.0
    %2927 = vmatpush.msra.mxu0 0.0
    %2928 = vmatpush.msra.mxu0 0.0
    %2929 = vmatpush.msra.mxu0 0.0
    %2930 = vmatpush.msra.mxu0 0.0
    %2931 = vmatpush.msra.mxu0 0.0
    %2932 = vmatpush.msra.mxu0 0.0
    %2933 = vmatpush.msra.mxu0 %v2506
    %2934 = vmatpush.msra.mxu0 %v2505
    %2935 = vmatpush.msra.mxu0 %v2504
    %2936 = vmatpush.msra.mxu0 %v2503
    %2937 = vmatmul.f32.gmra.mxu0 %v2919
    %v2938 = vpop.f32.mrf.mxu0
    %v2939 = vadd.f32 %v2508, %v2938
    %2940 = vdwg.mxu0
    %v2941 = vxor.u32 %v2939, 2147483648
    %v2942 = vmul.f32 %v2941, 1.442695
    %v2943 = vpow.pop %v2942
    %v2944 = vadd.f32 %v2943, 1.0
    %v2945 = vrcp.pop %v2944
    %v2946 = vmul.f32 %v2944, %v2945
    %v2947 = vsub.f32 1.0, %v2946
    %v2948 = vmul.f32 %v2945, %v2947
    %v2949 = vadd.f32 %v2945, %v2948
    %vm2950 = vweird.f32 %v2944
    %vm2951 = vweird.f32 %v2945
    %vm2952 = vmor %vm2950, %vm2951
    %v2953 = vsel %vm2952, %v2945, %v2949
    %v2954 = vand.u32 2147483647, %v2944
    %vm2955 = vcmp.eq.f32.partialorder %v2954, 8.507059e+37
    %v2956 = vand.u32 %v2944, 2147483648
    %v2957 = vor.u32 1.1754944e-38, %v2956
    %v2958 = vsel %vm2955, %v2957, %v2953
    %v2959 = vmul.f32 1.0, %v2958
    %v2960 = vadd.f32 %v2824, %v2959
    %v2961 = vmul.f32 %v2827, 0.95
    %v2962 = vadd.f32 %v2961, %v2379
    %v2963 = vsel %vm2828, 0.0, %v2962
    %vm2964 = vcmp.gt.f32.partialorder %v2963, 0.8
    %v2965 = vsel %vm2964, 1, 0
    %v2966 = vcvt.s32.f32 %v2965
    %v2968 = vsel %vm2297, %v2966, 0
    %2970 = vmatpush.msra.mxu0 0.0
    %2971 = vmatpush.msra.mxu0 0.0
    %2972 = vmatpush.msra.mxu0 0.0
    %2973 = vmatpush.msra.mxu0 0.0
    %2974 = vmatpush.msra.mxu0 0.0
    %2975 = vmatpush.msra.mxu0 0.0
    %2976 = vmatpush.msra.mxu0 0.0
    %2977 = vmatpush.msra.mxu0 0.0
    %2978 = vmatpush.msra.mxu0 %v2393
    %2979 = vmatpush.msra.mxu0 %v2392
    %2980 = vmatpush.msra.mxu0 %v2391
    %2981 = vmatpush.msra.mxu0 %v2390
    %2982 = vmatpush.msra.mxu0 %v2389
    %2983 = vmatpush.msra.mxu0 %v2388
    %2984 = vmatpush.msra.mxu0 %v2387
    %2985 = vmatpush.msra.mxu0 %v2386
    %2986 = vmatmul.f32.gmra.mxu0 %v2968
    %v2987 = vpop.f32.mrf.mxu0
    %v2988 = vadd.f32 %v2395, %v2987
    %2989 = vdwg.mxu0
    %v2990 = vmul.f32 %v2856, 0.92
    %v2991 = vadd.f32 %v2990, %v2988
    %v2992 = vsel %vm2857, 0.0, %v2991
    %vm2993 = vcmp.gt.f32.partialorder %v2992, 0.85
    %v2994 = vsel %vm2993, 1, 0
    %v2995 = vcvt.s32.f32 %v2994
    %v2997 = vsel %vm2297, %v2995, 0
    %2999 = vmatpush.msra.mxu0 0.0
    %3000 = vmatpush.msra.mxu0 0.0
    %3001 = vmatpush.msra.mxu0 0.0
    %3002 = vmatpush.msra.mxu0 0.0
    %3003 = vmatpush.msra.mxu0 0.0
    %3004 = vmatpush.msra.mxu0 0.0
    %3005 = vmatpush.msra.mxu0 0.0
    %3006 = vmatpush.msra.mxu0 0.0
    %3007 = vmatpush.msra.mxu0 %v2433
    %3008 = vmatpush.msra.mxu0 %v2432
    %3009 = vmatpush.msra.mxu0 %v2431
    %3010 = vmatpush.msra.mxu0 %v2430
    %3011 = vmatpush.msra.mxu0 %v2429
    %3012 = vmatpush.msra.mxu0 %v2428
    %3013 = vmatpush.msra.mxu0 %v2427
    %3014 = vmatpush.msra.mxu0 %v2426
    %3015 = vmatmul.f32.gmra.mxu0 %v2997
    %v3016 = vpop.f32.mrf.mxu0
    %v3017 = vadd.f32 %v2435, %v3016
    %3018 = vdwg.mxu0
    %v3019 = vmul.f32 %v2885, 0.9
    %v3020 = vadd.f32 %v3019, %v3017
    %v3021 = vsel %vm2886, 0.0, %v3020
    %vm3022 = vcmp.gt.f32.partialorder %v3021, 0.9
    %v3023 = vsel %vm3022, 1, 0
    %v3024 = vcvt.s32.f32 %v3023
    %v3026 = vsel %vm2473, %v3024, 0
    %3028 = vmatpush.msra.mxu0 0.0
    %3029 = vmatpush.msra.mxu0 0.0
    %3030 = vmatpush.msra.mxu0 0.0
    %3031 = vmatpush.msra.mxu0 0.0
    %3032 = vmatpush.msra.mxu0 0.0
    %3033 = vmatpush.msra.mxu0 0.0
    %3034 = vmatpush.msra.mxu0 0.0
    %3035 = vmatpush.msra.mxu0 0.0
    %3036 = vmatpush.msra.mxu0 0.0
    %3037 = vmatpush.msra.mxu0 0.0
    %3038 = vmatpush.msra.mxu0 0.0
    %3039 = vmatpush.msra.mxu0 0.0
    %3040 = vmatpush.msra.mxu0 %v2469
    %3041 = vmatpush.msra.mxu0 %v2468
    %3042 = vmatpush.msra.mxu0 %v2467
    %3043 = vmatpush.msra.mxu0 %v2466
    %3044 = vmatmul.f32.gmra.mxu0 %v3026
    %v3045 = vpop.f32.mrf.mxu0
    %v3046 = vadd.f32 %v2471, %v3045
    %3047 = vdwg.mxu0
    %v3048 = vmul.f32 %v2914, 0.85
    %v3049 = vadd.f32 %v3048, %v3046
    %v3050 = vsel %vm2915, 0.0, %v3049
    %vm3051 = vcmp.gt.f32.partialorder %v3050, 0.95
    %v3052 = vsel %vm3051, 1, 0
    %v3053 = vcvt.s32.f32 %v3052
    %v3055 = vsel %vm2473, %v3053, 0
    %3057 = vmatpush.msra.mxu0 0.0
    %3058 = vmatpush.msra.mxu0 0.0
    %3059 = vmatpush.msra.mxu0 0.0
    %3060 = vmatpush.msra.mxu0 0.0
    %3061 = vmatpush.msra.mxu0 0.0
    %3062 = vmatpush.msra.mxu0 0.0
    %3063 = vmatpush.msra.mxu0 0.0
    %3064 = vmatpush.msra.mxu0 0.0
    %3065 = vmatpush.msra.mxu0 0.0
    %3066 = vmatpush.msra.mxu0 0.0
    %3067 = vmatpush.msra.mxu0 0.0
    %3068 = vmatpush.msra.mxu0 0.0
    %3069 = vmatpush.msra.mxu0 %v2506
    %3070 = vmatpush.msra.mxu0 %v2505
    %3071 = vmatpush.msra.mxu0 %v2504
    %3072 = vmatpush.msra.mxu0 %v2503
    %3073 = vmatmul.f32.gmra.mxu0 %v3055
    %v3074 = vpop.f32.mrf.mxu0
    %v3075 = vadd.f32 %v2508, %v3074
    %3076 = vdwg.mxu0
    %v3077 = vxor.u32 %v3075, 2147483648
    %v3078 = vmul.f32 %v3077, 1.442695
    %v3079 = vpow.pop %v3078
    %v3080 = vadd.f32 %v3079, 1.0
    %v3081 = vrcp.pop %v3080
    %v3082 = vmul.f32 %v3080, %v3081
    %v3083 = vsub.f32 1.0, %v3082
    %v3084 = vmul.f32 %v3081, %v3083
    %v3085 = vadd.f32 %v3081, %v3084
    %vm3086 = vweird.f32 %v3080
    %vm3087 = vweird.f32 %v3081
    %vm3088 = vmor %vm3086, %vm3087
    %v3089 = vsel %vm3088, %v3081, %v3085
    %v3090 = vand.u32 2147483647, %v3080
    %vm3091 = vcmp.eq.f32.partialorder %v3090, 8.507059e+37
    %v3092 = vand.u32 %v3080, 2147483648
    %v3093 = vor.u32 1.1754944e-38, %v3092
    %v3094 = vsel %vm3091, %v3093, %v3089
    %v3095 = vmul.f32 1.0, %v3094
    %v3096 = vadd.f32 %v2960, %v3095
    %v3097 = vmul.f32 %v2963, 0.95
    %v3098 = vadd.f32 %v3097, %v2379
    %v3099 = vsel %vm2964, 0.0, %v3098
    %vm3100 = vcmp.gt.f32.partialorder %v3099, 0.8
    %v3101 = vsel %vm3100, 1, 0
    %v3102 = vcvt.s32.f32 %v3101
    %v3104 = vsel %vm2297, %v3102, 0
    %3106 = vmatpush.msra.mxu0 0.0
    %3107 = vmatpush.msra.mxu0 0.0
    %3108 = vmatpush.msra.mxu0 0.0
    %3109 = vmatpush.msra.mxu0 0.0
    %3110 = vmatpush.msra.mxu0 0.0
    %3111 = vmatpush.msra.mxu0 0.0
    %3112 = vmatpush.msra.mxu0 0.0
    %3113 = vmatpush.msra.mxu0 0.0
    %3114 = vmatpush.msra.mxu0 %v2393
    %3115 = vmatpush.msra.mxu0 %v2392
    %3116 = vmatpush.msra.mxu0 %v2391
    %3117 = vmatpush.msra.mxu0 %v2390
    %3118 = vmatpush.msra.mxu0 %v2389
    %3119 = vmatpush.msra.mxu0 %v2388
    %3120 = vmatpush.msra.mxu0 %v2387
    %3121 = vmatpush.msra.mxu0 %v2386
    %3122 = vmatmul.f32.gmra.mxu0 %v3104
    %v3123 = vpop.f32.mrf.mxu0
    %v3124 = vadd.f32 %v2395, %v3123
    %3125 = vdwg.mxu0
    %v3126 = vmul.f32 %v2992, 0.92
    %v3127 = vadd.f32 %v3126, %v3124
    %v3128 = vsel %vm2993, 0.0, %v3127
    %vm3129 = vcmp.gt.f32.partialorder %v3128, 0.85
    %v3130 = vsel %vm3129, 1, 0
    %v3131 = vcvt.s32.f32 %v3130
    %v3133 = vsel %vm2297, %v3131, 0
    %3135 = vmatpush.msra.mxu0 0.0
    %3136 = vmatpush.msra.mxu0 0.0
    %3137 = vmatpush.msra.mxu0 0.0
    %3138 = vmatpush.msra.mxu0 0.0
    %3139 = vmatpush.msra.mxu0 0.0
    %3140 = vmatpush.msra.mxu0 0.0
    %3141 = vmatpush.msra.mxu0 0.0
    %3142 = vmatpush.msra.mxu0 0.0
    %3143 = vmatpush.msra.mxu0 %v2433
    %3144 = vmatpush.msra.mxu0 %v2432
    %3145 = vmatpush.msra.mxu0 %v2431
    %3146 = vmatpush.msra.mxu0 %v2430
    %3147 = vmatpush.msra.mxu0 %v2429
    %3148 = vmatpush.msra.mxu0 %v2428
    %3149 = vmatpush.msra.mxu0 %v2427
    %3150 = vmatpush.msra.mxu0 %v2426
    %3151 = vmatmul.f32.gmra.mxu0 %v3133
    %v3152 = vpop.f32.mrf.mxu0
    %v3153 = vadd.f32 %v2435, %v3152
    %3154 = vdwg.mxu0
    %v3155 = vmul.f32 %v3021, 0.9
    %v3156 = vadd.f32 %v3155, %v3153
    %v3157 = vsel %vm3022, 0.0, %v3156
    %vm3158 = vcmp.gt.f32.partialorder %v3157, 0.9
    %v3159 = vsel %vm3158, 1, 0
    %v3160 = vcvt.s32.f32 %v3159
    %v3162 = vsel %vm2473, %v3160, 0
    %3164 = vmatpush.msra.mxu0 0.0
    %3165 = vmatpush.msra.mxu0 0.0
    %3166 = vmatpush.msra.mxu0 0.0
    %3167 = vmatpush.msra.mxu0 0.0
    %3168 = vmatpush.msra.mxu0 0.0
    %3169 = vmatpush.msra.mxu0 0.0
    %3170 = vmatpush.msra.mxu0 0.0
    %3171 = vmatpush.msra.mxu0 0.0
    %3172 = vmatpush.msra.mxu0 0.0
    %3173 = vmatpush.msra.mxu0 0.0
    %3174 = vmatpush.msra.mxu0 0.0
    %3175 = vmatpush.msra.mxu0 0.0
    %3176 = vmatpush.msra.mxu0 %v2469
    %3177 = vmatpush.msra.mxu0 %v2468
    %3178 = vmatpush.msra.mxu0 %v2467
    %3179 = vmatpush.msra.mxu0 %v2466
    %3180 = vmatmul.f32.gmra.mxu0 %v3162
    %v3181 = vpop.f32.mrf.mxu0
    %v3182 = vadd.f32 %v2471, %v3181
    %3183 = vdwg.mxu0
    %v3184 = vmul.f32 %v3050, 0.85
    %v3185 = vadd.f32 %v3184, %v3182
    %v3186 = vsel %vm3051, 0.0, %v3185
    %vm3187 = vcmp.gt.f32.partialorder %v3186, 0.95
    %v3188 = vsel %vm3187, 1, 0
    %v3189 = vcvt.s32.f32 %v3188
    %v3191 = vsel %vm2473, %v3189, 0
    %3193 = vmatpush.msra.mxu0 0.0
    %3194 = vmatpush.msra.mxu0 0.0
    %3195 = vmatpush.msra.mxu0 0.0
    %3196 = vmatpush.msra.mxu0 0.0
    %3197 = vmatpush.msra.mxu0 0.0
    %3198 = vmatpush.msra.mxu0 0.0
    %3199 = vmatpush.msra.mxu0 0.0
    %3200 = vmatpush.msra.mxu0 0.0
    %3201 = vmatpush.msra.mxu0 0.0
    %3202 = vmatpush.msra.mxu0 0.0
    %3203 = vmatpush.msra.mxu0 0.0
    %3204 = vmatpush.msra.mxu0 0.0
    %3205 = vmatpush.msra.mxu0 %v2506
    %3206 = vmatpush.msra.mxu0 %v2505
    %3207 = vmatpush.msra.mxu0 %v2504
    %3208 = vmatpush.msra.mxu0 %v2503
    %3209 = vmatmul.f32.gmra.mxu0 %v3191
    %v3210 = vpop.f32.mrf.mxu0
    %v3211 = vadd.f32 %v2508, %v3210
    %3212 = vdwg.mxu0
    %v3213 = vxor.u32 %v3211, 2147483648
    %v3214 = vmul.f32 %v3213, 1.442695
    %v3215 = vpow.pop %v3214
    %v3216 = vadd.f32 %v3215, 1.0
    %v3217 = vrcp.pop %v3216
    %v3218 = vmul.f32 %v3216, %v3217
    %v3219 = vsub.f32 1.0, %v3218
    %v3220 = vmul.f32 %v3217, %v3219
    %v3221 = vadd.f32 %v3217, %v3220
    %vm3222 = vweird.f32 %v3216
    %vm3223 = vweird.f32 %v3217
    %vm3224 = vmor %vm3222, %vm3223
    %v3225 = vsel %vm3224, %v3217, %v3221
    %v3226 = vand.u32 2147483647, %v3216
    %vm3227 = vcmp.eq.f32.partialorder %v3226, 8.507059e+37
    %v3228 = vand.u32 %v3216, 2147483648
    %v3229 = vor.u32 1.1754944e-38, %v3228
    %v3230 = vsel %vm3227, %v3229, %v3225
    %v3231 = vmul.f32 1.0, %v3230
    %v3232 = vadd.f32 %v3096, %v3231
    %v3233 = vmul.f32 %v3099, 0.95
    %v3234 = vadd.f32 %v3233, %v2379
    %v3235 = vsel %vm3100, 0.0, %v3234
    %vm3236 = vcmp.gt.f32.partialorder %v3235, 0.8
    %v3237 = vsel %vm3236, 1, 0
    %v3238 = vcvt.s32.f32 %v3237
    %v3240 = vsel %vm2297, %v3238, 0
    %3242 = vmatpush.msra.mxu0 0.0
    %3243 = vmatpush.msra.mxu0 0.0
    %3244 = vmatpush.msra.mxu0 0.0
    %3245 = vmatpush.msra.mxu0 0.0
    %3246 = vmatpush.msra.mxu0 0.0
    %3247 = vmatpush.msra.mxu0 0.0
    %3248 = vmatpush.msra.mxu0 0.0
    %3249 = vmatpush.msra.mxu0 0.0
    %3250 = vmatpush.msra.mxu0 %v2393
    %3251 = vmatpush.msra.mxu0 %v2392
    %3252 = vmatpush.msra.mxu0 %v2391
    %3253 = vmatpush.msra.mxu0 %v2390
    %3254 = vmatpush.msra.mxu0 %v2389
    %3255 = vmatpush.msra.mxu0 %v2388
    %3256 = vmatpush.msra.mxu0 %v2387
    %3257 = vmatpush.msra.mxu0 %v2386
    %3258 = vmatmul.f32.gmra.mxu0 %v3240
    %v3259 = vpop.f32.mrf.mxu0
    %v3260 = vadd.f32 %v2395, %v3259
    %3261 = vdwg.mxu0
    %v3262 = vmul.f32 %v3128, 0.92
    %v3263 = vadd.f32 %v3262, %v3260
    %v3264 = vsel %vm3129, 0.0, %v3263
    %vm3265 = vcmp.gt.f32.partialorder %v3264, 0.85
    %v3266 = vsel %vm3265, 1, 0
    %v3267 = vcvt.s32.f32 %v3266
    %v3269 = vsel %vm2297, %v3267, 0
    %3271 = vmatpush.msra.mxu0 0.0
    %3272 = vmatpush.msra.mxu0 0.0
    %3273 = vmatpush.msra.mxu0 0.0
    %3274 = vmatpush.msra.mxu0 0.0
    %3275 = vmatpush.msra.mxu0 0.0
    %3276 = vmatpush.msra.mxu0 0.0
    %3277 = vmatpush.msra.mxu0 0.0
    %3278 = vmatpush.msra.mxu0 0.0
    %3279 = vmatpush.msra.mxu0 %v2433
    %3280 = vmatpush.msra.mxu0 %v2432
    %3281 = vmatpush.msra.mxu0 %v2431
    %3282 = vmatpush.msra.mxu0 %v2430
    %3283 = vmatpush.msra.mxu0 %v2429
    %3284 = vmatpush.msra.mxu0 %v2428
    %3285 = vmatpush.msra.mxu0 %v2427
    %3286 = vmatpush.msra.mxu0 %v2426
    %3287 = vmatmul.f32.gmra.mxu0 %v3269
    %v3288 = vpop.f32.mrf.mxu0
    %v3289 = vadd.f32 %v2435, %v3288
    %3290 = vdwg.mxu0
    %v3291 = vmul.f32 %v3157, 0.9
    %v3292 = vadd.f32 %v3291, %v3289
    %v3293 = vsel %vm3158, 0.0, %v3292
    %vm3294 = vcmp.gt.f32.partialorder %v3293, 0.9
    %v3295 = vsel %vm3294, 1, 0
    %v3296 = vcvt.s32.f32 %v3295
    %v3298 = vsel %vm2473, %v3296, 0
    %3300 = vmatpush.msra.mxu0 0.0
    %3301 = vmatpush.msra.mxu0 0.0
    %3302 = vmatpush.msra.mxu0 0.0
    %3303 = vmatpush.msra.mxu0 0.0
    %3304 = vmatpush.msra.mxu0 0.0
    %3305 = vmatpush.msra.mxu0 0.0
    %3306 = vmatpush.msra.mxu0 0.0
    %3307 = vmatpush.msra.mxu0 0.0
    %3308 = vmatpush.msra.mxu0 0.0
    %3309 = vmatpush.msra.mxu0 0.0
    %3310 = vmatpush.msra.mxu0 0.0
    %3311 = vmatpush.msra.mxu0 0.0
    %3312 = vmatpush.msra.mxu0 %v2469
    %3313 = vmatpush.msra.mxu0 %v2468
    %3314 = vmatpush.msra.mxu0 %v2467
    %3315 = vmatpush.msra.mxu0 %v2466
    %3316 = vmatmul.f32.gmra.mxu0 %v3298
    %v3317 = vpop.f32.mrf.mxu0
    %v3318 = vadd.f32 %v2471, %v3317
    %3319 = vdwg.mxu0
    %v3320 = vmul.f32 %v3186, 0.85
    %v3321 = vadd.f32 %v3320, %v3318
    %v3322 = vsel %vm3187, 0.0, %v3321
    %vm3323 = vcmp.gt.f32.partialorder %v3322, 0.95
    %v3324 = vsel %vm3323, 1, 0
    %v3325 = vcvt.s32.f32 %v3324
    %v3327 = vsel %vm2473, %v3325, 0
    %3329 = vmatpush.msra.mxu0 0.0
    %3330 = vmatpush.msra.mxu0 0.0
    %3331 = vmatpush.msra.mxu0 0.0
    %3332 = vmatpush.msra.mxu0 0.0
    %3333 = vmatpush.msra.mxu0 0.0
    %3334 = vmatpush.msra.mxu0 0.0
    %3335 = vmatpush.msra.mxu0 0.0
    %3336 = vmatpush.msra.mxu0 0.0
    %3337 = vmatpush.msra.mxu0 0.0
    %3338 = vmatpush.msra.mxu0 0.0
    %3339 = vmatpush.msra.mxu0 0.0
    %3340 = vmatpush.msra.mxu0 0.0
    %3341 = vmatpush.msra.mxu0 %v2506
    %3342 = vmatpush.msra.mxu0 %v2505
    %3343 = vmatpush.msra.mxu0 %v2504
    %3344 = vmatpush.msra.mxu0 %v2503
    %3345 = vmatmul.f32.gmra.mxu0 %v3327
    %v3346 = vpop.f32.mrf.mxu0
    %v3347 = vadd.f32 %v2508, %v3346
    %3348 = vdwg.mxu0
    %v3349 = vxor.u32 %v3347, 2147483648
    %v3350 = vmul.f32 %v3349, 1.442695
    %v3351 = vpow.pop %v3350
    %v3352 = vadd.f32 %v3351, 1.0
    %v3353 = vrcp.pop %v3352
    %v3354 = vmul.f32 %v3352, %v3353
    %v3355 = vsub.f32 1.0, %v3354
    %v3356 = vmul.f32 %v3353, %v3355
    %v3357 = vadd.f32 %v3353, %v3356
    %vm3358 = vweird.f32 %v3352
    %vm3359 = vweird.f32 %v3353
    %vm3360 = vmor %vm3358, %vm3359
    %v3361 = vsel %vm3360, %v3353, %v3357
    %v3362 = vand.u32 2147483647, %v3352
    %vm3363 = vcmp.eq.f32.partialorder %v3362, 8.507059e+37
    %v3364 = vand.u32 %v3352, 2147483648
    %v3365 = vor.u32 1.1754944e-38, %v3364
    %v3366 = vsel %vm3363, %v3365, %v3361
    %v3367 = vmul.f32 1.0, %v3366
    %v3368 = vadd.f32 %v3232, %v3367
    %v3369 = vmul.f32 %v3235, 0.95
    %v3370 = vadd.f32 %v3369, %v2379
    %v3371 = vsel %vm3236, 0.0, %v3370
    %vm3372 = vcmp.gt.f32.partialorder %v3371, 0.8
    %v3373 = vsel %vm3372, 1, 0
    %v3374 = vcvt.s32.f32 %v3373
    %v3376 = vsel %vm2297, %v3374, 0
    %3378 = vmatpush.msra.mxu0 0.0
    %3379 = vmatpush.msra.mxu0 0.0
    %3380 = vmatpush.msra.mxu0 0.0
    %3381 = vmatpush.msra.mxu0 0.0
    %3382 = vmatpush.msra.mxu0 0.0
    %3383 = vmatpush.msra.mxu0 0.0
    %3384 = vmatpush.msra.mxu0 0.0
    %3385 = vmatpush.msra.mxu0 0.0
    %3386 = vmatpush.msra.mxu0 %v2393
    %3387 = vmatpush.msra.mxu0 %v2392
    %3388 = vmatpush.msra.mxu0 %v2391
    %3389 = vmatpush.msra.mxu0 %v2390
    %3390 = vmatpush.msra.mxu0 %v2389
    %3391 = vmatpush.msra.mxu0 %v2388
    %3392 = vmatpush.msra.mxu0 %v2387
    %3393 = vmatpush.msra.mxu0 %v2386
    %3394 = vmatmul.f32.gmra.mxu0 %v3376
    %v3395 = vpop.f32.mrf.mxu0
    %v3396 = vadd.f32 %v2395, %v3395
    %3397 = vdwg.mxu0
    %v3398 = vmul.f32 %v3264, 0.92
    %v3399 = vadd.f32 %v3398, %v3396
    %v3400 = vsel %vm3265, 0.0, %v3399
    %vm3401 = vcmp.gt.f32.partialorder %v3400, 0.85
    %v3402 = vsel %vm3401, 1, 0
    %v3403 = vcvt.s32.f32 %v3402
    %v3405 = vsel %vm2297, %v3403, 0
    %3407 = vmatpush.msra.mxu0 0.0
    %3408 = vmatpush.msra.mxu0 0.0
    %3409 = vmatpush.msra.mxu0 0.0
    %3410 = vmatpush.msra.mxu0 0.0
    %3411 = vmatpush.msra.mxu0 0.0
    %3412 = vmatpush.msra.mxu0 0.0
    %3413 = vmatpush.msra.mxu0 0.0
    %3414 = vmatpush.msra.mxu0 0.0
    %3415 = vmatpush.msra.mxu0 %v2433
    %3416 = vmatpush.msra.mxu0 %v2432
    %3417 = vmatpush.msra.mxu0 %v2431
    %3418 = vmatpush.msra.mxu0 %v2430
    %3419 = vmatpush.msra.mxu0 %v2429
    %3420 = vmatpush.msra.mxu0 %v2428
    %3421 = vmatpush.msra.mxu0 %v2427
    %3422 = vmatpush.msra.mxu0 %v2426
    %3423 = vmatmul.f32.gmra.mxu0 %v3405
    %v3424 = vpop.f32.mrf.mxu0
    %v3425 = vadd.f32 %v2435, %v3424
    %3426 = vdwg.mxu0
    %v3427 = vmul.f32 %v3293, 0.9
    %v3428 = vadd.f32 %v3427, %v3425
    %v3429 = vsel %vm3294, 0.0, %v3428
    %vm3430 = vcmp.gt.f32.partialorder %v3429, 0.9
    %v3431 = vsel %vm3430, 1, 0
    %v3432 = vcvt.s32.f32 %v3431
    %v3434 = vsel %vm2473, %v3432, 0
    %3436 = vmatpush.msra.mxu0 0.0
    %3437 = vmatpush.msra.mxu0 0.0
    %3438 = vmatpush.msra.mxu0 0.0
    %3439 = vmatpush.msra.mxu0 0.0
    %3440 = vmatpush.msra.mxu0 0.0
    %3441 = vmatpush.msra.mxu0 0.0
    %3442 = vmatpush.msra.mxu0 0.0
    %3443 = vmatpush.msra.mxu0 0.0
    %3444 = vmatpush.msra.mxu0 0.0
    %3445 = vmatpush.msra.mxu0 0.0
    %3446 = vmatpush.msra.mxu0 0.0
    %3447 = vmatpush.msra.mxu0 0.0
    %3448 = vmatpush.msra.mxu0 %v2469
    %3449 = vmatpush.msra.mxu0 %v2468
    %3450 = vmatpush.msra.mxu0 %v2467
    %3451 = vmatpush.msra.mxu0 %v2466
    %3452 = vmatmul.f32.gmra.mxu0 %v3434
    %v3453 = vpop.f32.mrf.mxu0
    %v3454 = vadd.f32 %v2471, %v3453
    %3455 = vdwg.mxu0
    %v3456 = vmul.f32 %v3322, 0.85
    %v3457 = vadd.f32 %v3456, %v3454
    %v3458 = vsel %vm3323, 0.0, %v3457
    %vm3459 = vcmp.gt.f32.partialorder %v3458, 0.95
    %v3460 = vsel %vm3459, 1, 0
    %v3461 = vcvt.s32.f32 %v3460
    %v3463 = vsel %vm2473, %v3461, 0
    %3465 = vmatpush.msra.mxu0 0.0
    %3466 = vmatpush.msra.mxu0 0.0
    %3467 = vmatpush.msra.mxu0 0.0
    %3468 = vmatpush.msra.mxu0 0.0
    %3469 = vmatpush.msra.mxu0 0.0
    %3470 = vmatpush.msra.mxu0 0.0
    %3471 = vmatpush.msra.mxu0 0.0
    %3472 = vmatpush.msra.mxu0 0.0
    %3473 = vmatpush.msra.mxu0 0.0
    %3474 = vmatpush.msra.mxu0 0.0
    %3475 = vmatpush.msra.mxu0 0.0
    %3476 = vmatpush.msra.mxu0 0.0
    %3477 = vmatpush.msra.mxu0 %v2506
    %3478 = vmatpush.msra.mxu0 %v2505
    %3479 = vmatpush.msra.mxu0 %v2504
    %3480 = vmatpush.msra.mxu0 %v2503
    %3481 = vmatmul.f32.gmra.mxu0 %v3463
    %v3482 = vpop.f32.mrf.mxu0
    %v3483 = vadd.f32 %v2508, %v3482
    %3484 = vdwg.mxu0
    %v3485 = vxor.u32 %v3483, 2147483648
    %v3486 = vmul.f32 %v3485, 1.442695
    %v3487 = vpow.pop %v3486
    %v3488 = vadd.f32 %v3487, 1.0
    %v3489 = vrcp.pop %v3488
    %v3490 = vmul.f32 %v3488, %v3489
    %v3491 = vsub.f32 1.0, %v3490
    %v3492 = vmul.f32 %v3489, %v3491
    %v3493 = vadd.f32 %v3489, %v3492
    %vm3494 = vweird.f32 %v3488
    %vm3495 = vweird.f32 %v3489
    %vm3496 = vmor %vm3494, %vm3495
    %v3497 = vsel %vm3496, %v3489, %v3493
    %v3498 = vand.u32 2147483647, %v3488
    %vm3499 = vcmp.eq.f32.partialorder %v3498, 8.507059e+37
    %v3500 = vand.u32 %v3488, 2147483648
    %v3501 = vor.u32 1.1754944e-38, %v3500
    %v3502 = vsel %vm3499, %v3501, %v3497
    %v3503 = vmul.f32 1.0, %v3502
    %v3504 = vadd.f32 %v3368, %v3503
    %v3505 = vmul.f32 %v3371, 0.95
    %v3506 = vadd.f32 %v3505, %v2379
    %v3507 = vsel %vm3372, 0.0, %v3506
    %vm3508 = vcmp.gt.f32.partialorder %v3507, 0.8
    %v3509 = vsel %vm3508, 1, 0
    %v3510 = vcvt.s32.f32 %v3509
    %v3512 = vsel %vm2297, %v3510, 0
    %3514 = vmatpush.msra.mxu0 0.0
    %3515 = vmatpush.msra.mxu0 0.0
    %3516 = vmatpush.msra.mxu0 0.0
    %3517 = vmatpush.msra.mxu0 0.0
    %3518 = vmatpush.msra.mxu0 0.0
    %3519 = vmatpush.msra.mxu0 0.0
    %3520 = vmatpush.msra.mxu0 0.0
    %3521 = vmatpush.msra.mxu0 0.0
    %3522 = vmatpush.msra.mxu0 %v2393
    %3523 = vmatpush.msra.mxu0 %v2392
    %3524 = vmatpush.msra.mxu0 %v2391
    %3525 = vmatpush.msra.mxu0 %v2390
    %3526 = vmatpush.msra.mxu0 %v2389
    %3527 = vmatpush.msra.mxu0 %v2388
    %3528 = vmatpush.msra.mxu0 %v2387
    %3529 = vmatpush.msra.mxu0 %v2386
    %3530 = vmatmul.f32.gmra.mxu0 %v3512
    %v3531 = vpop.f32.mrf.mxu0
    %v3532 = vadd.f32 %v2395, %v3531
    %3533 = vdwg.mxu0
    %v3534 = vmul.f32 %v3400, 0.92
    %v3535 = vadd.f32 %v3534, %v3532
    %v3536 = vsel %vm3401, 0.0, %v3535
    %vm3537 = vcmp.gt.f32.partialorder %v3536, 0.85
    %v3538 = vsel %vm3537, 1, 0
    %v3539 = vcvt.s32.f32 %v3538
    %v3541 = vsel %vm2297, %v3539, 0
    %3543 = vmatpush.msra.mxu0 0.0
    %3544 = vmatpush.msra.mxu0 0.0
    %3545 = vmatpush.msra.mxu0 0.0
    %3546 = vmatpush.msra.mxu0 0.0
    %3547 = vmatpush.msra.mxu0 0.0
    %3548 = vmatpush.msra.mxu0 0.0
    %3549 = vmatpush.msra.mxu0 0.0
    %3550 = vmatpush.msra.mxu0 0.0
    %3551 = vmatpush.msra.mxu0 %v2433
    %3552 = vmatpush.msra.mxu0 %v2432
    %3553 = vmatpush.msra.mxu0 %v2431
    %3554 = vmatpush.msra.mxu0 %v2430
    %3555 = vmatpush.msra.mxu0 %v2429
    %3556 = vmatpush.msra.mxu0 %v2428
    %3557 = vmatpush.msra.mxu0 %v2427
    %3558 = vmatpush.msra.mxu0 %v2426
    %3559 = vmatmul.f32.gmra.mxu0 %v3541
    %v3560 = vpop.f32.mrf.mxu0
    %v3561 = vadd.f32 %v2435, %v3560
    %3562 = vdwg.mxu0
    %v3563 = vmul.f32 %v3429, 0.9
    %v3564 = vadd.f32 %v3563, %v3561
    %v3565 = vsel %vm3430, 0.0, %v3564
    %vm3566 = vcmp.gt.f32.partialorder %v3565, 0.9
    %v3567 = vsel %vm3566, 1, 0
    %v3568 = vcvt.s32.f32 %v3567
    %v3570 = vsel %vm2473, %v3568, 0
    %3572 = vmatpush.msra.mxu0 0.0
    %3573 = vmatpush.msra.mxu0 0.0
    %3574 = vmatpush.msra.mxu0 0.0
    %3575 = vmatpush.msra.mxu0 0.0
    %3576 = vmatpush.msra.mxu0 0.0
    %3577 = vmatpush.msra.mxu0 0.0
    %3578 = vmatpush.msra.mxu0 0.0
    %3579 = vmatpush.msra.mxu0 0.0
    %3580 = vmatpush.msra.mxu0 0.0
    %3581 = vmatpush.msra.mxu0 0.0
    %3582 = vmatpush.msra.mxu0 0.0
    %3583 = vmatpush.msra.mxu0 0.0
    %3584 = vmatpush.msra.mxu0 %v2469
    %3585 = vmatpush.msra.mxu0 %v2468
    %3586 = vmatpush.msra.mxu0 %v2467
    %3587 = vmatpush.msra.mxu0 %v2466
    %3588 = vmatmul.f32.gmra.mxu0 %v3570
    %v3589 = vpop.f32.mrf.mxu0
    %v3590 = vadd.f32 %v2471, %v3589
    %3591 = vdwg.mxu0
    %v3592 = vmul.f32 %v3458, 0.85
    %v3593 = vadd.f32 %v3592, %v3590
    %v3594 = vsel %vm3459, 0.0, %v3593
    %vm3595 = vcmp.gt.f32.partialorder %v3594, 0.95
    %v3596 = vsel %vm3595, 1, 0
    %v3597 = vcvt.s32.f32 %v3596
    %v3599 = vsel %vm2473, %v3597, 0
    %3601 = vmatpush.msra.mxu0 0.0
    %3602 = vmatpush.msra.mxu0 0.0
    %3603 = vmatpush.msra.mxu0 0.0
    %3604 = vmatpush.msra.mxu0 0.0
    %3605 = vmatpush.msra.mxu0 0.0
    %3606 = vmatpush.msra.mxu0 0.0
    %3607 = vmatpush.msra.mxu0 0.0
    %3608 = vmatpush.msra.mxu0 0.0
    %3609 = vmatpush.msra.mxu0 0.0
    %3610 = vmatpush.msra.mxu0 0.0
    %3611 = vmatpush.msra.mxu0 0.0
    %3612 = vmatpush.msra.mxu0 0.0
    %3613 = vmatpush.msra.mxu0 %v2506
    %3614 = vmatpush.msra.mxu0 %v2505
    %3615 = vmatpush.msra.mxu0 %v2504
    %3616 = vmatpush.msra.mxu0 %v2503
    %3617 = vmatmul.f32.gmra.mxu0 %v3599
    %v3618 = vpop.f32.mrf.mxu0
    %v3619 = vadd.f32 %v2508, %v3618
    %3620 = vdwg.mxu0
    %v3621 = vxor.u32 %v3619, 2147483648
    %v3622 = vmul.f32 %v3621, 1.442695
    %v3623 = vpow.pop %v3622
    %v3624 = vadd.f32 %v3623, 1.0
    %v3625 = vrcp.pop %v3624
    %v3626 = vmul.f32 %v3624, %v3625
    %v3627 = vsub.f32 1.0, %v3626
    %v3628 = vmul.f32 %v3625, %v3627
    %v3629 = vadd.f32 %v3625, %v3628
    %vm3630 = vweird.f32 %v3624
    %vm3631 = vweird.f32 %v3625
    %vm3632 = vmor %vm3630, %vm3631
    %v3633 = vsel %vm3632, %v3625, %v3629
    %v3634 = vand.u32 2147483647, %v3624
    %vm3635 = vcmp.eq.f32.partialorder %v3634, 8.507059e+37
    %v3636 = vand.u32 %v3624, 2147483648
    %v3637 = vor.u32 1.1754944e-38, %v3636
    %v3638 = vsel %vm3635, %v3637, %v3633
    %v3639 = vmul.f32 1.0, %v3638
    %v3640 = vadd.f32 %v3504, %v3639
    %v3641 = vmul.f32 %v3507, 0.95
    %v3642 = vadd.f32 %v3641, %v2379
    %v3643 = vsel %vm3508, 0.0, %v3642
    %vm3644 = vcmp.gt.f32.partialorder %v3643, 0.8
    %v3645 = vsel %vm3644, 1, 0
    %v3646 = vcvt.s32.f32 %v3645
    %v3648 = vsel %vm2297, %v3646, 0
    %3650 = vmatpush.msra.mxu0 0.0
    %3651 = vmatpush.msra.mxu0 0.0
    %3652 = vmatpush.msra.mxu0 0.0
    %3653 = vmatpush.msra.mxu0 0.0
    %3654 = vmatpush.msra.mxu0 0.0
    %3655 = vmatpush.msra.mxu0 0.0
    %3656 = vmatpush.msra.mxu0 0.0
    %3657 = vmatpush.msra.mxu0 0.0
    %3658 = vmatpush.msra.mxu0 %v2393
    %3659 = vmatpush.msra.mxu0 %v2392
    %3660 = vmatpush.msra.mxu0 %v2391
    %3661 = vmatpush.msra.mxu0 %v2390
    %3662 = vmatpush.msra.mxu0 %v2389
    %3663 = vmatpush.msra.mxu0 %v2388
    %3664 = vmatpush.msra.mxu0 %v2387
    %3665 = vmatpush.msra.mxu0 %v2386
    %3666 = vmatmul.f32.gmra.mxu0 %v3648
    %v3667 = vpop.f32.mrf.mxu0
    %v3668 = vadd.f32 %v2395, %v3667
    %3669 = vdwg.mxu0
    %v3670 = vmul.f32 %v3536, 0.92
    %v3671 = vadd.f32 %v3670, %v3668
    %v3672 = vsel %vm3537, 0.0, %v3671
    %vm3673 = vcmp.gt.f32.partialorder %v3672, 0.85
    %v3674 = vsel %vm3673, 1, 0
    %v3675 = vcvt.s32.f32 %v3674
    %v3677 = vsel %vm2297, %v3675, 0
    %3679 = vmatpush.msra.mxu0 0.0
    %3680 = vmatpush.msra.mxu0 0.0
    %3681 = vmatpush.msra.mxu0 0.0
    %3682 = vmatpush.msra.mxu0 0.0
    %3683 = vmatpush.msra.mxu0 0.0
    %3684 = vmatpush.msra.mxu0 0.0
    %3685 = vmatpush.msra.mxu0 0.0
    %3686 = vmatpush.msra.mxu0 0.0
    %3687 = vmatpush.msra.mxu0 %v2433
    %3688 = vmatpush.msra.mxu0 %v2432
    %3689 = vmatpush.msra.mxu0 %v2431
    %3690 = vmatpush.msra.mxu0 %v2430
    %3691 = vmatpush.msra.mxu0 %v2429
    %3692 = vmatpush.msra.mxu0 %v2428
    %3693 = vmatpush.msra.mxu0 %v2427
    %3694 = vmatpush.msra.mxu0 %v2426
    %3695 = vmatmul.f32.gmra.mxu0 %v3677
    %v3696 = vpop.f32.mrf.mxu0
    %v3697 = vadd.f32 %v2435, %v3696
    %3698 = vdwg.mxu0
    %v3699 = vmul.f32 %v3565, 0.9
    %v3700 = vadd.f32 %v3699, %v3697
    %v3701 = vsel %vm3566, 0.0, %v3700
    %vm3702 = vcmp.gt.f32.partialorder %v3701, 0.9
    %v3703 = vsel %vm3702, 1, 0
    %v3704 = vcvt.s32.f32 %v3703
    %v3706 = vsel %vm2473, %v3704, 0
    %3708 = vmatpush.msra.mxu0 0.0
    %3709 = vmatpush.msra.mxu0 0.0
    %3710 = vmatpush.msra.mxu0 0.0
    %3711 = vmatpush.msra.mxu0 0.0
    %3712 = vmatpush.msra.mxu0 0.0
    %3713 = vmatpush.msra.mxu0 0.0
    %3714 = vmatpush.msra.mxu0 0.0
    %3715 = vmatpush.msra.mxu0 0.0
    %3716 = vmatpush.msra.mxu0 0.0
    %3717 = vmatpush.msra.mxu0 0.0
    %3718 = vmatpush.msra.mxu0 0.0
    %3719 = vmatpush.msra.mxu0 0.0
    %3720 = vmatpush.msra.mxu0 %v2469
    %3721 = vmatpush.msra.mxu0 %v2468
    %3722 = vmatpush.msra.mxu0 %v2467
    %3723 = vmatpush.msra.mxu0 %v2466
    %3724 = vmatmul.f32.gmra.mxu0 %v3706
    %v3725 = vpop.f32.mrf.mxu0
    %v3726 = vadd.f32 %v2471, %v3725
    %3727 = vdwg.mxu0
    %v3728 = vmul.f32 %v3594, 0.85
    %v3729 = vadd.f32 %v3728, %v3726
    %v3730 = vsel %vm3595, 0.0, %v3729
    %vm3731 = vcmp.gt.f32.partialorder %v3730, 0.95
    %v3732 = vsel %vm3731, 1, 0
    %v3733 = vcvt.s32.f32 %v3732
    %v3735 = vsel %vm2473, %v3733, 0
    %3737 = vmatpush.msra.mxu0 0.0
    %3738 = vmatpush.msra.mxu0 0.0
    %3739 = vmatpush.msra.mxu0 0.0
    %3740 = vmatpush.msra.mxu0 0.0
    %3741 = vmatpush.msra.mxu0 0.0
    %3742 = vmatpush.msra.mxu0 0.0
    %3743 = vmatpush.msra.mxu0 0.0
    %3744 = vmatpush.msra.mxu0 0.0
    %3745 = vmatpush.msra.mxu0 0.0
    %3746 = vmatpush.msra.mxu0 0.0
    %3747 = vmatpush.msra.mxu0 0.0
    %3748 = vmatpush.msra.mxu0 0.0
    %3749 = vmatpush.msra.mxu0 %v2506
    %3750 = vmatpush.msra.mxu0 %v2505
    %3751 = vmatpush.msra.mxu0 %v2504
    %3752 = vmatpush.msra.mxu0 %v2503
    %3753 = vmatmul.f32.gmra.mxu0 %v3735
    %v3754 = vpop.f32.mrf.mxu0
    %v3755 = vadd.f32 %v2508, %v3754
    %3756 = vdwg.mxu0
    %v3757 = vxor.u32 %v3755, 2147483648
    %v3758 = vmul.f32 %v3757, 1.442695
    %v3759 = vpow.pop %v3758
    %v3760 = vadd.f32 %v3759, 1.0
    %v3761 = vrcp.pop %v3760
    %v3762 = vmul.f32 %v3760, %v3761
    %v3763 = vsub.f32 1.0, %v3762
    %v3764 = vmul.f32 %v3761, %v3763
    %v3765 = vadd.f32 %v3761, %v3764
    %vm3766 = vweird.f32 %v3760
    %vm3767 = vweird.f32 %v3761
    %vm3768 = vmor %vm3766, %vm3767
    %v3769 = vsel %vm3768, %v3761, %v3765
    %v3770 = vand.u32 2147483647, %v3760
    %vm3771 = vcmp.eq.f32.partialorder %v3770, 8.507059e+37
    %v3772 = vand.u32 %v3760, 2147483648
    %v3773 = vor.u32 1.1754944e-38, %v3772
    %v3774 = vsel %vm3771, %v3773, %v3769
    %v3775 = vmul.f32 1.0, %v3774
    %v3776 = vadd.f32 %v3640, %v3775
    %v3777 = vmul.f32 %v3776, 0.1
    %3778 = vst [vmem:[%s12] sm:$0xff] %v3777
    // Predicated region
    $region74: #{enhanced_snn.1} parent=1 // pred_check
      _
    $region75: #{enhanced_snn.1} parent=1 // pred_check_branch
      %3780 = sbr.rel (0) target = $region77
    $region76: #{enhanced_snn.1} parent=1 // pred_region
      _
    $region77: #{enhanced_snn.1} parent=1 // pred_fallthru
      _
    // Predicated region
    $region78: #{enhanced_snn.1} parent=1 // pred_check
      _
    $region79: #{enhanced_snn.1} parent=1 // pred_check_branch
      %3782 = sbr.rel (0) target = $region81
    $region80: #{enhanced_snn.1} parent=1 // pred_region
      _
    $region81: #{enhanced_snn.1} parent=1 // pred_fallthru
      _
    %3783 = vsyncpa [#allocation4], 1
    %3784 = vsyncpa [#allocation6], 1
    %3785 = vsyncpa [#allocation9], 1
    %3786 = vsyncpa [#allocation12], 1

</llo_original>
